<compile_context>
chip_gen: v7x
topology: tpu7x:2x2x1
jax: 0.10.0
libtpu: 0.0.40
codegen_flags: <defaults>
</compile_context>

<pallas_src>
import jax
import jax.numpy as jnp
from jax.experimental import pallas as pl
from jax.experimental.pallas import tpu as pltpu

K1, S1 = 8, 4            # conv1 kernel / stride
K2, S2 = 4, 2            # conv2 kernel / stride
OC1, OC2 = 32, 64        # conv channel counts (fixed by the module)


def _out_hw(n, k, s):
    return (n - k) // s + 1


# ------------------------------ builder --------------------------------------
def make_feature_cnn(params, in_shape, b_tile=16):
    """Build a jitted forward(x: [B,C,H,W] f32) -> [B, features_dim] f32."""
    C, H, W = in_shape
    w1, b1, w2, b2, wl, bl = params
    F = wl.shape[0]
    OH1, OW1 = _out_hw(H, K1, S1), _out_hw(W, K1, S1)
    OH2, OW2 = _out_hw(OH1, K2, S2), _out_hw(OW1, K2, S2)
    assert OH2 >= 1 and OW2 >= 1, "spatial size too small for this CNN"
    NP1 = OH1 * OW1            # conv1 output positions per image
    NP2 = OH2 * OW2            # conv2 output positions per image
    KK2 = K2 * K2              # conv2 taps
    CKK1 = C * K1 * K1         # conv1 patch length
    assert wl.shape[1] == OC2 * NP2

    BT = b_tile
    # sublane alignment for all in-kernel static row slices / scratch stores
    assert BT % 8 == 0 and (NP2 * BT) % 8 == 0
    ROWS = KK2 * NP2 * BT      # conv1 matmul rows per grid step

    # conv_general_dilated_patches must emit features in (c, kh, kw) order to
    # match the OIHW flatten of w1 below -- assert it explicitly (cheap probe).
    _probe = jnp.arange(CKK1, dtype=jnp.float32).reshape(1, C, K1, K1)
    _got = jax.lax.conv_general_dilated_patches(
        _probe, filter_shape=(K1, K1), window_strides=(S1, S1), padding="VALID",
        dimension_numbers=("NCHW", "OIHW", "NHWC")).reshape(-1)
    assert bool(jnp.all(_got == jnp.arange(CKK1, dtype=jnp.float32))), \
        "conv_general_dilated_patches feature order != (c, kh, kw)"

    # ---- one-time weight repack into kernel-ready layouts (bf16 for MXU) ----
    w1_re = jnp.asarray(w1.reshape(OC1, CKK1).T, jnp.bfloat16)        # (CKK1, OC1)
    # conv2 weight flattened so lane index = k*OC1 + c1, k = kh*K2 + kw
    w2_flat = jnp.asarray(
        w2.transpose(2, 3, 1, 0).reshape(KK2 * OC1, OC2), jnp.bfloat16)  # (512, OC2)
    # linear weight flattened so lane index = p*OC2 + c2, p = oh2*OW2 + ow2
    wl_flat = jnp.asarray(
        wl.reshape(F, OC2, OH2, OW2).transpose(2, 3, 1, 0).reshape(NP2 * OC2, F),
        jnp.bfloat16)                                                  # (576, F)
    b1_re = jnp.asarray(b1.reshape(1, OC1), jnp.float32)
    b2_re = jnp.asarray(b2.reshape(1, OC2), jnp.float32)
    bl_re = jnp.asarray(bl.reshape(1, F), jnp.float32)

    # conv1-output row feeding conv2 tap k=(kh,kw) at position p=(oh2,ow2);
    # tap-major (k outer, p inner) so each tap is a contiguous row block.
    row_ids = jnp.asarray(
        [(S2 * oh2 + kh) * OW1 + (S2 * ow2 + kw)
         for kh in range(K2) for kw in range(K2)
         for oh2 in range(OH2) for ow2 in range(OW2)],
        dtype=jnp.int32)                                               # (KK2*NP2,)

    # ------------------------------ kernel -----------------------------------
    def kernel(p_ref, w1_ref, b1_ref, w2_ref, b2_ref, wl_ref, bl_ref, o_ref,
               lhs2_ref, lhs3_ref):
        # conv1: ONE MXU matmul over every (tap, position, image) row of the
        # tile.  Rows are ordered (k, p, b).  bf16 in, f32 accumulate.
        h1 = jnp.dot(p_ref[...], w1_ref[...], preferred_element_type=jnp.float32)
        h1 = jnp.maximum(h1 + b1_ref[...], 0.0).astype(jnp.bfloat16)  # (ROWS, OC1)

        # Repack for conv2: tap k's contiguous, aligned row block -> lane chunk
        # k of the scratch, giving lhs2 of shape (NP2*BT, KK2*OC1), rows (p, b).
        for k in range(KK2):
            lhs2_ref[:, k * OC1:(k + 1) * OC1] = \
                h1[k * NP2 * BT:(k + 1) * NP2 * BT, :]

        # conv2: ONE (NP2*BT, KK2*OC1) x (KK2*OC1, OC2) matmul.
        h2 = jnp.dot(lhs2_ref[...], w2_ref[...],
                     preferred_element_type=jnp.float32)
        h2 = jnp.maximum(h2 + b2_ref[...], 0.0).astype(jnp.bfloat16)  # (NP2*BT, OC2)

        # Repack for the Linear (PyTorch Flatten order handled by wl_flat):
        # position p's contiguous row block -> lane chunk p, lhs3 (BT, NP2*OC2).
        for p in range(NP2):
            lhs3_ref[:, p * OC2:(p + 1) * OC2] = h2[p * BT:(p + 1) * BT, :]

        # Linear: ONE (BT, NP2*OC2) x (NP2*OC2, F) matmul + bias + ReLU.
        h3 = jnp.dot(lhs3_ref[...], wl_ref[...],
                     preferred_element_type=jnp.float32)
        o_ref[...] = jnp.maximum(h3 + bl_ref[...], 0.0)               # (BT, F)

    # ------------------------------ wrapper -----------------------------------
    @jax.jit
    def forward(x):
        B = x.shape[0]
        num_steps = -(-B // BT)
        B_pad = num_steps * BT

        # im2col in bf16 (halves the XLA-side intermediate's HBM traffic);
        # feature order (c, kh, kw) matches the OIHW flatten of w1_re.
        xb = x.astype(jnp.bfloat16)
        p = jax.lax.conv_general_dilated_patches(
            xb, filter_shape=(K1, K1), window_strides=(S1, S1), padding="VALID",
            dimension_numbers=("NCHW", "OIHW", "NHWC"))       # (B, OH1, OW1, CKK1)
        p = p.reshape(B, NP1, CKK1).astype(jnp.bfloat16)
        if B_pad != B:
            p = jnp.pad(p, ((0, B_pad - B), (0, 0), (0, 0)))

        # Duplicate/reorder conv1-patch rows tap-major (k, p), then arrange the
        # per-step row order as (k, p, b) so every block the kernel slices is a
        # contiguous, 8-row-aligned range.
        p = jnp.take(p, row_ids, axis=1)                      # (B_pad, KK2*NP2, CKK1)
        p = p.reshape(num_steps, BT, KK2 * NP2, CKK1).transpose(0, 2, 1, 3)
        p = p.reshape(num_steps * ROWS, CKK1)                 # (steps*ROWS, CKK1)

        flops = 2 * B_pad * (KK2 * NP2 * CKK1 * OC1
                             + NP2 * KK2 * OC1 * OC2
                             + NP2 * OC2 * F)
        bytes_accessed = (2 * (B_pad * KK2 * NP2 * CKK1 + CKK1 * OC1
                               + KK2 * OC1 * OC2 + NP2 * OC2 * F)
                          + 4 * (OC1 + OC2 + F + B_pad * F))

        out = pl.pallas_call(
            kernel,
            out_shape=jax.ShapeDtypeStruct((B_pad, F), jnp.float32),
            grid=(num_steps,),
            in_specs=[
                pl.BlockSpec((ROWS, CKK1), lambda s: (s, 0)),        # patches tile
                pl.BlockSpec((CKK1, OC1), lambda s: (0, 0)),         # resident weights
                pl.BlockSpec((1, OC1), lambda s: (0, 0)),
                pl.BlockSpec((KK2 * OC1, OC2), lambda s: (0, 0)),
                pl.BlockSpec((1, OC2), lambda s: (0, 0)),
                pl.BlockSpec((NP2 * OC2, F), lambda s: (0, 0)),
                pl.BlockSpec((1, F), lambda s: (0, 0)),
            ],
            out_specs=pl.BlockSpec((BT, F), lambda s: (s, 0)),       # lane-dense slab
            scratch_shapes=[
                pltpu.VMEM((NP2 * BT, KK2 * OC1), jnp.bfloat16),     # conv2 lhs
                pltpu.VMEM((BT, NP2 * OC2), jnp.bfloat16),           # linear lhs
            ],
            compiler_params=pltpu.CompilerParams(
                dimension_semantics=("parallel",),
                vmem_limit_bytes=32 * 1024 * 1024),
            cost_estimate=pl.CostEstimate(
                flops=flops, transcendentals=0, bytes_accessed=bytes_accessed),
        )(p, w1_re, b1_re, w2_flat, b2_re, wl_flat, bl_re)
        return out[:B]

    return forward


# ------------------------------ params / reference ----------------------------
def init_params(key, in_channels, hw, features_dim):
    H, W = hw
    OH1, OW1 = _out_hw(H, K1, S1), _out_hw(W, K1, S1)
    OH2, OW2 = _out_hw(OH1, K2, S2), _out_hw(OW1, K2, S2)
    n_flatten = OC2 * OH2 * OW2
    ks = jax.random.split(key, 6)
    w1 = 0.05 * jax.random.normal(ks[0], (OC1, in_channels, K1, K1), jnp.float32)
    b1 = 0.01 * jax.random.normal(ks[1], (OC1,), jnp.float32)
    w2 = 0.05 * jax.random.normal(ks[2], (OC2, OC1, K2, K2), jnp.float32)
    b2 = 0.01 * jax.random.normal(ks[3], (OC2,), jnp.float32)
    wl = 0.05 * jax.random.normal(ks[4], (features_dim, n_flatten), jnp.float32)
    bl = 0.01 * jax.random.normal(ks[5], (features_dim,), jnp.float32)
    return (w1, b1, w2, b2, wl, bl)


def reference(x, params, mm_dtype=jnp.float32):
    """Pure-JAX reference with PyTorch semantics.  Matmul operands are cast to
    `mm_dtype` with f32 accumulation, so the kernel's bf16 MXU path can be
    checked tightly and the full-f32 semantics loosely."""
    w1, b1, w2, b2, wl, bl = params
    dn = ("NCHW", "OIHW", "NCHW")

    def conv(a, w, s):
        return jax.lax.conv_general_dilated(
            a.astype(mm_dtype), w.astype(mm_dtype), (s, s), "VALID",
            dimension_numbers=dn, preferred_element_type=jnp.float32)

    y = jnp.maximum(conv(x, w1, S1) + b1[None, :, None, None], 0.0)
    y = jnp.maximum(conv(y, w2, S2) + b2[None, :, None, None], 0.0)
    y = y.reshape(y.shape[0], -1)
    y = jnp.dot(y.astype(mm_dtype), wl.T.astype(mm_dtype),
                preferred_element_type=jnp.float32) + bl
    return jnp.maximum(y, 0.0)


# ---------------------------------- main --------------------------------------
if __name__ == "__main__":
    key = jax.random.PRNGKey(0)
    kx, kp = jax.random.split(key)

    # observation_space.shape = (4, 36, 36) (smallest convenient spatial size
    # that keeps both convs valid), batch=32 -> grid of 2 fat steps,
    # features_dim=128 (lane-dense output).
    B, C, H, W = 32, 4, 36, 36
    FEATURES_DIM = 128

    x = jax.random.normal(kx, (B, C, H, W), jnp.float32)
    params = init_params(kp, C, (H, W), FEATURES_DIM)

    forward = make_feature_cnn(params, (C, H, W), b_tile=16)
    out = jax.block_until_ready(forward(x))
    assert out.shape == (B, FEATURES_DIM), out.shape

    # Tight check vs. a reference using the same bf16-operand / f32-accumulate
    # arithmetic as the kernel.
    ref_bf16 = jax.block_until_ready(reference(x, params, jnp.bfloat16))
    assert jnp.allclose(out, ref_bf16, atol=5e-3, rtol=5e-3), \
        float(jnp.max(jnp.abs(out - ref_bf16)))

    # Loose sanity check vs. the full-f32 reference (kernel feeds the MXU bf16).
    ref_f32 = jax.block_until_ready(reference(x, params, jnp.float32))
    assert jnp.allclose(out, ref_f32, atol=1e-1, rtol=1e-1), \
        float(jnp.max(jnp.abs(out - ref_f32)))

    print("KERNEL_OK")
</pallas_src>

<mosaic_0001>
module attributes {stable_mosaic.version = 11 : i64} {
  func.func @kernel(%arg0: i32, %arg1: memref<2304x256xbf16, #tpu.memory_space<vmem>>, %arg2: memref<256x32xbf16, #tpu.memory_space<vmem>>, %arg3: memref<1x32xf32, #tpu.memory_space<vmem>>, %arg4: memref<512x64xbf16, #tpu.memory_space<vmem>>, %arg5: memref<1x64xf32, #tpu.memory_space<vmem>>, %arg6: memref<576x128xbf16, #tpu.memory_space<vmem>>, %arg7: memref<1x128xf32, #tpu.memory_space<vmem>>, %arg8: memref<16x128xf32, #tpu.memory_space<vmem>>, %arg9: memref<144x512xbf16, #tpu.memory_space<vmem>>, %arg10: memref<16x576xbf16, #tpu.memory_space<vmem>>) attributes {dimension_semantics = [#tpu.dimension_semantics<parallel>], iteration_bounds = array<i64: 2>, scalar_prefetch = 0 : i64, scratch_operands = 2 : i64, tpu.core_type = #tpu.core_type<tc>, window_params = [{transform_indices = @transform_0, window_bounds = array<i64: 2304, 256>}, {pipeline_mode = #tpu.pipeline_mode<synchronous>, transform_indices = @transform_1, window_bounds = array<i64: 256, 32>}, {pipeline_mode = #tpu.pipeline_mode<synchronous>, transform_indices = @transform_2, window_bounds = array<i64: 1, 32>}, {pipeline_mode = #tpu.pipeline_mode<synchronous>, transform_indices = @transform_3, window_bounds = array<i64: 512, 64>}, {pipeline_mode = #tpu.pipeline_mode<synchronous>, transform_indices = @transform_4, window_bounds = array<i64: 1, 64>}, {pipeline_mode = #tpu.pipeline_mode<synchronous>, transform_indices = @transform_5, window_bounds = array<i64: 576, 128>}, {pipeline_mode = #tpu.pipeline_mode<synchronous>, transform_indices = @transform_6, window_bounds = array<i64: 1, 128>}, {transform_indices = @transform_7, window_bounds = array<i64: 16, 128>}]} {
    %c0 = arith.constant 0 : index
    %c0_0 = arith.constant 0 : index
    %0 = vector.load %arg1[%c0, %c0_0] : memref<2304x256xbf16, #tpu.memory_space<vmem>>, vector<2304x256xbf16>
    %c0_1 = arith.constant 0 : index
    %c0_2 = arith.constant 0 : index
    %1 = vector.load %arg2[%c0_1, %c0_2] : memref<256x32xbf16, #tpu.memory_space<vmem>>, vector<256x32xbf16>
    %cst = arith.constant dense<0.000000e+00> : vector<2304x32xf32>
    %2 = tpu.matmul %0, %1, %cst {dimension_numbers = #tpu.dot_dimension_numbers<[1], [0], [0], [1], [0, 0, 1, 1], [], []>} : vector<2304x256xbf16>, vector<256x32xbf16>, vector<2304x32xf32> -> vector<2304x32xf32>
    %c0_3 = arith.constant 0 : index
    %c0_4 = arith.constant 0 : index
    %3 = vector.load %arg3[%c0_3, %c0_4] : memref<1x32xf32, #tpu.memory_space<vmem>>, vector<1x32xf32>
    %4 = vector.broadcast %3 : vector<1x32xf32> to vector<2304x32xf32>
    %5 = arith.addf %2, %4 : vector<2304x32xf32>
    %cst_5 = arith.constant 0.000000e+00 : f32
    %6 = vector.broadcast %cst_5 : f32 to vector<2304x32xf32>
    %7 = arith.maximumf %5, %6 : vector<2304x32xf32>
    %8 = arith.truncf %7 : vector<2304x32xf32> to vector<2304x32xbf16>
    %9 = vector.extract_strided_slice %8 {offsets = [0, 0], sizes = [144, 32], strides = [1, 1]} : vector<2304x32xbf16> to vector<144x32xbf16>
    %c0_6 = arith.constant 0 : index
    %c0_7 = arith.constant 0 : index
    %10 = vector.load %arg9[%c0_6, %c0_7] : memref<144x512xbf16, #tpu.memory_space<vmem>>, vector<144x32xbf16>
    tpu.vector_store %arg9[%c0_6, %c0_7], %9 {strides = array<i32>} : memref<144x512xbf16, #tpu.memory_space<vmem>>, vector<144x32xbf16>,
    %11 = vector.extract_strided_slice %8 {offsets = [144, 0], sizes = [144, 32], strides = [1, 1]} : vector<2304x32xbf16> to vector<144x32xbf16>
    %c0_8 = arith.constant 0 : index
    %c32 = arith.constant 32 : index
    %12 = vector.load %arg9[%c0_8, %c32] : memref<144x512xbf16, #tpu.memory_space<vmem>>, vector<144x32xbf16>
    tpu.vector_store %arg9[%c0_8, %c32], %11 {strides = array<i32>} : memref<144x512xbf16, #tpu.memory_space<vmem>>, vector<144x32xbf16>,
    %13 = vector.extract_strided_slice %8 {offsets = [288, 0], sizes = [144, 32], strides = [1, 1]} : vector<2304x32xbf16> to vector<144x32xbf16>
    %c0_9 = arith.constant 0 : index
    %c64 = arith.constant 64 : index
    %14 = vector.load %arg9[%c0_9, %c64] : memref<144x512xbf16, #tpu.memory_space<vmem>>, vector<144x32xbf16>
    tpu.vector_store %arg9[%c0_9, %c64], %13 {strides = array<i32>} : memref<144x512xbf16, #tpu.memory_space<vmem>>, vector<144x32xbf16>,
    %15 = vector.extract_strided_slice %8 {offsets = [432, 0], sizes = [144, 32], strides = [1, 1]} : vector<2304x32xbf16> to vector<144x32xbf16>
    %c0_10 = arith.constant 0 : index
    %c96 = arith.constant 96 : index
    %16 = vector.load %arg9[%c0_10, %c96] : memref<144x512xbf16, #tpu.memory_space<vmem>>, vector<144x32xbf16>
    tpu.vector_store %arg9[%c0_10, %c96], %15 {strides = array<i32>} : memref<144x512xbf16, #tpu.memory_space<vmem>>, vector<144x32xbf16>,
    %17 = vector.extract_strided_slice %8 {offsets = [576, 0], sizes = [144, 32], strides = [1, 1]} : vector<2304x32xbf16> to vector<144x32xbf16>
    %c0_11 = arith.constant 0 : index
    %c128 = arith.constant 128 : index
    %18 = vector.load %arg9[%c0_11, %c128] : memref<144x512xbf16, #tpu.memory_space<vmem>>, vector<144x32xbf16>
    tpu.vector_store %arg9[%c0_11, %c128], %17 {strides = array<i32>} : memref<144x512xbf16, #tpu.memory_space<vmem>>, vector<144x32xbf16>,
    %19 = vector.extract_strided_slice %8 {offsets = [720, 0], sizes = [144, 32], strides = [1, 1]} : vector<2304x32xbf16> to vector<144x32xbf16>
    %c0_12 = arith.constant 0 : index
    %c160 = arith.constant 160 : index
    %20 = vector.load %arg9[%c0_12, %c160] : memref<144x512xbf16, #tpu.memory_space<vmem>>, vector<144x32xbf16>
    tpu.vector_store %arg9[%c0_12, %c160], %19 {strides = array<i32>} : memref<144x512xbf16, #tpu.memory_space<vmem>>, vector<144x32xbf16>,
    %21 = vector.extract_strided_slice %8 {offsets = [864, 0], sizes = [144, 32], strides = [1, 1]} : vector<2304x32xbf16> to vector<144x32xbf16>
    %c0_13 = arith.constant 0 : index
    %c192 = arith.constant 192 : index
    %22 = vector.load %arg9[%c0_13, %c192] : memref<144x512xbf16, #tpu.memory_space<vmem>>, vector<144x32xbf16>
    tpu.vector_store %arg9[%c0_13, %c192], %21 {strides = array<i32>} : memref<144x512xbf16, #tpu.memory_space<vmem>>, vector<144x32xbf16>,
    %23 = vector.extract_strided_slice %8 {offsets = [1008, 0], sizes = [144, 32], strides = [1, 1]} : vector<2304x32xbf16> to vector<144x32xbf16>
    %c0_14 = arith.constant 0 : index
    %c224 = arith.constant 224 : index
    %24 = vector.load %arg9[%c0_14, %c224] : memref<144x512xbf16, #tpu.memory_space<vmem>>, vector<144x32xbf16>
    tpu.vector_store %arg9[%c0_14, %c224], %23 {strides = array<i32>} : memref<144x512xbf16, #tpu.memory_space<vmem>>, vector<144x32xbf16>,
    %25 = vector.extract_strided_slice %8 {offsets = [1152, 0], sizes = [144, 32], strides = [1, 1]} : vector<2304x32xbf16> to vector<144x32xbf16>
    %c0_15 = arith.constant 0 : index
    %c256 = arith.constant 256 : index
    %26 = vector.load %arg9[%c0_15, %c256] : memref<144x512xbf16, #tpu.memory_space<vmem>>, vector<144x32xbf16>
    tpu.vector_store %arg9[%c0_15, %c256], %25 {strides = array<i32>} : memref<144x512xbf16, #tpu.memory_space<vmem>>, vector<144x32xbf16>,
    %27 = vector.extract_strided_slice %8 {offsets = [1296, 0], sizes = [144, 32], strides = [1, 1]} : vector<2304x32xbf16> to vector<144x32xbf16>
    %c0_16 = arith.constant 0 : index
    %c288 = arith.constant 288 : index
    %28 = vector.load %arg9[%c0_16, %c288] : memref<144x512xbf16, #tpu.memory_space<vmem>>, vector<144x32xbf16>
    tpu.vector_store %arg9[%c0_16, %c288], %27 {strides = array<i32>} : memref<144x512xbf16, #tpu.memory_space<vmem>>, vector<144x32xbf16>,
    %29 = vector.extract_strided_slice %8 {offsets = [1440, 0], sizes = [144, 32], strides = [1, 1]} : vector<2304x32xbf16> to vector<144x32xbf16>
    %c0_17 = arith.constant 0 : index
    %c320 = arith.constant 320 : index
    %30 = vector.load %arg9[%c0_17, %c320] : memref<144x512xbf16, #tpu.memory_space<vmem>>, vector<144x32xbf16>
    tpu.vector_store %arg9[%c0_17, %c320], %29 {strides = array<i32>} : memref<144x512xbf16, #tpu.memory_space<vmem>>, vector<144x32xbf16>,
    %31 = vector.extract_strided_slice %8 {offsets = [1584, 0], sizes = [144, 32], strides = [1, 1]} : vector<2304x32xbf16> to vector<144x32xbf16>
    %c0_18 = arith.constant 0 : index
    %c352 = arith.constant 352 : index
    %32 = vector.load %arg9[%c0_18, %c352] : memref<144x512xbf16, #tpu.memory_space<vmem>>, vector<144x32xbf16>
    tpu.vector_store %arg9[%c0_18, %c352], %31 {strides = array<i32>} : memref<144x512xbf16, #tpu.memory_space<vmem>>, vector<144x32xbf16>,
    %33 = vector.extract_strided_slice %8 {offsets = [1728, 0], sizes = [144, 32], strides = [1, 1]} : vector<2304x32xbf16> to vector<144x32xbf16>
    %c0_19 = arith.constant 0 : index
    %c384 = arith.constant 384 : index
    %34 = vector.load %arg9[%c0_19, %c384] : memref<144x512xbf16, #tpu.memory_space<vmem>>, vector<144x32xbf16>
    tpu.vector_store %arg9[%c0_19, %c384], %33 {strides = array<i32>} : memref<144x512xbf16, #tpu.memory_space<vmem>>, vector<144x32xbf16>,
    %35 = vector.extract_strided_slice %8 {offsets = [1872, 0], sizes = [144, 32], strides = [1, 1]} : vector<2304x32xbf16> to vector<144x32xbf16>
    %c0_20 = arith.constant 0 : index
    %c416 = arith.constant 416 : index
    %36 = vector.load %arg9[%c0_20, %c416] : memref<144x512xbf16, #tpu.memory_space<vmem>>, vector<144x32xbf16>
    tpu.vector_store %arg9[%c0_20, %c416], %35 {strides = array<i32>} : memref<144x512xbf16, #tpu.memory_space<vmem>>, vector<144x32xbf16>,
    %37 = vector.extract_strided_slice %8 {offsets = [2016, 0], sizes = [144, 32], strides = [1, 1]} : vector<2304x32xbf16> to vector<144x32xbf16>
    %c0_21 = arith.constant 0 : index
    %c448 = arith.constant 448 : index
    %38 = vector.load %arg9[%c0_21, %c448] : memref<144x512xbf16, #tpu.memory_space<vmem>>, vector<144x32xbf16>
    tpu.vector_store %arg9[%c0_21, %c448], %37 {strides = array<i32>} : memref<144x512xbf16, #tpu.memory_space<vmem>>, vector<144x32xbf16>,
    %39 = vector.extract_strided_slice %8 {offsets = [2160, 0], sizes = [144, 32], strides = [1, 1]} : vector<2304x32xbf16> to vector<144x32xbf16>
    %c0_22 = arith.constant 0 : index
    %c480 = arith.constant 480 : index
    %40 = vector.load %arg9[%c0_22, %c480] : memref<144x512xbf16, #tpu.memory_space<vmem>>, vector<144x32xbf16>
    tpu.vector_store %arg9[%c0_22, %c480], %39 {strides = array<i32>} : memref<144x512xbf16, #tpu.memory_space<vmem>>, vector<144x32xbf16>,
    %c0_23 = arith.constant 0 : index
    %c0_24 = arith.constant 0 : index
    %41 = vector.load %arg9[%c0_23, %c0_24] : memref<144x512xbf16, #tpu.memory_space<vmem>>, vector<144x512xbf16>
    %c0_25 = arith.constant 0 : index
    %c0_26 = arith.constant 0 : index
    %42 = vector.load %arg4[%c0_25, %c0_26] : memref<512x64xbf16, #tpu.memory_space<vmem>>, vector<512x64xbf16>
    %cst_27 = arith.constant dense<0.000000e+00> : vector<144x64xf32>
    %43 = tpu.matmul %41, %42, %cst_27 {dimension_numbers = #tpu.dot_dimension_numbers<[1], [0], [0], [1], [0, 0, 1, 1], [], []>} : vector<144x512xbf16>, vector<512x64xbf16>, vector<144x64xf32> -> vector<144x64xf32>
    %c0_28 = arith.constant 0 : index
    %c0_29 = arith.constant 0 : index
    %44 = vector.load %arg5[%c0_28, %c0_29] : memref<1x64xf32, #tpu.memory_space<vmem>>, vector<1x64xf32>
    %45 = vector.broadcast %44 : vector<1x64xf32> to vector<144x64xf32>
    %46 = arith.addf %43, %45 : vector<144x64xf32>
    %cst_30 = arith.constant 0.000000e+00 : f32
    %47 = vector.broadcast %cst_30 : f32 to vector<144x64xf32>
    %48 = arith.maximumf %46, %47 : vector<144x64xf32>
    %49 = arith.truncf %48 : vector<144x64xf32> to vector<144x64xbf16>
    %50 = vector.extract_strided_slice %49 {offsets = [0, 0], sizes = [16, 64], strides = [1, 1]} : vector<144x64xbf16> to vector<16x64xbf16>
    %c0_31 = arith.constant 0 : index
    %c0_32 = arith.constant 0 : index
    %51 = vector.load %arg10[%c0_31, %c0_32] : memref<16x576xbf16, #tpu.memory_space<vmem>>, vector<16x64xbf16>
    tpu.vector_store %arg10[%c0_31, %c0_32], %50 {strides = array<i32>} : memref<16x576xbf16, #tpu.memory_space<vmem>>, vector<16x64xbf16>,
    %52 = vector.extract_strided_slice %49 {offsets = [16, 0], sizes = [16, 64], strides = [1, 1]} : vector<144x64xbf16> to vector<16x64xbf16>
    %c0_33 = arith.constant 0 : index
    %c64_34 = arith.constant 64 : index
    %53 = vector.load %arg10[%c0_33, %c64_34] : memref<16x576xbf16, #tpu.memory_space<vmem>>, vector<16x64xbf16>
    tpu.vector_store %arg10[%c0_33, %c64_34], %52 {strides = array<i32>} : memref<16x576xbf16, #tpu.memory_space<vmem>>, vector<16x64xbf16>,
    %54 = vector.extract_strided_slice %49 {offsets = [32, 0], sizes = [16, 64], strides = [1, 1]} : vector<144x64xbf16> to vector<16x64xbf16>
    %c0_35 = arith.constant 0 : index
    %c128_36 = arith.constant 128 : index
    %55 = vector.load %arg10[%c0_35, %c128_36] : memref<16x576xbf16, #tpu.memory_space<vmem>>, vector<16x64xbf16>
    tpu.vector_store %arg10[%c0_35, %c128_36], %54 {strides = array<i32>} : memref<16x576xbf16, #tpu.memory_space<vmem>>, vector<16x64xbf16>,
    %56 = vector.extract_strided_slice %49 {offsets = [48, 0], sizes = [16, 64], strides = [1, 1]} : vector<144x64xbf16> to vector<16x64xbf16>
    %c0_37 = arith.constant 0 : index
    %c192_38 = arith.constant 192 : index
    %57 = vector.load %arg10[%c0_37, %c192_38] : memref<16x576xbf16, #tpu.memory_space<vmem>>, vector<16x64xbf16>
    tpu.vector_store %arg10[%c0_37, %c192_38], %56 {strides = array<i32>} : memref<16x576xbf16, #tpu.memory_space<vmem>>, vector<16x64xbf16>,
    %58 = vector.extract_strided_slice %49 {offsets = [64, 0], sizes = [16, 64], strides = [1, 1]} : vector<144x64xbf16> to vector<16x64xbf16>
    %c0_39 = arith.constant 0 : index
    %c256_40 = arith.constant 256 : index
    %59 = vector.load %arg10[%c0_39, %c256_40] : memref<16x576xbf16, #tpu.memory_space<vmem>>, vector<16x64xbf16>
    tpu.vector_store %arg10[%c0_39, %c256_40], %58 {strides = array<i32>} : memref<16x576xbf16, #tpu.memory_space<vmem>>, vector<16x64xbf16>,
    %60 = vector.extract_strided_slice %49 {offsets = [80, 0], sizes = [16, 64], strides = [1, 1]} : vector<144x64xbf16> to vector<16x64xbf16>
    %c0_41 = arith.constant 0 : index
    %c320_42 = arith.constant 320 : index
    %61 = vector.load %arg10[%c0_41, %c320_42] : memref<16x576xbf16, #tpu.memory_space<vmem>>, vector<16x64xbf16>
    tpu.vector_store %arg10[%c0_41, %c320_42], %60 {strides = array<i32>} : memref<16x576xbf16, #tpu.memory_space<vmem>>, vector<16x64xbf16>,
    %62 = vector.extract_strided_slice %49 {offsets = [96, 0], sizes = [16, 64], strides = [1, 1]} : vector<144x64xbf16> to vector<16x64xbf16>
    %c0_43 = arith.constant 0 : index
    %c384_44 = arith.constant 384 : index
    %63 = vector.load %arg10[%c0_43, %c384_44] : memref<16x576xbf16, #tpu.memory_space<vmem>>, vector<16x64xbf16>
    tpu.vector_store %arg10[%c0_43, %c384_44], %62 {strides = array<i32>} : memref<16x576xbf16, #tpu.memory_space<vmem>>, vector<16x64xbf16>,
    %64 = vector.extract_strided_slice %49 {offsets = [112, 0], sizes = [16, 64], strides = [1, 1]} : vector<144x64xbf16> to vector<16x64xbf16>
    %c0_45 = arith.constant 0 : index
    %c448_46 = arith.constant 448 : index
    %65 = vector.load %arg10[%c0_45, %c448_46] : memref<16x576xbf16, #tpu.memory_space<vmem>>, vector<16x64xbf16>
    tpu.vector_store %arg10[%c0_45, %c448_46], %64 {strides = array<i32>} : memref<16x576xbf16, #tpu.memory_space<vmem>>, vector<16x64xbf16>,
    %66 = vector.extract_strided_slice %49 {offsets = [128, 0], sizes = [16, 64], strides = [1, 1]} : vector<144x64xbf16> to vector<16x64xbf16>
    %c0_47 = arith.constant 0 : index
    %c512 = arith.constant 512 : index
    %67 = vector.load %arg10[%c0_47, %c512] : memref<16x576xbf16, #tpu.memory_space<vmem>>, vector<16x64xbf16>
    tpu.vector_store %arg10[%c0_47, %c512], %66 {strides = array<i32>} : memref<16x576xbf16, #tpu.memory_space<vmem>>, vector<16x64xbf16>,
    %c0_48 = arith.constant 0 : index
    %c0_49 = arith.constant 0 : index
    %68 = vector.load %arg10[%c0_48, %c0_49] : memref<16x576xbf16, #tpu.memory_space<vmem>>, vector<16x576xbf16>
    %c0_50 = arith.constant 0 : index
    %c0_51 = arith.constant 0 : index
    %69 = vector.load %arg6[%c0_50, %c0_51] : memref<576x128xbf16, #tpu.memory_space<vmem>>, vector<576x128xbf16>
    %cst_52 = arith.constant dense<0.000000e+00> : vector<16x128xf32>
    %70 = tpu.matmul %68, %69, %cst_52 {dimension_numbers = #tpu.dot_dimension_numbers<[1], [0], [0], [1], [0, 0, 1, 1], [], []>} : vector<16x576xbf16>, vector<576x128xbf16>, vector<16x128xf32> -> vector<16x128xf32>
    %c0_53 = arith.constant 0 : index
    %c0_54 = arith.constant 0 : index
    %71 = vector.load %arg7[%c0_53, %c0_54] : memref<1x128xf32, #tpu.memory_space<vmem>>, vector<1x128xf32>
    %72 = vector.broadcast %71 : vector<1x128xf32> to vector<16x128xf32>
    %73 = arith.addf %70, %72 : vector<16x128xf32>
    %cst_55 = arith.constant 0.000000e+00 : f32
    %74 = vector.broadcast %cst_55 : f32 to vector<16x128xf32>
    %75 = arith.maximumf %73, %74 : vector<16x128xf32>
    %c0_56 = arith.constant 0 : index
    %c0_57 = arith.constant 0 : index
    %76 = vector.load %arg8[%c0_56, %c0_57] : memref<16x128xf32, #tpu.memory_space<vmem>>, vector<16x128xf32>
    tpu.vector_store %arg8[%c0_56, %c0_57], %75 {strides = array<i32>} : memref<16x128xf32, #tpu.memory_space<vmem>>, vector<16x128xf32>,
    return
  }
  func.func @transform_0(%arg0: i32) -> (i32, i32) {
    %c0_i32 = arith.constant 0 : i32
    %c0_i32_0 = arith.constant 0 : i32
    return %arg0, %c0_i32 : i32, i32
  }
  func.func @transform_1(%arg0: i32) -> (i32, i32) {
    %c0_i32 = arith.constant 0 : i32
    %c0_i32_0 = arith.constant 0 : i32
    %c0_i32_1 = arith.constant 0 : i32
    return %c0_i32, %c0_i32_0 : i32, i32
  }
  func.func @transform_2(%arg0: i32) -> (i32, i32) {
    %c0_i32 = arith.constant 0 : i32
    %c0_i32_0 = arith.constant 0 : i32
    %c0_i32_1 = arith.constant 0 : i32
    return %c0_i32, %c0_i32_0 : i32, i32
  }
  func.func @transform_3(%arg0: i32) -> (i32, i32) {
    %c0_i32 = arith.constant 0 : i32
    %c0_i32_0 = arith.constant 0 : i32
    %c0_i32_1 = arith.constant 0 : i32
    return %c0_i32, %c0_i32_0 : i32, i32
  }
  func.func @transform_4(%arg0: i32) -> (i32, i32) {
    %c0_i32 = arith.constant 0 : i32
    %c0_i32_0 = arith.constant 0 : i32
    %c0_i32_1 = arith.constant 0 : i32
    return %c0_i32, %c0_i32_0 : i32, i32
  }
  func.func @transform_5(%arg0: i32) -> (i32, i32) {
    %c0_i32 = arith.constant 0 : i32
    %c0_i32_0 = arith.constant 0 : i32
    %c0_i32_1 = arith.constant 0 : i32
    return %c0_i32, %c0_i32_0 : i32, i32
  }
  func.func @transform_6(%arg0: i32) -> (i32, i32) {
    %c0_i32 = arith.constant 0 : i32
    %c0_i32_0 = arith.constant 0 : i32
    %c0_i32_1 = arith.constant 0 : i32
    return %c0_i32, %c0_i32_0 : i32, i32
  }
  func.func @transform_7(%arg0: i32) -> (i32, i32) {
    %c0_i32 = arith.constant 0 : i32
    %c0_i32_0 = arith.constant 0 : i32
    return %arg0, %c0_i32 : i32, i32
  }
}

</mosaic_0001>

<llo_original>
// kernel: forward.1
$region0: #{forward.1}
  #allocation0 [shape = 'u32[]', space=smem, size = 0x4, offset = 0x4, fixed_abs, tag = 'smem constant byte address 0x4 - core index']
  #allocation1 [shape = 'u32[144,128]{1,0:T(1,128)}', space=vmem, size = 0x12000, scoped, tag = 'internal scratch']
  #allocation2 [shape = 'bf16[144,512]{1,0:T(16,128)(2,1)}', space=vmem, size = 0x24000, scoped, tag = 'scratch operand']
  #allocation3 [shape = 'bf16[16,576]{1,0:T(16,128)(2,1)}', space=vmem, size = 0x5000, scoped, tag = 'scratch operand']
  %s0 = inlined_call_operand.vmem [shape: bf16[4608,256], index: 0, kind: input, shape index: {}]
  %s1 = inlined_call_operand.vmem [shape: bf16[256,32], index: 1, kind: input, shape index: {}]
  %s2 = inlined_call_operand.vmem [shape: f32[1,32], index: 2, kind: input, shape index: {}]
  %s3 = inlined_call_operand.vmem [shape: bf16[512,64], index: 3, kind: input, shape index: {}]
  %s4 = inlined_call_operand.vmem [shape: f32[1,64], index: 4, kind: input, shape index: {}]
  %s5 = inlined_call_operand.vmem [shape: bf16[576,128], index: 5, kind: input, shape index: {}]
  %s6 = inlined_call_operand.vmem [shape: f32[1,128], index: 6, kind: input, shape index: {}]
  %s7 = inlined_call_operand.hbm [shape: f32[32,128], index: 7, kind: output, shape index: {}]
  %s8 = sld [smem:[#allocation0]]
  $region61: #{forward.1} parent=0
    _
  %s10 = ssub.s32 1, %s8
  %s11 = scalar_select 0, %s10, %s8
  $region1: #{forward.1} parent=0
    #allocation4 [shape = 'u8[16384]{0}', space=vmem, size = 0x4000, scoped, tag = 'output window, operand 0']
    #allocation5 [shape = 's32[2]{0}', space=sflag, size = 0x8, scoped, tag = 'scoped memory for forward.1']
    %12 = vsyncpa [#allocation5], 0
    %s13 = scalar_lea.sflag [#allocation5], 1
    %14 = vsyncpa %s13, 0
    loop: start=0, step=1, limit=4
    $region2: #{forward.1} parent=1 // loop_pre_header
      _
    $region3: #{forward.1} parent=1 // loop_header
      %s16 = sphi 0, %s20
      %p17 = scmp.ge.s32.totalorder %s16, 4
      %s26 = sphi 0, %s28
      %s29 = sphi 0, %s26
      %s30 = sphi 0, %s29
      %s46 = sphi 0, %s30
      %s50 = sphi 0, %s50
      %s52 = sphi 0, %s50
      %s53 = sphi 0, %s52
      %s67 = sphi 0, %s53
      %s71 = sphi 0, %s71
      %s73 = sphi 0, %s71
      %s74 = sphi 0, %s73
      %s88 = sphi 0, %s74
      %s92 = sphi 0, %s92
      %s94 = sphi 0, %s92
      %s95 = sphi 0, %s94
      %s109 = sphi 0, %s95
      %s113 = sphi 0, %s113
      %s115 = sphi 0, %s113
      %s116 = sphi 0, %s115
      %s130 = sphi 0, %s116
      %s134 = sphi 0, %s134
      %s136 = sphi 0, %s134
      %s137 = sphi 0, %s136
      %s151 = sphi 0, %s137
      %s155 = sphi 0, %s155
      %s157 = sphi 0, %s155
      %s158 = sphi 0, %s157
      %s172 = sphi 0, %s158
      %s178 = sphi 0, %s180
      %s181 = sphi 0, %s178
      %s182 = sphi 0, %s181
      %s198 = sphi 0, %s182
    $region4: #{forward.1} parent=1 // loop_header_branch
      %19 = sbr.rel (%p17) target = $region8
    $region5: #{forward.1} parent=1 // loop_body
      %s21 = ssub.s32 %s16, 1
      %s22 = ssub.s32 %s16, 2
      %s23 = sadd.s32 %s16, 1
      %s24 = ssub.s32 %s16, %s23
      %p25 = scmp.eq.s32.totalorder %s24, 0
      %s27 = sadd.s32 %s26, 1
      %s28 = scalar_select %p25, %s26, %s27
      %p31 = pneg %p25
      %p32 = scmp.eq.s32.totalorder %s16, 1
      %p33 = por %p31, %p32
      %p34 = scmp.ne.s32.totalorder %s26, %s29
      %p35 = scmp.eq.s32.totalorder %s16, 0
      %p36 = por %p34, %p35
      %p37 = scmp.ne.s32.totalorder %s26, %s29
      %p38 = scmp.eq.s32.totalorder %s21, 1
      %p39 = por %p37, %p38
      %p40 = scmp.ne.s32.totalorder %s29, %s30
      %p41 = scmp.eq.s32.totalorder %s21, 0
      %p42 = por %p40, %p41
      %p43 = scmp.ne.s32.totalorder %s29, %s30
      %p44 = scmp.eq.s32.totalorder %s22, 1
      %p45 = por %p43, %p44
      %p47 = scmp.ne.s32.totalorder %s30, %s46
      %p48 = scmp.eq.s32.totalorder %s22, 0
      %p49 = por %p47, %p48
      %s51 = sadd.s32 %s50, 1
      %p54 = scmp.eq.s32.totalorder %s16, 1
      %p55 = scmp.ne.s32.totalorder %s50, %s52
      %p56 = scmp.eq.s32.totalorder %s16, 0
      %p57 = por %p55, %p56
      %p58 = scmp.ne.s32.totalorder %s50, %s52
      %p59 = scmp.eq.s32.totalorder %s21, 1
      %p60 = por %p58, %p59
      %p61 = scmp.ne.s32.totalorder %s52, %s53
      %p62 = scmp.eq.s32.totalorder %s21, 0
      %p63 = por %p61, %p62
      %p64 = scmp.ne.s32.totalorder %s52, %s53
      %p65 = scmp.eq.s32.totalorder %s22, 1
      %p66 = por %p64, %p65
      %p68 = scmp.ne.s32.totalorder %s53, %s67
      %p69 = scmp.eq.s32.totalorder %s22, 0
      %p70 = por %p68, %p69
      %s72 = sadd.s32 %s71, 1
      %p75 = scmp.eq.s32.totalorder %s16, 1
      %p76 = scmp.ne.s32.totalorder %s71, %s73
      %p77 = scmp.eq.s32.totalorder %s16, 0
      %p78 = por %p76, %p77
      %p79 = scmp.ne.s32.totalorder %s71, %s73
      %p80 = scmp.eq.s32.totalorder %s21, 1
      %p81 = por %p79, %p80
      %p82 = scmp.ne.s32.totalorder %s73, %s74
      %p83 = scmp.eq.s32.totalorder %s21, 0
      %p84 = por %p82, %p83
      %p85 = scmp.ne.s32.totalorder %s73, %s74
      %p86 = scmp.eq.s32.totalorder %s22, 1
      %p87 = por %p85, %p86
      %p89 = scmp.ne.s32.totalorder %s74, %s88
      %p90 = scmp.eq.s32.totalorder %s22, 0
      %p91 = por %p89, %p90
      %s93 = sadd.s32 %s92, 1
      %p96 = scmp.eq.s32.totalorder %s16, 1
      %p97 = scmp.ne.s32.totalorder %s92, %s94
      %p98 = scmp.eq.s32.totalorder %s16, 0
      %p99 = por %p97, %p98
      %p100 = scmp.ne.s32.totalorder %s92, %s94
      %p101 = scmp.eq.s32.totalorder %s21, 1
      %p102 = por %p100, %p101
      %p103 = scmp.ne.s32.totalorder %s94, %s95
      %p104 = scmp.eq.s32.totalorder %s21, 0
      %p105 = por %p103, %p104
      %p106 = scmp.ne.s32.totalorder %s94, %s95
      %p107 = scmp.eq.s32.totalorder %s22, 1
      %p108 = por %p106, %p107
      %p110 = scmp.ne.s32.totalorder %s95, %s109
      %p111 = scmp.eq.s32.totalorder %s22, 0
      %p112 = por %p110, %p111
      %s114 = sadd.s32 %s113, 1
      %p117 = scmp.eq.s32.totalorder %s16, 1
      %p118 = scmp.ne.s32.totalorder %s113, %s115
      %p119 = scmp.eq.s32.totalorder %s16, 0
      %p120 = por %p118, %p119
      %p121 = scmp.ne.s32.totalorder %s113, %s115
      %p122 = scmp.eq.s32.totalorder %s21, 1
      %p123 = por %p121, %p122
      %p124 = scmp.ne.s32.totalorder %s115, %s116
      %p125 = scmp.eq.s32.totalorder %s21, 0
      %p126 = por %p124, %p125
      %p127 = scmp.ne.s32.totalorder %s115, %s116
      %p128 = scmp.eq.s32.totalorder %s22, 1
      %p129 = por %p127, %p128
      %p131 = scmp.ne.s32.totalorder %s116, %s130
      %p132 = scmp.eq.s32.totalorder %s22, 0
      %p133 = por %p131, %p132
      %s135 = sadd.s32 %s134, 1
      %p138 = scmp.eq.s32.totalorder %s16, 1
      %p139 = scmp.ne.s32.totalorder %s134, %s136
      %p140 = scmp.eq.s32.totalorder %s16, 0
      %p141 = por %p139, %p140
      %p142 = scmp.ne.s32.totalorder %s134, %s136
      %p143 = scmp.eq.s32.totalorder %s21, 1
      %p144 = por %p142, %p143
      %p145 = scmp.ne.s32.totalorder %s136, %s137
      %p146 = scmp.eq.s32.totalorder %s21, 0
      %p147 = por %p145, %p146
      %p148 = scmp.ne.s32.totalorder %s136, %s137
      %p149 = scmp.eq.s32.totalorder %s22, 1
      %p150 = por %p148, %p149
      %p152 = scmp.ne.s32.totalorder %s137, %s151
      %p153 = scmp.eq.s32.totalorder %s22, 0
      %p154 = por %p152, %p153
      %s156 = sadd.s32 %s155, 1
      %p159 = scmp.eq.s32.totalorder %s16, 1
      %p160 = scmp.ne.s32.totalorder %s155, %s157
      %p161 = scmp.eq.s32.totalorder %s16, 0
      %p162 = por %p160, %p161
      %p163 = scmp.ne.s32.totalorder %s155, %s157
      %p164 = scmp.eq.s32.totalorder %s21, 1
      %p165 = por %p163, %p164
      %p166 = scmp.ne.s32.totalorder %s157, %s158
      %p167 = scmp.eq.s32.totalorder %s21, 0
      %p168 = por %p166, %p167
      %p169 = scmp.ne.s32.totalorder %s157, %s158
      %p170 = scmp.eq.s32.totalorder %s22, 1
      %p171 = por %p169, %p170
      %p173 = scmp.ne.s32.totalorder %s158, %s172
      %p174 = scmp.eq.s32.totalorder %s22, 0
      %p175 = por %p173, %p174
      %s176 = ssub.s32 %s16, %s23
      %p177 = scmp.eq.s32.totalorder %s176, 0
      %s179 = sadd.s32 %s178, 1
      %s180 = scalar_select %p177, %s178, %s179
      %p183 = pneg %p177
      %p184 = scmp.eq.s32.totalorder %s16, 1
      %p185 = por %p183, %p184
      %p186 = scmp.ne.s32.totalorder %s178, %s181
      %p187 = scmp.eq.s32.totalorder %s16, 0
      %p188 = por %p186, %p187
      %p189 = scmp.ne.s32.totalorder %s178, %s181
      %p190 = scmp.eq.s32.totalorder %s21, 1
      %p191 = por %p189, %p190
      %p192 = scmp.ne.s32.totalorder %s181, %s182
      %p193 = scmp.eq.s32.totalorder %s21, 0
      %p194 = por %p192, %p193
      %p195 = scmp.ne.s32.totalorder %s181, %s182
      %p196 = scmp.eq.s32.totalorder %s22, 1
      %p197 = por %p195, %p196
      %p199 = scmp.ne.s32.totalorder %s182, %s198
      %p200 = scmp.eq.s32.totalorder %s22, 0
      %p201 = por %p199, %p200
      %p202 = scmp.le.s32.totalorder 1, %s16
      %p203 = scmp.lt.s32.totalorder %s16, 3
      %p204 = pnand %p202, %p203
      %p205 = pneg %p204
      // Predicated region
      $region9: #{forward.1} parent=5 // pred_check
        _
      $region10: #{forward.1} parent=5 // pred_check_branch
        %207 = sbr.rel (%p204) target = $region12
      $region11: #{forward.1} parent=5 // pred_region
        %s208 = ssub.s32 %s16, 1
        // Predicated region
        $region13: #{forward.1} parent=11 // pred_check
          %p209 = pneg %p63
        $region14: #{forward.1} parent=11 // pred_check_branch
          %211 = sbr.rel (%p209) target = $region16
        $region15: #{forward.1} parent=11 // pred_region
          _
        $region16: #{forward.1} parent=11 // pred_fallthru
          _
        // Predicated region
        $region17: #{forward.1} parent=11 // pred_check
          %p212 = pneg %p84
        $region18: #{forward.1} parent=11 // pred_check_branch
          %214 = sbr.rel (%p212) target = $region20
        $region19: #{forward.1} parent=11 // pred_region
          _
        $region20: #{forward.1} parent=11 // pred_fallthru
          _
        // Predicated region
        $region21: #{forward.1} parent=11 // pred_check
          %p215 = pneg %p105
        $region22: #{forward.1} parent=11 // pred_check_branch
          %217 = sbr.rel (%p215) target = $region24
        $region23: #{forward.1} parent=11 // pred_region
          _
        $region24: #{forward.1} parent=11 // pred_fallthru
          _
        // Predicated region
        $region25: #{forward.1} parent=11 // pred_check
          %p218 = pneg %p126
        $region26: #{forward.1} parent=11 // pred_check_branch
          %220 = sbr.rel (%p218) target = $region28
        $region27: #{forward.1} parent=11 // pred_region
          _
        $region28: #{forward.1} parent=11 // pred_fallthru
          _
        // Predicated region
        $region29: #{forward.1} parent=11 // pred_check
          %p221 = pneg %p147
        $region30: #{forward.1} parent=11 // pred_check_branch
          %223 = sbr.rel (%p221) target = $region32
        $region31: #{forward.1} parent=11 // pred_region
          _
        $region32: #{forward.1} parent=11 // pred_fallthru
          _
        // Predicated region
        $region33: #{forward.1} parent=11 // pred_check
          %p224 = pneg %p168
        $region34: #{forward.1} parent=11 // pred_check_branch
          %226 = sbr.rel (%p224) target = $region36
        $region35: #{forward.1} parent=11 // pred_region
          _
        $region36: #{forward.1} parent=11 // pred_fallthru
          _
      $region12: #{forward.1} parent=5 // pred_fallthru
        _
      %p227 = scmp.lt.s32.totalorder %s16, 2
      // Predicated region
      $region37: #{forward.1} parent=5 // pred_check
        %p228 = pneg %p227
      $region38: #{forward.1} parent=5 // pred_check_branch
        %230 = sbr.rel (%p228) target = $region40
      $region39: #{forward.1} parent=5 // pred_region
        // Predicated region
        $region41: #{forward.1} parent=39 // pred_check
          %p231 = pneg %p36
        $region42: #{forward.1} parent=39 // pred_check_branch
          %233 = sbr.rel (%p231) target = $region44
        $region43: #{forward.1} parent=39 // pred_region
          %s234 = smul.u32 288, %s16
          %p235 = scmp.lt.s32.totalorder %s234, 575
          %s236 = scalar_select %p235, %s234, 575
          %s237 = smul.addr %s236, 2
          %s238 = smul.addr %s237, 4
          %s239 = scalar_lea.vmem %s0, %s238
          %s240 = smul.u32 288, %s16
        $region44: #{forward.1} parent=39 // pred_fallthru
          _
      $region40: #{forward.1} parent=5 // pred_fallthru
        _
      %p241 = scmp.le.s32.totalorder 1, %s16
      %p242 = scmp.lt.s32.totalorder %s16, 3
      %p243 = pnand %p241, %p242
      %p244 = pneg %p243
      // Predicated region
      $region45: #{forward.1} parent=5 // pred_check
        _
      $region46: #{forward.1} parent=5 // pred_check_branch
        %246 = sbr.rel (%p243) target = $region48
      $region47: #{forward.1} parent=5 // pred_region
        %s247 = ssub.s32 %s16, 1
        %s248 = smul.u32 288, %s21
        %p249 = scmp.lt.s32.totalorder %s248, 575
        %s250 = scalar_select %p249, %s248, 575
        %s251 = smul.addr %s250, 2
        %s252 = smul.addr %s251, 4
        %s253 = scalar_lea.vmem %s0, %s252
        %p254 = pneg %p42
        %p255 = pneg %p39
        %p256 = pneg %p63
        %p257 = pneg %p60
        %p258 = pneg %p84
        %p259 = pneg %p81
        %p260 = pneg %p105
        %p261 = pneg %p102
        %p262 = pneg %p126
        %p263 = pneg %p123
        %p264 = pneg %p147
        %p265 = pneg %p144
        %p266 = pneg %p168
        %p267 = pneg %p165
        %p268 = pneg %p194
        %p269 = pneg %p191
        %s270 = sand.u32 %s181, 1
        %s271 = scalar_lea.sflag [#allocation5], %s270
        %s272 = sand.u32 %s181, 1
        %s273 = smul.addr %s272, 16
        %s274 = scalar_lea.vmem [#allocation4], %s273
        %s275 = smul.u32 288, %s21
        %p276 = scmp.lt.s32.totalorder %s275, 575
        %s277 = scalar_select %p276, %s275, 575
        %s278 = smul.addr %s277, 2
        %s279 = smul.addr %s278, 4
        %s280 = scalar_lea.vmem %s0, %s279
        %s281 = smul.u32 288, %s21
        %s282 = smul.u32 2, %s21
        %v284 = vld [vmem:[%s280] sm:$0xff]
        %v285 = vld [vmem:[%s280 + $0x8] sm:$0xff]
        %v286 = vld [vmem:[%s280 + $0x10] sm:$0xff]
        %v287 = vld [vmem:[%s280 + $0x18] sm:$0xff]
        %v288 = vld [vmem:[%s280 + $0x20] sm:$0xff]
        %v289 = vld [vmem:[%s280 + $0x28] sm:$0xff]
        %v290 = vld [vmem:[%s280 + $0x30] sm:$0xff]
        %v291 = vld [vmem:[%s280 + $0x38] sm:$0xff]
        %v292 = vld [vmem:[%s280 + $0x40] sm:$0xff]
        %v293 = vld [vmem:[%s280 + $0x48] sm:$0xff]
        %v294 = vld [vmem:[%s280 + $0x50] sm:$0xff]
        %v295 = vld [vmem:[%s280 + $0x58] sm:$0xff]
        %v296 = vld [vmem:[%s280 + $0x60] sm:$0xff]
        %v297 = vld [vmem:[%s280 + $0x68] sm:$0xff]
        %v298 = vld [vmem:[%s280 + $0x70] sm:$0xff]
        %v299 = vld [vmem:[%s280 + $0x78] sm:$0xff]
        %v300 = vld [vmem:[%s280 + $0x80] sm:$0xff]
        %v301 = vld [vmem:[%s280 + $0x88] sm:$0xff]
        %v302 = vld [vmem:[%s280 + $0x90] sm:$0xff]
        %v303 = vld [vmem:[%s280 + $0x98] sm:$0xff]
        %v304 = vld [vmem:[%s280 + $0xa0] sm:$0xff]
        %v305 = vld [vmem:[%s280 + $0xa8] sm:$0xff]
        %v306 = vld [vmem:[%s280 + $0xb0] sm:$0xff]
        %v307 = vld [vmem:[%s280 + $0xb8] sm:$0xff]
        %v308 = vld [vmem:[%s280 + $0xc0] sm:$0xff]
        %v309 = vld [vmem:[%s280 + $0xc8] sm:$0xff]
        %v310 = vld [vmem:[%s280 + $0xd0] sm:$0xff]
        %v311 = vld [vmem:[%s280 + $0xd8] sm:$0xff]
        %v312 = vld [vmem:[%s280 + $0xe0] sm:$0xff]
        %v313 = vld [vmem:[%s280 + $0xe8] sm:$0xff]
        %v314 = vld [vmem:[%s280 + $0xf0] sm:$0xff]
        %v315 = vld [vmem:[%s280 + $0xf8] sm:$0xff]
        %v316 = vld [vmem:[%s280 + $0x100] sm:$0xff]
        %v317 = vld [vmem:[%s280 + $0x108] sm:$0xff]
        %v318 = vld [vmem:[%s280 + $0x110] sm:$0xff]
        %v319 = vld [vmem:[%s280 + $0x118] sm:$0xff]
        %v320 = vld [vmem:[%s280 + $0x120] sm:$0xff]
        %v321 = vld [vmem:[%s280 + $0x128] sm:$0xff]
        %v322 = vld [vmem:[%s280 + $0x130] sm:$0xff]
        %v323 = vld [vmem:[%s280 + $0x138] sm:$0xff]
        %v324 = vld [vmem:[%s280 + $0x140] sm:$0xff]
        %v325 = vld [vmem:[%s280 + $0x148] sm:$0xff]
        %v326 = vld [vmem:[%s280 + $0x150] sm:$0xff]
        %v327 = vld [vmem:[%s280 + $0x158] sm:$0xff]
        %v328 = vld [vmem:[%s280 + $0x160] sm:$0xff]
        %v329 = vld [vmem:[%s280 + $0x168] sm:$0xff]
        %v330 = vld [vmem:[%s280 + $0x170] sm:$0xff]
        %v331 = vld [vmem:[%s280 + $0x178] sm:$0xff]
        %v332 = vld [vmem:[%s280 + $0x180] sm:$0xff]
        %v333 = vld [vmem:[%s280 + $0x188] sm:$0xff]
        %v334 = vld [vmem:[%s280 + $0x190] sm:$0xff]
        %v335 = vld [vmem:[%s280 + $0x198] sm:$0xff]
        %v336 = vld [vmem:[%s280 + $0x1a0] sm:$0xff]
        %v337 = vld [vmem:[%s280 + $0x1a8] sm:$0xff]
        %v338 = vld [vmem:[%s280 + $0x1b0] sm:$0xff]
        %v339 = vld [vmem:[%s280 + $0x1b8] sm:$0xff]
        %v340 = vld [vmem:[%s280 + $0x1c0] sm:$0xff]
        %v341 = vld [vmem:[%s280 + $0x1c8] sm:$0xff]
        %v342 = vld [vmem:[%s280 + $0x1d0] sm:$0xff]
        %v343 = vld [vmem:[%s280 + $0x1d8] sm:$0xff]
        %v344 = vld [vmem:[%s280 + $0x1e0] sm:$0xff]
        %v345 = vld [vmem:[%s280 + $0x1e8] sm:$0xff]
        %v346 = vld [vmem:[%s280 + $0x1f0] sm:$0xff]
        %v347 = vld [vmem:[%s280 + $0x1f8] sm:$0xff]
        %v348 = vld [vmem:[%s280 + $0x200] sm:$0xff]
        %v349 = vld [vmem:[%s280 + $0x208] sm:$0xff]
        %v350 = vld [vmem:[%s280 + $0x210] sm:$0xff]
        %v351 = vld [vmem:[%s280 + $0x218] sm:$0xff]
        %v352 = vld [vmem:[%s280 + $0x220] sm:$0xff]
        %v353 = vld [vmem:[%s280 + $0x228] sm:$0xff]
        %v354 = vld [vmem:[%s280 + $0x230] sm:$0xff]
        %v355 = vld [vmem:[%s280 + $0x238] sm:$0xff]
        %v356 = vld [vmem:[%s280 + $0x240] sm:$0xff]
        %v357 = vld [vmem:[%s280 + $0x248] sm:$0xff]
        %v358 = vld [vmem:[%s280 + $0x250] sm:$0xff]
        %v359 = vld [vmem:[%s280 + $0x258] sm:$0xff]
        %v360 = vld [vmem:[%s280 + $0x260] sm:$0xff]
        %v361 = vld [vmem:[%s280 + $0x268] sm:$0xff]
        %v362 = vld [vmem:[%s280 + $0x270] sm:$0xff]
        %v363 = vld [vmem:[%s280 + $0x278] sm:$0xff]
        %v364 = vld [vmem:[%s280 + $0x280] sm:$0xff]
        %v365 = vld [vmem:[%s280 + $0x288] sm:$0xff]
        %v366 = vld [vmem:[%s280 + $0x290] sm:$0xff]
        %v367 = vld [vmem:[%s280 + $0x298] sm:$0xff]
        %v368 = vld [vmem:[%s280 + $0x2a0] sm:$0xff]
        %v369 = vld [vmem:[%s280 + $0x2a8] sm:$0xff]
        %v370 = vld [vmem:[%s280 + $0x2b0] sm:$0xff]
        %v371 = vld [vmem:[%s280 + $0x2b8] sm:$0xff]
        %v372 = vld [vmem:[%s280 + $0x2c0] sm:$0xff]
        %v373 = vld [vmem:[%s280 + $0x2c8] sm:$0xff]
        %v374 = vld [vmem:[%s280 + $0x2d0] sm:$0xff]
        %v375 = vld [vmem:[%s280 + $0x2d8] sm:$0xff]
        %v376 = vld [vmem:[%s280 + $0x2e0] sm:$0xff]
        %v377 = vld [vmem:[%s280 + $0x2e8] sm:$0xff]
        %v378 = vld [vmem:[%s280 + $0x2f0] sm:$0xff]
        %v379 = vld [vmem:[%s280 + $0x2f8] sm:$0xff]
        %v380 = vld [vmem:[%s280 + $0x300] sm:$0xff]
        %v381 = vld [vmem:[%s280 + $0x308] sm:$0xff]
        %v382 = vld [vmem:[%s280 + $0x310] sm:$0xff]
        %v383 = vld [vmem:[%s280 + $0x318] sm:$0xff]
        %v384 = vld [vmem:[%s280 + $0x320] sm:$0xff]
        %v385 = vld [vmem:[%s280 + $0x328] sm:$0xff]
        %v386 = vld [vmem:[%s280 + $0x330] sm:$0xff]
        %v387 = vld [vmem:[%s280 + $0x338] sm:$0xff]
        %v388 = vld [vmem:[%s280 + $0x340] sm:$0xff]
        %v389 = vld [vmem:[%s280 + $0x348] sm:$0xff]
        %v390 = vld [vmem:[%s280 + $0x350] sm:$0xff]
        %v391 = vld [vmem:[%s280 + $0x358] sm:$0xff]
        %v392 = vld [vmem:[%s280 + $0x360] sm:$0xff]
        %v393 = vld [vmem:[%s280 + $0x368] sm:$0xff]
        %v394 = vld [vmem:[%s280 + $0x370] sm:$0xff]
        %v395 = vld [vmem:[%s280 + $0x378] sm:$0xff]
        %v396 = vld [vmem:[%s280 + $0x380] sm:$0xff]
        %v397 = vld [vmem:[%s280 + $0x388] sm:$0xff]
        %v398 = vld [vmem:[%s280 + $0x390] sm:$0xff]
        %v399 = vld [vmem:[%s280 + $0x398] sm:$0xff]
        %v400 = vld [vmem:[%s280 + $0x3a0] sm:$0xff]
        %v401 = vld [vmem:[%s280 + $0x3a8] sm:$0xff]
        %v402 = vld [vmem:[%s280 + $0x3b0] sm:$0xff]
        %v403 = vld [vmem:[%s280 + $0x3b8] sm:$0xff]
        %v404 = vld [vmem:[%s280 + $0x3c0] sm:$0xff]
        %v405 = vld [vmem:[%s280 + $0x3c8] sm:$0xff]
        %v406 = vld [vmem:[%s280 + $0x3d0] sm:$0xff]
        %v407 = vld [vmem:[%s280 + $0x3d8] sm:$0xff]
        %v408 = vld [vmem:[%s280 + $0x3e0] sm:$0xff]
        %v409 = vld [vmem:[%s280 + $0x3e8] sm:$0xff]
        %v410 = vld [vmem:[%s280 + $0x3f0] sm:$0xff]
        %v411 = vld [vmem:[%s280 + $0x3f8] sm:$0xff]
        %v412 = vld [vmem:[%s280 + $0x400] sm:$0xff]
        %v413 = vld [vmem:[%s280 + $0x408] sm:$0xff]
        %v414 = vld [vmem:[%s280 + $0x410] sm:$0xff]
        %v415 = vld [vmem:[%s280 + $0x418] sm:$0xff]
        %v416 = vld [vmem:[%s280 + $0x420] sm:$0xff]
        %v417 = vld [vmem:[%s280 + $0x428] sm:$0xff]
        %v418 = vld [vmem:[%s280 + $0x430] sm:$0xff]
        %v419 = vld [vmem:[%s280 + $0x438] sm:$0xff]
        %v420 = vld [vmem:[%s280 + $0x440] sm:$0xff]
        %v421 = vld [vmem:[%s280 + $0x448] sm:$0xff]
        %v422 = vld [vmem:[%s280 + $0x450] sm:$0xff]
        %v423 = vld [vmem:[%s280 + $0x458] sm:$0xff]
        %v424 = vld [vmem:[%s280 + $0x460] sm:$0xff]
        %v425 = vld [vmem:[%s280 + $0x468] sm:$0xff]
        %v426 = vld [vmem:[%s280 + $0x470] sm:$0xff]
        %v427 = vld [vmem:[%s280 + $0x478] sm:$0xff]
        %v428 = vld [vmem:[%s280 + $0x480] sm:$0xff]
        %v429 = vld [vmem:[%s280 + $0x488] sm:$0xff]
        %v430 = vld [vmem:[%s280 + $0x490] sm:$0xff]
        %v431 = vld [vmem:[%s280 + $0x498] sm:$0xff]
        %v432 = vld [vmem:[%s280 + $0x4a0] sm:$0xff]
        %v433 = vld [vmem:[%s280 + $0x4a8] sm:$0xff]
        %v434 = vld [vmem:[%s280 + $0x4b0] sm:$0xff]
        %v435 = vld [vmem:[%s280 + $0x4b8] sm:$0xff]
        %v436 = vld [vmem:[%s280 + $0x4c0] sm:$0xff]
        %v437 = vld [vmem:[%s280 + $0x4c8] sm:$0xff]
        %v438 = vld [vmem:[%s280 + $0x4d0] sm:$0xff]
        %v439 = vld [vmem:[%s280 + $0x4d8] sm:$0xff]
        %v440 = vld [vmem:[%s280 + $0x4e0] sm:$0xff]
        %v441 = vld [vmem:[%s280 + $0x4e8] sm:$0xff]
        %v442 = vld [vmem:[%s280 + $0x4f0] sm:$0xff]
        %v443 = vld [vmem:[%s280 + $0x4f8] sm:$0xff]
        %v444 = vld [vmem:[%s280 + $0x500] sm:$0xff]
        %v445 = vld [vmem:[%s280 + $0x508] sm:$0xff]
        %v446 = vld [vmem:[%s280 + $0x510] sm:$0xff]
        %v447 = vld [vmem:[%s280 + $0x518] sm:$0xff]
        %v448 = vld [vmem:[%s280 + $0x520] sm:$0xff]
        %v449 = vld [vmem:[%s280 + $0x528] sm:$0xff]
        %v450 = vld [vmem:[%s280 + $0x530] sm:$0xff]
        %v451 = vld [vmem:[%s280 + $0x538] sm:$0xff]
        %v452 = vld [vmem:[%s280 + $0x540] sm:$0xff]
        %v453 = vld [vmem:[%s280 + $0x548] sm:$0xff]
        %v454 = vld [vmem:[%s280 + $0x550] sm:$0xff]
        %v455 = vld [vmem:[%s280 + $0x558] sm:$0xff]
        %v456 = vld [vmem:[%s280 + $0x560] sm:$0xff]
        %v457 = vld [vmem:[%s280 + $0x568] sm:$0xff]
        %v458 = vld [vmem:[%s280 + $0x570] sm:$0xff]
        %v459 = vld [vmem:[%s280 + $0x578] sm:$0xff]
        %v460 = vld [vmem:[%s280 + $0x580] sm:$0xff]
        %v461 = vld [vmem:[%s280 + $0x588] sm:$0xff]
        %v462 = vld [vmem:[%s280 + $0x590] sm:$0xff]
        %v463 = vld [vmem:[%s280 + $0x598] sm:$0xff]
        %v464 = vld [vmem:[%s280 + $0x5a0] sm:$0xff]
        %v465 = vld [vmem:[%s280 + $0x5a8] sm:$0xff]
        %v466 = vld [vmem:[%s280 + $0x5b0] sm:$0xff]
        %v467 = vld [vmem:[%s280 + $0x5b8] sm:$0xff]
        %v468 = vld [vmem:[%s280 + $0x5c0] sm:$0xff]
        %v469 = vld [vmem:[%s280 + $0x5c8] sm:$0xff]
        %v470 = vld [vmem:[%s280 + $0x5d0] sm:$0xff]
        %v471 = vld [vmem:[%s280 + $0x5d8] sm:$0xff]
        %v472 = vld [vmem:[%s280 + $0x5e0] sm:$0xff]
        %v473 = vld [vmem:[%s280 + $0x5e8] sm:$0xff]
        %v474 = vld [vmem:[%s280 + $0x5f0] sm:$0xff]
        %v475 = vld [vmem:[%s280 + $0x5f8] sm:$0xff]
        %v476 = vld [vmem:[%s280 + $0x600] sm:$0xff]
        %v477 = vld [vmem:[%s280 + $0x608] sm:$0xff]
        %v478 = vld [vmem:[%s280 + $0x610] sm:$0xff]
        %v479 = vld [vmem:[%s280 + $0x618] sm:$0xff]
        %v480 = vld [vmem:[%s280 + $0x620] sm:$0xff]
        %v481 = vld [vmem:[%s280 + $0x628] sm:$0xff]
        %v482 = vld [vmem:[%s280 + $0x630] sm:$0xff]
        %v483 = vld [vmem:[%s280 + $0x638] sm:$0xff]
        %v484 = vld [vmem:[%s280 + $0x640] sm:$0xff]
        %v485 = vld [vmem:[%s280 + $0x648] sm:$0xff]
        %v486 = vld [vmem:[%s280 + $0x650] sm:$0xff]
        %v487 = vld [vmem:[%s280 + $0x658] sm:$0xff]
        %v488 = vld [vmem:[%s280 + $0x660] sm:$0xff]
        %v489 = vld [vmem:[%s280 + $0x668] sm:$0xff]
        %v490 = vld [vmem:[%s280 + $0x670] sm:$0xff]
        %v491 = vld [vmem:[%s280 + $0x678] sm:$0xff]
        %v492 = vld [vmem:[%s280 + $0x680] sm:$0xff]
        %v493 = vld [vmem:[%s280 + $0x688] sm:$0xff]
        %v494 = vld [vmem:[%s280 + $0x690] sm:$0xff]
        %v495 = vld [vmem:[%s280 + $0x698] sm:$0xff]
        %v496 = vld [vmem:[%s280 + $0x6a0] sm:$0xff]
        %v497 = vld [vmem:[%s280 + $0x6a8] sm:$0xff]
        %v498 = vld [vmem:[%s280 + $0x6b0] sm:$0xff]
        %v499 = vld [vmem:[%s280 + $0x6b8] sm:$0xff]
        %v500 = vld [vmem:[%s280 + $0x6c0] sm:$0xff]
        %v501 = vld [vmem:[%s280 + $0x6c8] sm:$0xff]
        %v502 = vld [vmem:[%s280 + $0x6d0] sm:$0xff]
        %v503 = vld [vmem:[%s280 + $0x6d8] sm:$0xff]
        %v504 = vld [vmem:[%s280 + $0x6e0] sm:$0xff]
        %v505 = vld [vmem:[%s280 + $0x6e8] sm:$0xff]
        %v506 = vld [vmem:[%s280 + $0x6f0] sm:$0xff]
        %v507 = vld [vmem:[%s280 + $0x6f8] sm:$0xff]
        %v508 = vld [vmem:[%s280 + $0x700] sm:$0xff]
        %v509 = vld [vmem:[%s280 + $0x708] sm:$0xff]
        %v510 = vld [vmem:[%s280 + $0x710] sm:$0xff]
        %v511 = vld [vmem:[%s280 + $0x718] sm:$0xff]
        %v512 = vld [vmem:[%s280 + $0x720] sm:$0xff]
        %v513 = vld [vmem:[%s280 + $0x728] sm:$0xff]
        %v514 = vld [vmem:[%s280 + $0x730] sm:$0xff]
        %v515 = vld [vmem:[%s280 + $0x738] sm:$0xff]
        %v516 = vld [vmem:[%s280 + $0x740] sm:$0xff]
        %v517 = vld [vmem:[%s280 + $0x748] sm:$0xff]
        %v518 = vld [vmem:[%s280 + $0x750] sm:$0xff]
        %v519 = vld [vmem:[%s280 + $0x758] sm:$0xff]
        %v520 = vld [vmem:[%s280 + $0x760] sm:$0xff]
        %v521 = vld [vmem:[%s280 + $0x768] sm:$0xff]
        %v522 = vld [vmem:[%s280 + $0x770] sm:$0xff]
        %v523 = vld [vmem:[%s280 + $0x778] sm:$0xff]
        %v524 = vld [vmem:[%s280 + $0x780] sm:$0xff]
        %v525 = vld [vmem:[%s280 + $0x788] sm:$0xff]
        %v526 = vld [vmem:[%s280 + $0x790] sm:$0xff]
        %v527 = vld [vmem:[%s280 + $0x798] sm:$0xff]
        %v528 = vld [vmem:[%s280 + $0x7a0] sm:$0xff]
        %v529 = vld [vmem:[%s280 + $0x7a8] sm:$0xff]
        %v530 = vld [vmem:[%s280 + $0x7b0] sm:$0xff]
        %v531 = vld [vmem:[%s280 + $0x7b8] sm:$0xff]
        %v532 = vld [vmem:[%s280 + $0x7c0] sm:$0xff]
        %v533 = vld [vmem:[%s280 + $0x7c8] sm:$0xff]
        %v534 = vld [vmem:[%s280 + $0x7d0] sm:$0xff]
        %v535 = vld [vmem:[%s280 + $0x7d8] sm:$0xff]
        %v536 = vld [vmem:[%s280 + $0x7e0] sm:$0xff]
        %v537 = vld [vmem:[%s280 + $0x7e8] sm:$0xff]
        %v538 = vld [vmem:[%s280 + $0x7f0] sm:$0xff]
        %v539 = vld [vmem:[%s280 + $0x7f8] sm:$0xff]
        %v540 = vld [vmem:[%s280 + $0x800] sm:$0xff]
        %v541 = vld [vmem:[%s280 + $0x808] sm:$0xff]
        %v542 = vld [vmem:[%s280 + $0x810] sm:$0xff]
        %v543 = vld [vmem:[%s280 + $0x818] sm:$0xff]
        %v544 = vld [vmem:[%s280 + $0x820] sm:$0xff]
        %v545 = vld [vmem:[%s280 + $0x828] sm:$0xff]
        %v546 = vld [vmem:[%s280 + $0x830] sm:$0xff]
        %v547 = vld [vmem:[%s280 + $0x838] sm:$0xff]
        %v548 = vld [vmem:[%s280 + $0x840] sm:$0xff]
        %v549 = vld [vmem:[%s280 + $0x848] sm:$0xff]
        %v550 = vld [vmem:[%s280 + $0x850] sm:$0xff]
        %v551 = vld [vmem:[%s280 + $0x858] sm:$0xff]
        %v552 = vld [vmem:[%s280 + $0x860] sm:$0xff]
        %v553 = vld [vmem:[%s280 + $0x868] sm:$0xff]
        %v554 = vld [vmem:[%s280 + $0x870] sm:$0xff]
        %v555 = vld [vmem:[%s280 + $0x878] sm:$0xff]
        %v556 = vld [vmem:[%s280 + $0x880] sm:$0xff]
        %v557 = vld [vmem:[%s280 + $0x888] sm:$0xff]
        %v558 = vld [vmem:[%s280 + $0x890] sm:$0xff]
        %v559 = vld [vmem:[%s280 + $0x898] sm:$0xff]
        %v560 = vld [vmem:[%s280 + $0x8a0] sm:$0xff]
        %v561 = vld [vmem:[%s280 + $0x8a8] sm:$0xff]
        %v562 = vld [vmem:[%s280 + $0x8b0] sm:$0xff]
        %v563 = vld [vmem:[%s280 + $0x8b8] sm:$0xff]
        %v564 = vld [vmem:[%s280 + $0x8c0] sm:$0xff]
        %v565 = vld [vmem:[%s280 + $0x8c8] sm:$0xff]
        %v566 = vld [vmem:[%s280 + $0x8d0] sm:$0xff]
        %v567 = vld [vmem:[%s280 + $0x8d8] sm:$0xff]
        %v568 = vld [vmem:[%s280 + $0x8e0] sm:$0xff]
        %v569 = vld [vmem:[%s280 + $0x8e8] sm:$0xff]
        %v570 = vld [vmem:[%s280 + $0x8f0] sm:$0xff]
        %v571 = vld [vmem:[%s280 + $0x8f8] sm:$0xff]
        %v572 = vld [vmem:[%s1] sm:$0xf]
        %v573 = vld [vmem:[%s1 + $0x4] sm:$0xf]
        %v574 = vld [vmem:[%s1 + $0x8] sm:$0xf]
        %v575 = vld [vmem:[%s1 + $0xc] sm:$0xf]
        %v576 = vld [vmem:[%s1 + $0x10] sm:$0xf]
        %v577 = vld [vmem:[%s1 + $0x14] sm:$0xf]
        %v578 = vld [vmem:[%s1 + $0x18] sm:$0xf]
        %v579 = vld [vmem:[%s1 + $0x1c] sm:$0xf]
        %v580 = vld [vmem:[%s1 + $0x20] sm:$0xf]
        %v581 = vld [vmem:[%s1 + $0x24] sm:$0xf]
        %v582 = vld [vmem:[%s1 + $0x28] sm:$0xf]
        %v583 = vld [vmem:[%s1 + $0x2c] sm:$0xf]
        %v584 = vld [vmem:[%s1 + $0x30] sm:$0xf]
        %v585 = vld [vmem:[%s1 + $0x34] sm:$0xf]
        %v586 = vld [vmem:[%s1 + $0x38] sm:$0xf]
        %v587 = vld [vmem:[%s1 + $0x3c] sm:$0xf]
        %v588 = vld [vmem:[%s1 + $0x40] sm:$0xf]
        %v589 = vld [vmem:[%s1 + $0x44] sm:$0xf]
        %v590 = vld [vmem:[%s1 + $0x48] sm:$0xf]
        %v591 = vld [vmem:[%s1 + $0x4c] sm:$0xf]
        %v592 = vld [vmem:[%s1 + $0x50] sm:$0xf]
        %v593 = vld [vmem:[%s1 + $0x54] sm:$0xf]
        %v594 = vld [vmem:[%s1 + $0x58] sm:$0xf]
        %v595 = vld [vmem:[%s1 + $0x5c] sm:$0xf]
        %v596 = vld [vmem:[%s1 + $0x60] sm:$0xf]
        %v597 = vld [vmem:[%s1 + $0x64] sm:$0xf]
        %v598 = vld [vmem:[%s1 + $0x68] sm:$0xf]
        %v599 = vld [vmem:[%s1 + $0x6c] sm:$0xf]
        %v600 = vld [vmem:[%s1 + $0x70] sm:$0xf]
        %v601 = vld [vmem:[%s1 + $0x74] sm:$0xf]
        %v602 = vld [vmem:[%s1 + $0x78] sm:$0xf]
        %v603 = vld [vmem:[%s1 + $0x7c] sm:$0xf]
        %v604 = vld [vmem:[%s2] sm:$0x1]
        %v606 = vlaneseq
        %v607 = vshrl.u32 %v606, 7
        %v608 = vsub.s32 0, %v607
        %v609 = vrot.slane %v604, %v608
        %v899 = vunpack.c.l.b16 %v284
        %v900 = vunpack.c.h.b16 %v284
        %v901 = vunpack.c.l.b16 %v285
        %v902 = vunpack.c.h.b16 %v285
        %v903 = vunpack.c.l.b16 %v286
        %v904 = vunpack.c.h.b16 %v286
        %v905 = vunpack.c.l.b16 %v287
        %v906 = vunpack.c.h.b16 %v287
        %v907 = vunpack.c.l.b16 %v288
        %v908 = vunpack.c.h.b16 %v288
        %v909 = vunpack.c.l.b16 %v289
        %v910 = vunpack.c.h.b16 %v289
        %v911 = vunpack.c.l.b16 %v290
        %v912 = vunpack.c.h.b16 %v290
        %v913 = vunpack.c.l.b16 %v291
        %v914 = vunpack.c.h.b16 %v291
        %v915 = vunpack.c.l.b16 %v292
        %v916 = vunpack.c.h.b16 %v292
        %v917 = vunpack.c.l.b16 %v293
        %v918 = vunpack.c.h.b16 %v293
        %v919 = vunpack.c.l.b16 %v294
        %v920 = vunpack.c.h.b16 %v294
        %v921 = vunpack.c.l.b16 %v295
        %v922 = vunpack.c.h.b16 %v295
        %v923 = vunpack.c.l.b16 %v296
        %v924 = vunpack.c.h.b16 %v296
        %v925 = vunpack.c.l.b16 %v297
        %v926 = vunpack.c.h.b16 %v297
        %v927 = vunpack.c.l.b16 %v298
        %v928 = vunpack.c.h.b16 %v298
        %v929 = vunpack.c.l.b16 %v299
        %v930 = vunpack.c.h.b16 %v299
        %v931 = vunpack.c.l.b16 %v300
        %v932 = vunpack.c.h.b16 %v300
        %v933 = vunpack.c.l.b16 %v301
        %v934 = vunpack.c.h.b16 %v301
        %v935 = vunpack.c.l.b16 %v302
        %v936 = vunpack.c.h.b16 %v302
        %v937 = vunpack.c.l.b16 %v303
        %v938 = vunpack.c.h.b16 %v303
        %v939 = vunpack.c.l.b16 %v304
        %v940 = vunpack.c.h.b16 %v304
        %v941 = vunpack.c.l.b16 %v305
        %v942 = vunpack.c.h.b16 %v305
        %v943 = vunpack.c.l.b16 %v306
        %v944 = vunpack.c.h.b16 %v306
        %v945 = vunpack.c.l.b16 %v307
        %v946 = vunpack.c.h.b16 %v307
        %v947 = vunpack.c.l.b16 %v308
        %v948 = vunpack.c.h.b16 %v308
        %v949 = vunpack.c.l.b16 %v309
        %v950 = vunpack.c.h.b16 %v309
        %v951 = vunpack.c.l.b16 %v310
        %v952 = vunpack.c.h.b16 %v310
        %v953 = vunpack.c.l.b16 %v311
        %v954 = vunpack.c.h.b16 %v311
        %v955 = vunpack.c.l.b16 %v312
        %v956 = vunpack.c.h.b16 %v312
        %v957 = vunpack.c.l.b16 %v313
        %v958 = vunpack.c.h.b16 %v313
        %v959 = vunpack.c.l.b16 %v314
        %v960 = vunpack.c.h.b16 %v314
        %v961 = vunpack.c.l.b16 %v315
        %v962 = vunpack.c.h.b16 %v315
        %v963 = vunpack.c.l.b16 %v316
        %v964 = vunpack.c.h.b16 %v316
        %v965 = vunpack.c.l.b16 %v317
        %v966 = vunpack.c.h.b16 %v317
        %v967 = vunpack.c.l.b16 %v318
        %v968 = vunpack.c.h.b16 %v318
        %v969 = vunpack.c.l.b16 %v319
        %v970 = vunpack.c.h.b16 %v319
        %v971 = vunpack.c.l.b16 %v320
        %v972 = vunpack.c.h.b16 %v320
        %v973 = vunpack.c.l.b16 %v321
        %v974 = vunpack.c.h.b16 %v321
        %v975 = vunpack.c.l.b16 %v322
        %v976 = vunpack.c.h.b16 %v322
        %v977 = vunpack.c.l.b16 %v323
        %v978 = vunpack.c.h.b16 %v323
        %v979 = vunpack.c.l.b16 %v324
        %v980 = vunpack.c.h.b16 %v324
        %v981 = vunpack.c.l.b16 %v325
        %v982 = vunpack.c.h.b16 %v325
        %v983 = vunpack.c.l.b16 %v326
        %v984 = vunpack.c.h.b16 %v326
        %v985 = vunpack.c.l.b16 %v327
        %v986 = vunpack.c.h.b16 %v327
        %v987 = vunpack.c.l.b16 %v328
        %v988 = vunpack.c.h.b16 %v328
        %v989 = vunpack.c.l.b16 %v329
        %v990 = vunpack.c.h.b16 %v329
        %v991 = vunpack.c.l.b16 %v330
        %v992 = vunpack.c.h.b16 %v330
        %v993 = vunpack.c.l.b16 %v331
        %v994 = vunpack.c.h.b16 %v331
        %v995 = vunpack.c.l.b16 %v332
        %v996 = vunpack.c.h.b16 %v332
        %v997 = vunpack.c.l.b16 %v333
        %v998 = vunpack.c.h.b16 %v333
        %v999 = vunpack.c.l.b16 %v334
        %v1000 = vunpack.c.h.b16 %v334
        %v1001 = vunpack.c.l.b16 %v335
        %v1002 = vunpack.c.h.b16 %v335
        %v1003 = vunpack.c.l.b16 %v336
        %v1004 = vunpack.c.h.b16 %v336
        %v1005 = vunpack.c.l.b16 %v337
        %v1006 = vunpack.c.h.b16 %v337
        %v1007 = vunpack.c.l.b16 %v338
        %v1008 = vunpack.c.h.b16 %v338
        %v1009 = vunpack.c.l.b16 %v339
        %v1010 = vunpack.c.h.b16 %v339
        %v1011 = vunpack.c.l.b16 %v340
        %v1012 = vunpack.c.h.b16 %v340
        %v1013 = vunpack.c.l.b16 %v341
        %v1014 = vunpack.c.h.b16 %v341
        %v1015 = vunpack.c.l.b16 %v342
        %v1016 = vunpack.c.h.b16 %v342
        %v1017 = vunpack.c.l.b16 %v343
        %v1018 = vunpack.c.h.b16 %v343
        %v1019 = vunpack.c.l.b16 %v344
        %v1020 = vunpack.c.h.b16 %v344
        %v1021 = vunpack.c.l.b16 %v345
        %v1022 = vunpack.c.h.b16 %v345
        %v1023 = vunpack.c.l.b16 %v346
        %v1024 = vunpack.c.h.b16 %v346
        %v1025 = vunpack.c.l.b16 %v347
        %v1026 = vunpack.c.h.b16 %v347
        %v1027 = vunpack.c.l.b16 %v348
        %v1028 = vunpack.c.h.b16 %v348
        %v1029 = vunpack.c.l.b16 %v349
        %v1030 = vunpack.c.h.b16 %v349
        %v1031 = vunpack.c.l.b16 %v350
        %v1032 = vunpack.c.h.b16 %v350
        %v1033 = vunpack.c.l.b16 %v351
        %v1034 = vunpack.c.h.b16 %v351
        %v1035 = vunpack.c.l.b16 %v352
        %v1036 = vunpack.c.h.b16 %v352
        %v1037 = vunpack.c.l.b16 %v353
        %v1038 = vunpack.c.h.b16 %v353
        %v1039 = vunpack.c.l.b16 %v354
        %v1040 = vunpack.c.h.b16 %v354
        %v1041 = vunpack.c.l.b16 %v355
        %v1042 = vunpack.c.h.b16 %v355
        %v1043 = vunpack.c.l.b16 %v356
        %v1044 = vunpack.c.h.b16 %v356
        %v1045 = vunpack.c.l.b16 %v357
        %v1046 = vunpack.c.h.b16 %v357
        %v1047 = vunpack.c.l.b16 %v358
        %v1048 = vunpack.c.h.b16 %v358
        %v1049 = vunpack.c.l.b16 %v359
        %v1050 = vunpack.c.h.b16 %v359
        %v1051 = vunpack.c.l.b16 %v360
        %v1052 = vunpack.c.h.b16 %v360
        %v1053 = vunpack.c.l.b16 %v361
        %v1054 = vunpack.c.h.b16 %v361
        %v1055 = vunpack.c.l.b16 %v362
        %v1056 = vunpack.c.h.b16 %v362
        %v1057 = vunpack.c.l.b16 %v363
        %v1058 = vunpack.c.h.b16 %v363
        %v1059 = vunpack.c.l.b16 %v364
        %v1060 = vunpack.c.h.b16 %v364
        %v1061 = vunpack.c.l.b16 %v365
        %v1062 = vunpack.c.h.b16 %v365
        %v1063 = vunpack.c.l.b16 %v366
        %v1064 = vunpack.c.h.b16 %v366
        %v1065 = vunpack.c.l.b16 %v367
        %v1066 = vunpack.c.h.b16 %v367
        %v1067 = vunpack.c.l.b16 %v368
        %v1068 = vunpack.c.h.b16 %v368
        %v1069 = vunpack.c.l.b16 %v369
        %v1070 = vunpack.c.h.b16 %v369
        %v1071 = vunpack.c.l.b16 %v370
        %v1072 = vunpack.c.h.b16 %v370
        %v1073 = vunpack.c.l.b16 %v371
        %v1074 = vunpack.c.h.b16 %v371
        %v1075 = vunpack.c.l.b16 %v372
        %v1076 = vunpack.c.h.b16 %v372
        %v1077 = vunpack.c.l.b16 %v373
        %v1078 = vunpack.c.h.b16 %v373
        %v1079 = vunpack.c.l.b16 %v374
        %v1080 = vunpack.c.h.b16 %v374
        %v1081 = vunpack.c.l.b16 %v375
        %v1082 = vunpack.c.h.b16 %v375
        %v1083 = vunpack.c.l.b16 %v376
        %v1084 = vunpack.c.h.b16 %v376
        %v1085 = vunpack.c.l.b16 %v377
        %v1086 = vunpack.c.h.b16 %v377
        %v1087 = vunpack.c.l.b16 %v378
        %v1088 = vunpack.c.h.b16 %v378
        %v1089 = vunpack.c.l.b16 %v379
        %v1090 = vunpack.c.h.b16 %v379
        %v1091 = vunpack.c.l.b16 %v380
        %v1092 = vunpack.c.h.b16 %v380
        %v1093 = vunpack.c.l.b16 %v381
        %v1094 = vunpack.c.h.b16 %v381
        %v1095 = vunpack.c.l.b16 %v382
        %v1096 = vunpack.c.h.b16 %v382
        %v1097 = vunpack.c.l.b16 %v383
        %v1098 = vunpack.c.h.b16 %v383
        %v1099 = vunpack.c.l.b16 %v384
        %v1100 = vunpack.c.h.b16 %v384
        %v1101 = vunpack.c.l.b16 %v385
        %v1102 = vunpack.c.h.b16 %v385
        %v1103 = vunpack.c.l.b16 %v386
        %v1104 = vunpack.c.h.b16 %v386
        %v1105 = vunpack.c.l.b16 %v387
        %v1106 = vunpack.c.h.b16 %v387
        %v1107 = vunpack.c.l.b16 %v388
        %v1108 = vunpack.c.h.b16 %v388
        %v1109 = vunpack.c.l.b16 %v389
        %v1110 = vunpack.c.h.b16 %v389
        %v1111 = vunpack.c.l.b16 %v390
        %v1112 = vunpack.c.h.b16 %v390
        %v1113 = vunpack.c.l.b16 %v391
        %v1114 = vunpack.c.h.b16 %v391
        %v1115 = vunpack.c.l.b16 %v392
        %v1116 = vunpack.c.h.b16 %v392
        %v1117 = vunpack.c.l.b16 %v393
        %v1118 = vunpack.c.h.b16 %v393
        %v1119 = vunpack.c.l.b16 %v394
        %v1120 = vunpack.c.h.b16 %v394
        %v1121 = vunpack.c.l.b16 %v395
        %v1122 = vunpack.c.h.b16 %v395
        %v1123 = vunpack.c.l.b16 %v396
        %v1124 = vunpack.c.h.b16 %v396
        %v1125 = vunpack.c.l.b16 %v397
        %v1126 = vunpack.c.h.b16 %v397
        %v1127 = vunpack.c.l.b16 %v398
        %v1128 = vunpack.c.h.b16 %v398
        %v1129 = vunpack.c.l.b16 %v399
        %v1130 = vunpack.c.h.b16 %v399
        %v1131 = vunpack.c.l.b16 %v400
        %v1132 = vunpack.c.h.b16 %v400
        %v1133 = vunpack.c.l.b16 %v401
        %v1134 = vunpack.c.h.b16 %v401
        %v1135 = vunpack.c.l.b16 %v402
        %v1136 = vunpack.c.h.b16 %v402
        %v1137 = vunpack.c.l.b16 %v403
        %v1138 = vunpack.c.h.b16 %v403
        %v1139 = vunpack.c.l.b16 %v404
        %v1140 = vunpack.c.h.b16 %v404
        %v1141 = vunpack.c.l.b16 %v405
        %v1142 = vunpack.c.h.b16 %v405
        %v1143 = vunpack.c.l.b16 %v406
        %v1144 = vunpack.c.h.b16 %v406
        %v1145 = vunpack.c.l.b16 %v407
        %v1146 = vunpack.c.h.b16 %v407
        %v1147 = vunpack.c.l.b16 %v408
        %v1148 = vunpack.c.h.b16 %v408
        %v1149 = vunpack.c.l.b16 %v409
        %v1150 = vunpack.c.h.b16 %v409
        %v1151 = vunpack.c.l.b16 %v410
        %v1152 = vunpack.c.h.b16 %v410
        %v1153 = vunpack.c.l.b16 %v411
        %v1154 = vunpack.c.h.b16 %v411
        %v1155 = vunpack.c.l.b16 %v412
        %v1156 = vunpack.c.h.b16 %v412
        %v1157 = vunpack.c.l.b16 %v413
        %v1158 = vunpack.c.h.b16 %v413
        %v1159 = vunpack.c.l.b16 %v414
        %v1160 = vunpack.c.h.b16 %v414
        %v1161 = vunpack.c.l.b16 %v415
        %v1162 = vunpack.c.h.b16 %v415
        %v1163 = vunpack.c.l.b16 %v416
        %v1164 = vunpack.c.h.b16 %v416
        %v1165 = vunpack.c.l.b16 %v417
        %v1166 = vunpack.c.h.b16 %v417
        %v1167 = vunpack.c.l.b16 %v418
        %v1168 = vunpack.c.h.b16 %v418
        %v1169 = vunpack.c.l.b16 %v419
        %v1170 = vunpack.c.h.b16 %v419
        %v1171 = vunpack.c.l.b16 %v420
        %v1172 = vunpack.c.h.b16 %v420
        %v1173 = vunpack.c.l.b16 %v421
        %v1174 = vunpack.c.h.b16 %v421
        %v1175 = vunpack.c.l.b16 %v422
        %v1176 = vunpack.c.h.b16 %v422
        %v1177 = vunpack.c.l.b16 %v423
        %v1178 = vunpack.c.h.b16 %v423
        %v1179 = vunpack.c.l.b16 %v424
        %v1180 = vunpack.c.h.b16 %v424
        %v1181 = vunpack.c.l.b16 %v425
        %v1182 = vunpack.c.h.b16 %v425
        %v1183 = vunpack.c.l.b16 %v426
        %v1184 = vunpack.c.h.b16 %v426
        %v1185 = vunpack.c.l.b16 %v427
        %v1186 = vunpack.c.h.b16 %v427
        %v1187 = vunpack.c.l.b16 %v428
        %v1188 = vunpack.c.h.b16 %v428
        %v1189 = vunpack.c.l.b16 %v429
        %v1190 = vunpack.c.h.b16 %v429
        %v1191 = vunpack.c.l.b16 %v430
        %v1192 = vunpack.c.h.b16 %v430
        %v1193 = vunpack.c.l.b16 %v431
        %v1194 = vunpack.c.h.b16 %v431
        %v1195 = vunpack.c.l.b16 %v432
        %v1196 = vunpack.c.h.b16 %v432
        %v1197 = vunpack.c.l.b16 %v433
        %v1198 = vunpack.c.h.b16 %v433
        %v1199 = vunpack.c.l.b16 %v434
        %v1200 = vunpack.c.h.b16 %v434
        %v1201 = vunpack.c.l.b16 %v435
        %v1202 = vunpack.c.h.b16 %v435
        %v1203 = vunpack.c.l.b16 %v436
        %v1204 = vunpack.c.h.b16 %v436
        %v1205 = vunpack.c.l.b16 %v437
        %v1206 = vunpack.c.h.b16 %v437
        %v1207 = vunpack.c.l.b16 %v438
        %v1208 = vunpack.c.h.b16 %v438
        %v1209 = vunpack.c.l.b16 %v439
        %v1210 = vunpack.c.h.b16 %v439
        %v1211 = vunpack.c.l.b16 %v440
        %v1212 = vunpack.c.h.b16 %v440
        %v1213 = vunpack.c.l.b16 %v441
        %v1214 = vunpack.c.h.b16 %v441
        %v1215 = vunpack.c.l.b16 %v442
        %v1216 = vunpack.c.h.b16 %v442
        %v1217 = vunpack.c.l.b16 %v443
        %v1218 = vunpack.c.h.b16 %v443
        %v1219 = vunpack.c.l.b16 %v444
        %v1220 = vunpack.c.h.b16 %v444
        %v1221 = vunpack.c.l.b16 %v445
        %v1222 = vunpack.c.h.b16 %v445
        %v1223 = vunpack.c.l.b16 %v446
        %v1224 = vunpack.c.h.b16 %v446
        %v1225 = vunpack.c.l.b16 %v447
        %v1226 = vunpack.c.h.b16 %v447
        %v1227 = vunpack.c.l.b16 %v448
        %v1228 = vunpack.c.h.b16 %v448
        %v1229 = vunpack.c.l.b16 %v449
        %v1230 = vunpack.c.h.b16 %v449
        %v1231 = vunpack.c.l.b16 %v450
        %v1232 = vunpack.c.h.b16 %v450
        %v1233 = vunpack.c.l.b16 %v451
        %v1234 = vunpack.c.h.b16 %v451
        %v1235 = vunpack.c.l.b16 %v452
        %v1236 = vunpack.c.h.b16 %v452
        %v1237 = vunpack.c.l.b16 %v453
        %v1238 = vunpack.c.h.b16 %v453
        %v1239 = vunpack.c.l.b16 %v454
        %v1240 = vunpack.c.h.b16 %v454
        %v1241 = vunpack.c.l.b16 %v455
        %v1242 = vunpack.c.h.b16 %v455
        %v1243 = vunpack.c.l.b16 %v456
        %v1244 = vunpack.c.h.b16 %v456
        %v1245 = vunpack.c.l.b16 %v457
        %v1246 = vunpack.c.h.b16 %v457
        %v1247 = vunpack.c.l.b16 %v458
        %v1248 = vunpack.c.h.b16 %v458
        %v1249 = vunpack.c.l.b16 %v459
        %v1250 = vunpack.c.h.b16 %v459
        %v1251 = vunpack.c.l.b16 %v460
        %v1252 = vunpack.c.h.b16 %v460
        %v1253 = vunpack.c.l.b16 %v461
        %v1254 = vunpack.c.h.b16 %v461
        %v1255 = vunpack.c.l.b16 %v462
        %v1256 = vunpack.c.h.b16 %v462
        %v1257 = vunpack.c.l.b16 %v463
        %v1258 = vunpack.c.h.b16 %v463
        %v1259 = vunpack.c.l.b16 %v464
        %v1260 = vunpack.c.h.b16 %v464
        %v1261 = vunpack.c.l.b16 %v465
        %v1262 = vunpack.c.h.b16 %v465
        %v1263 = vunpack.c.l.b16 %v466
        %v1264 = vunpack.c.h.b16 %v466
        %v1265 = vunpack.c.l.b16 %v467
        %v1266 = vunpack.c.h.b16 %v467
        %v1267 = vunpack.c.l.b16 %v468
        %v1268 = vunpack.c.h.b16 %v468
        %v1269 = vunpack.c.l.b16 %v469
        %v1270 = vunpack.c.h.b16 %v469
        %v1271 = vunpack.c.l.b16 %v470
        %v1272 = vunpack.c.h.b16 %v470
        %v1273 = vunpack.c.l.b16 %v471
        %v1274 = vunpack.c.h.b16 %v471
        %v1275 = vunpack.c.l.b16 %v472
        %v1276 = vunpack.c.h.b16 %v472
        %v1277 = vunpack.c.l.b16 %v473
        %v1278 = vunpack.c.h.b16 %v473
        %v1279 = vunpack.c.l.b16 %v474
        %v1280 = vunpack.c.h.b16 %v474
        %v1281 = vunpack.c.l.b16 %v475
        %v1282 = vunpack.c.h.b16 %v475
        %v1283 = vunpack.c.l.b16 %v476
        %v1284 = vunpack.c.h.b16 %v476
        %v1285 = vunpack.c.l.b16 %v477
        %v1286 = vunpack.c.h.b16 %v477
        %v1287 = vunpack.c.l.b16 %v478
        %v1288 = vunpack.c.h.b16 %v478
        %v1289 = vunpack.c.l.b16 %v479
        %v1290 = vunpack.c.h.b16 %v479
        %v1291 = vunpack.c.l.b16 %v480
        %v1292 = vunpack.c.h.b16 %v480
        %v1293 = vunpack.c.l.b16 %v481
        %v1294 = vunpack.c.h.b16 %v481
        %v1295 = vunpack.c.l.b16 %v482
        %v1296 = vunpack.c.h.b16 %v482
        %v1297 = vunpack.c.l.b16 %v483
        %v1298 = vunpack.c.h.b16 %v483
        %v1299 = vunpack.c.l.b16 %v484
        %v1300 = vunpack.c.h.b16 %v484
        %v1301 = vunpack.c.l.b16 %v485
        %v1302 = vunpack.c.h.b16 %v485
        %v1303 = vunpack.c.l.b16 %v486
        %v1304 = vunpack.c.h.b16 %v486
        %v1305 = vunpack.c.l.b16 %v487
        %v1306 = vunpack.c.h.b16 %v487
        %v1307 = vunpack.c.l.b16 %v488
        %v1308 = vunpack.c.h.b16 %v488
        %v1309 = vunpack.c.l.b16 %v489
        %v1310 = vunpack.c.h.b16 %v489
        %v1311 = vunpack.c.l.b16 %v490
        %v1312 = vunpack.c.h.b16 %v490
        %v1313 = vunpack.c.l.b16 %v491
        %v1314 = vunpack.c.h.b16 %v491
        %v1315 = vunpack.c.l.b16 %v492
        %v1316 = vunpack.c.h.b16 %v492
        %v1317 = vunpack.c.l.b16 %v493
        %v1318 = vunpack.c.h.b16 %v493
        %v1319 = vunpack.c.l.b16 %v494
        %v1320 = vunpack.c.h.b16 %v494
        %v1321 = vunpack.c.l.b16 %v495
        %v1322 = vunpack.c.h.b16 %v495
        %v1323 = vunpack.c.l.b16 %v496
        %v1324 = vunpack.c.h.b16 %v496
        %v1325 = vunpack.c.l.b16 %v497
        %v1326 = vunpack.c.h.b16 %v497
        %v1327 = vunpack.c.l.b16 %v498
        %v1328 = vunpack.c.h.b16 %v498
        %v1329 = vunpack.c.l.b16 %v499
        %v1330 = vunpack.c.h.b16 %v499
        %v1331 = vunpack.c.l.b16 %v500
        %v1332 = vunpack.c.h.b16 %v500
        %v1333 = vunpack.c.l.b16 %v501
        %v1334 = vunpack.c.h.b16 %v501
        %v1335 = vunpack.c.l.b16 %v502
        %v1336 = vunpack.c.h.b16 %v502
        %v1337 = vunpack.c.l.b16 %v503
        %v1338 = vunpack.c.h.b16 %v503
        %v1339 = vunpack.c.l.b16 %v504
        %v1340 = vunpack.c.h.b16 %v504
        %v1341 = vunpack.c.l.b16 %v505
        %v1342 = vunpack.c.h.b16 %v505
        %v1343 = vunpack.c.l.b16 %v506
        %v1344 = vunpack.c.h.b16 %v506
        %v1345 = vunpack.c.l.b16 %v507
        %v1346 = vunpack.c.h.b16 %v507
        %v1347 = vunpack.c.l.b16 %v508
        %v1348 = vunpack.c.h.b16 %v508
        %v1349 = vunpack.c.l.b16 %v509
        %v1350 = vunpack.c.h.b16 %v509
        %v1351 = vunpack.c.l.b16 %v510
        %v1352 = vunpack.c.h.b16 %v510
        %v1353 = vunpack.c.l.b16 %v511
        %v1354 = vunpack.c.h.b16 %v511
        %v1355 = vunpack.c.l.b16 %v512
        %v1356 = vunpack.c.h.b16 %v512
        %v1357 = vunpack.c.l.b16 %v513
        %v1358 = vunpack.c.h.b16 %v513
        %v1359 = vunpack.c.l.b16 %v514
        %v1360 = vunpack.c.h.b16 %v514
        %v1361 = vunpack.c.l.b16 %v515
        %v1362 = vunpack.c.h.b16 %v515
        %v1363 = vunpack.c.l.b16 %v516
        %v1364 = vunpack.c.h.b16 %v516
        %v1365 = vunpack.c.l.b16 %v517
        %v1366 = vunpack.c.h.b16 %v517
        %v1367 = vunpack.c.l.b16 %v518
        %v1368 = vunpack.c.h.b16 %v518
        %v1369 = vunpack.c.l.b16 %v519
        %v1370 = vunpack.c.h.b16 %v519
        %v1371 = vunpack.c.l.b16 %v520
        %v1372 = vunpack.c.h.b16 %v520
        %v1373 = vunpack.c.l.b16 %v521
        %v1374 = vunpack.c.h.b16 %v521
        %v1375 = vunpack.c.l.b16 %v522
        %v1376 = vunpack.c.h.b16 %v522
        %v1377 = vunpack.c.l.b16 %v523
        %v1378 = vunpack.c.h.b16 %v523
        %v1379 = vunpack.c.l.b16 %v524
        %v1380 = vunpack.c.h.b16 %v524
        %v1381 = vunpack.c.l.b16 %v525
        %v1382 = vunpack.c.h.b16 %v525
        %v1383 = vunpack.c.l.b16 %v526
        %v1384 = vunpack.c.h.b16 %v526
        %v1385 = vunpack.c.l.b16 %v527
        %v1386 = vunpack.c.h.b16 %v527
        %v1387 = vunpack.c.l.b16 %v528
        %v1388 = vunpack.c.h.b16 %v528
        %v1389 = vunpack.c.l.b16 %v529
        %v1390 = vunpack.c.h.b16 %v529
        %v1391 = vunpack.c.l.b16 %v530
        %v1392 = vunpack.c.h.b16 %v530
        %v1393 = vunpack.c.l.b16 %v531
        %v1394 = vunpack.c.h.b16 %v531
        %v1395 = vunpack.c.l.b16 %v532
        %v1396 = vunpack.c.h.b16 %v532
        %v1397 = vunpack.c.l.b16 %v533
        %v1398 = vunpack.c.h.b16 %v533
        %v1399 = vunpack.c.l.b16 %v534
        %v1400 = vunpack.c.h.b16 %v534
        %v1401 = vunpack.c.l.b16 %v535
        %v1402 = vunpack.c.h.b16 %v535
        %v1403 = vunpack.c.l.b16 %v536
        %v1404 = vunpack.c.h.b16 %v536
        %v1405 = vunpack.c.l.b16 %v537
        %v1406 = vunpack.c.h.b16 %v537
        %v1407 = vunpack.c.l.b16 %v538
        %v1408 = vunpack.c.h.b16 %v538
        %v1409 = vunpack.c.l.b16 %v539
        %v1410 = vunpack.c.h.b16 %v539
        %v1411 = vunpack.c.l.b16 %v540
        %v1412 = vunpack.c.h.b16 %v540
        %v1413 = vunpack.c.l.b16 %v541
        %v1414 = vunpack.c.h.b16 %v541
        %v1415 = vunpack.c.l.b16 %v542
        %v1416 = vunpack.c.h.b16 %v542
        %v1417 = vunpack.c.l.b16 %v543
        %v1418 = vunpack.c.h.b16 %v543
        %v1419 = vunpack.c.l.b16 %v544
        %v1420 = vunpack.c.h.b16 %v544
        %v1421 = vunpack.c.l.b16 %v545
        %v1422 = vunpack.c.h.b16 %v545
        %v1423 = vunpack.c.l.b16 %v546
        %v1424 = vunpack.c.h.b16 %v546
        %v1425 = vunpack.c.l.b16 %v547
        %v1426 = vunpack.c.h.b16 %v547
        %v1427 = vunpack.c.l.b16 %v548
        %v1428 = vunpack.c.h.b16 %v548
        %v1429 = vunpack.c.l.b16 %v549
        %v1430 = vunpack.c.h.b16 %v549
        %v1431 = vunpack.c.l.b16 %v550
        %v1432 = vunpack.c.h.b16 %v550
        %v1433 = vunpack.c.l.b16 %v551
        %v1434 = vunpack.c.h.b16 %v551
        %v1435 = vunpack.c.l.b16 %v552
        %v1436 = vunpack.c.h.b16 %v552
        %v1437 = vunpack.c.l.b16 %v553
        %v1438 = vunpack.c.h.b16 %v553
        %v1439 = vunpack.c.l.b16 %v554
        %v1440 = vunpack.c.h.b16 %v554
        %v1441 = vunpack.c.l.b16 %v555
        %v1442 = vunpack.c.h.b16 %v555
        %v1443 = vunpack.c.l.b16 %v556
        %v1444 = vunpack.c.h.b16 %v556
        %v1445 = vunpack.c.l.b16 %v557
        %v1446 = vunpack.c.h.b16 %v557
        %v1447 = vunpack.c.l.b16 %v558
        %v1448 = vunpack.c.h.b16 %v558
        %v1449 = vunpack.c.l.b16 %v559
        %v1450 = vunpack.c.h.b16 %v559
        %v1451 = vunpack.c.l.b16 %v560
        %v1452 = vunpack.c.h.b16 %v560
        %v1453 = vunpack.c.l.b16 %v561
        %v1454 = vunpack.c.h.b16 %v561
        %v1455 = vunpack.c.l.b16 %v562
        %v1456 = vunpack.c.h.b16 %v562
        %v1457 = vunpack.c.l.b16 %v563
        %v1458 = vunpack.c.h.b16 %v563
        %v1459 = vunpack.c.l.b16 %v564
        %v1460 = vunpack.c.h.b16 %v564
        %v1461 = vunpack.c.l.b16 %v565
        %v1462 = vunpack.c.h.b16 %v565
        %v1463 = vunpack.c.l.b16 %v566
        %v1464 = vunpack.c.h.b16 %v566
        %v1465 = vunpack.c.l.b16 %v567
        %v1466 = vunpack.c.h.b16 %v567
        %v1467 = vunpack.c.l.b16 %v568
        %v1468 = vunpack.c.h.b16 %v568
        %v1469 = vunpack.c.l.b16 %v569
        %v1470 = vunpack.c.h.b16 %v569
        %v1471 = vunpack.c.l.b16 %v570
        %v1472 = vunpack.c.h.b16 %v570
        %v1473 = vunpack.c.l.b16 %v571
        %v1474 = vunpack.c.h.b16 %v571
        %v1475 = vpack.c.b16 %v901, %v899
        %v1476 = vpack.c.b16 %v902, %v900
        %v1477 = vpack.c.b16 %v905, %v903
        %v1478 = vpack.c.b16 %v906, %v904
        %v1479 = vpack.c.b16 %v909, %v907
        %v1480 = vpack.c.b16 %v910, %v908
        %v1481 = vpack.c.b16 %v913, %v911
        %v1482 = vpack.c.b16 %v914, %v912
        %v1483 = vpack.c.b16 %v917, %v915
        %v1484 = vpack.c.b16 %v918, %v916
        %v1485 = vpack.c.b16 %v921, %v919
        %v1486 = vpack.c.b16 %v922, %v920
        %v1487 = vpack.c.b16 %v925, %v923
        %v1488 = vpack.c.b16 %v926, %v924
        %v1489 = vpack.c.b16 %v929, %v927
        %v1490 = vpack.c.b16 %v930, %v928
        %v1491 = vpack.c.b16 %v933, %v931
        %v1492 = vpack.c.b16 %v934, %v932
        %v1493 = vpack.c.b16 %v937, %v935
        %v1494 = vpack.c.b16 %v938, %v936
        %v1495 = vpack.c.b16 %v941, %v939
        %v1496 = vpack.c.b16 %v942, %v940
        %v1497 = vpack.c.b16 %v945, %v943
        %v1498 = vpack.c.b16 %v946, %v944
        %v1499 = vpack.c.b16 %v949, %v947
        %v1500 = vpack.c.b16 %v950, %v948
        %v1501 = vpack.c.b16 %v953, %v951
        %v1502 = vpack.c.b16 %v954, %v952
        %v1503 = vpack.c.b16 %v957, %v955
        %v1504 = vpack.c.b16 %v958, %v956
        %v1505 = vpack.c.b16 %v961, %v959
        %v1506 = vpack.c.b16 %v962, %v960
        %v1507 = vpack.c.b16 %v965, %v963
        %v1508 = vpack.c.b16 %v966, %v964
        %v1509 = vpack.c.b16 %v969, %v967
        %v1510 = vpack.c.b16 %v970, %v968
        %v1511 = vpack.c.b16 %v973, %v971
        %v1512 = vpack.c.b16 %v974, %v972
        %v1513 = vpack.c.b16 %v977, %v975
        %v1514 = vpack.c.b16 %v978, %v976
        %v1515 = vpack.c.b16 %v981, %v979
        %v1516 = vpack.c.b16 %v982, %v980
        %v1517 = vpack.c.b16 %v985, %v983
        %v1518 = vpack.c.b16 %v986, %v984
        %v1519 = vpack.c.b16 %v989, %v987
        %v1520 = vpack.c.b16 %v990, %v988
        %v1521 = vpack.c.b16 %v993, %v991
        %v1522 = vpack.c.b16 %v994, %v992
        %v1523 = vpack.c.b16 %v997, %v995
        %v1524 = vpack.c.b16 %v998, %v996
        %v1525 = vpack.c.b16 %v1001, %v999
        %v1526 = vpack.c.b16 %v1002, %v1000
        %v1527 = vpack.c.b16 %v1005, %v1003
        %v1528 = vpack.c.b16 %v1006, %v1004
        %v1529 = vpack.c.b16 %v1009, %v1007
        %v1530 = vpack.c.b16 %v1010, %v1008
        %v1531 = vpack.c.b16 %v1013, %v1011
        %v1532 = vpack.c.b16 %v1014, %v1012
        %v1533 = vpack.c.b16 %v1017, %v1015
        %v1534 = vpack.c.b16 %v1018, %v1016
        %v1535 = vpack.c.b16 %v1021, %v1019
        %v1536 = vpack.c.b16 %v1022, %v1020
        %v1537 = vpack.c.b16 %v1025, %v1023
        %v1538 = vpack.c.b16 %v1026, %v1024
        %v1539 = vpack.c.b16 %v1029, %v1027
        %v1540 = vpack.c.b16 %v1030, %v1028
        %v1541 = vpack.c.b16 %v1033, %v1031
        %v1542 = vpack.c.b16 %v1034, %v1032
        %v1543 = vpack.c.b16 %v1037, %v1035
        %v1544 = vpack.c.b16 %v1038, %v1036
        %v1545 = vpack.c.b16 %v1041, %v1039
        %v1546 = vpack.c.b16 %v1042, %v1040
        %v1547 = vpack.c.b16 %v1045, %v1043
        %v1548 = vpack.c.b16 %v1046, %v1044
        %v1549 = vpack.c.b16 %v1049, %v1047
        %v1550 = vpack.c.b16 %v1050, %v1048
        %v1551 = vpack.c.b16 %v1053, %v1051
        %v1552 = vpack.c.b16 %v1054, %v1052
        %v1553 = vpack.c.b16 %v1057, %v1055
        %v1554 = vpack.c.b16 %v1058, %v1056
        %v1555 = vpack.c.b16 %v1061, %v1059
        %v1556 = vpack.c.b16 %v1062, %v1060
        %v1557 = vpack.c.b16 %v1065, %v1063
        %v1558 = vpack.c.b16 %v1066, %v1064
        %v1559 = vpack.c.b16 %v1069, %v1067
        %v1560 = vpack.c.b16 %v1070, %v1068
        %v1561 = vpack.c.b16 %v1073, %v1071
        %v1562 = vpack.c.b16 %v1074, %v1072
        %v1563 = vpack.c.b16 %v1077, %v1075
        %v1564 = vpack.c.b16 %v1078, %v1076
        %v1565 = vpack.c.b16 %v1081, %v1079
        %v1566 = vpack.c.b16 %v1082, %v1080
        %v1567 = vpack.c.b16 %v1085, %v1083
        %v1568 = vpack.c.b16 %v1086, %v1084
        %v1569 = vpack.c.b16 %v1089, %v1087
        %v1570 = vpack.c.b16 %v1090, %v1088
        %v1571 = vpack.c.b16 %v1093, %v1091
        %v1572 = vpack.c.b16 %v1094, %v1092
        %v1573 = vpack.c.b16 %v1097, %v1095
        %v1574 = vpack.c.b16 %v1098, %v1096
        %v1575 = vpack.c.b16 %v1101, %v1099
        %v1576 = vpack.c.b16 %v1102, %v1100
        %v1577 = vpack.c.b16 %v1105, %v1103
        %v1578 = vpack.c.b16 %v1106, %v1104
        %v1579 = vpack.c.b16 %v1109, %v1107
        %v1580 = vpack.c.b16 %v1110, %v1108
        %v1581 = vpack.c.b16 %v1113, %v1111
        %v1582 = vpack.c.b16 %v1114, %v1112
        %v1583 = vpack.c.b16 %v1117, %v1115
        %v1584 = vpack.c.b16 %v1118, %v1116
        %v1585 = vpack.c.b16 %v1121, %v1119
        %v1586 = vpack.c.b16 %v1122, %v1120
        %v1587 = vpack.c.b16 %v1125, %v1123
        %v1588 = vpack.c.b16 %v1126, %v1124
        %v1589 = vpack.c.b16 %v1129, %v1127
        %v1590 = vpack.c.b16 %v1130, %v1128
        %v1591 = vpack.c.b16 %v1133, %v1131
        %v1592 = vpack.c.b16 %v1134, %v1132
        %v1593 = vpack.c.b16 %v1137, %v1135
        %v1594 = vpack.c.b16 %v1138, %v1136
        %v1595 = vpack.c.b16 %v1141, %v1139
        %v1596 = vpack.c.b16 %v1142, %v1140
        %v1597 = vpack.c.b16 %v1145, %v1143
        %v1598 = vpack.c.b16 %v1146, %v1144
        %v1599 = vpack.c.b16 %v1149, %v1147
        %v1600 = vpack.c.b16 %v1150, %v1148
        %v1601 = vpack.c.b16 %v1153, %v1151
        %v1602 = vpack.c.b16 %v1154, %v1152
        %v1603 = vpack.c.b16 %v1157, %v1155
        %v1604 = vpack.c.b16 %v1158, %v1156
        %v1605 = vpack.c.b16 %v1161, %v1159
        %v1606 = vpack.c.b16 %v1162, %v1160
        %v1607 = vpack.c.b16 %v1165, %v1163
        %v1608 = vpack.c.b16 %v1166, %v1164
        %v1609 = vpack.c.b16 %v1169, %v1167
        %v1610 = vpack.c.b16 %v1170, %v1168
        %v1611 = vpack.c.b16 %v1173, %v1171
        %v1612 = vpack.c.b16 %v1174, %v1172
        %v1613 = vpack.c.b16 %v1177, %v1175
        %v1614 = vpack.c.b16 %v1178, %v1176
        %v1615 = vpack.c.b16 %v1181, %v1179
        %v1616 = vpack.c.b16 %v1182, %v1180
        %v1617 = vpack.c.b16 %v1185, %v1183
        %v1618 = vpack.c.b16 %v1186, %v1184
        %v1619 = vpack.c.b16 %v1189, %v1187
        %v1620 = vpack.c.b16 %v1190, %v1188
        %v1621 = vpack.c.b16 %v1193, %v1191
        %v1622 = vpack.c.b16 %v1194, %v1192
        %v1623 = vpack.c.b16 %v1197, %v1195
        %v1624 = vpack.c.b16 %v1198, %v1196
        %v1625 = vpack.c.b16 %v1201, %v1199
        %v1626 = vpack.c.b16 %v1202, %v1200
        %v1627 = vpack.c.b16 %v1205, %v1203
        %v1628 = vpack.c.b16 %v1206, %v1204
        %v1629 = vpack.c.b16 %v1209, %v1207
        %v1630 = vpack.c.b16 %v1210, %v1208
        %v1631 = vpack.c.b16 %v1213, %v1211
        %v1632 = vpack.c.b16 %v1214, %v1212
        %v1633 = vpack.c.b16 %v1217, %v1215
        %v1634 = vpack.c.b16 %v1218, %v1216
        %v1635 = vpack.c.b16 %v1221, %v1219
        %v1636 = vpack.c.b16 %v1222, %v1220
        %v1637 = vpack.c.b16 %v1225, %v1223
        %v1638 = vpack.c.b16 %v1226, %v1224
        %v1639 = vpack.c.b16 %v1229, %v1227
        %v1640 = vpack.c.b16 %v1230, %v1228
        %v1641 = vpack.c.b16 %v1233, %v1231
        %v1642 = vpack.c.b16 %v1234, %v1232
        %v1643 = vpack.c.b16 %v1237, %v1235
        %v1644 = vpack.c.b16 %v1238, %v1236
        %v1645 = vpack.c.b16 %v1241, %v1239
        %v1646 = vpack.c.b16 %v1242, %v1240
        %v1647 = vpack.c.b16 %v1245, %v1243
        %v1648 = vpack.c.b16 %v1246, %v1244
        %v1649 = vpack.c.b16 %v1249, %v1247
        %v1650 = vpack.c.b16 %v1250, %v1248
        %v1651 = vpack.c.b16 %v1253, %v1251
        %v1652 = vpack.c.b16 %v1254, %v1252
        %v1653 = vpack.c.b16 %v1257, %v1255
        %v1654 = vpack.c.b16 %v1258, %v1256
        %v1655 = vpack.c.b16 %v1261, %v1259
        %v1656 = vpack.c.b16 %v1262, %v1260
        %v1657 = vpack.c.b16 %v1265, %v1263
        %v1658 = vpack.c.b16 %v1266, %v1264
        %v1659 = vpack.c.b16 %v1269, %v1267
        %v1660 = vpack.c.b16 %v1270, %v1268
        %v1661 = vpack.c.b16 %v1273, %v1271
        %v1662 = vpack.c.b16 %v1274, %v1272
        %v1663 = vpack.c.b16 %v1277, %v1275
        %v1664 = vpack.c.b16 %v1278, %v1276
        %v1665 = vpack.c.b16 %v1281, %v1279
        %v1666 = vpack.c.b16 %v1282, %v1280
        %v1667 = vpack.c.b16 %v1285, %v1283
        %v1668 = vpack.c.b16 %v1286, %v1284
        %v1669 = vpack.c.b16 %v1289, %v1287
        %v1670 = vpack.c.b16 %v1290, %v1288
        %v1671 = vpack.c.b16 %v1293, %v1291
        %v1672 = vpack.c.b16 %v1294, %v1292
        %v1673 = vpack.c.b16 %v1297, %v1295
        %v1674 = vpack.c.b16 %v1298, %v1296
        %v1675 = vpack.c.b16 %v1301, %v1299
        %v1676 = vpack.c.b16 %v1302, %v1300
        %v1677 = vpack.c.b16 %v1305, %v1303
        %v1678 = vpack.c.b16 %v1306, %v1304
        %v1679 = vpack.c.b16 %v1309, %v1307
        %v1680 = vpack.c.b16 %v1310, %v1308
        %v1681 = vpack.c.b16 %v1313, %v1311
        %v1682 = vpack.c.b16 %v1314, %v1312
        %v1683 = vpack.c.b16 %v1317, %v1315
        %v1684 = vpack.c.b16 %v1318, %v1316
        %v1685 = vpack.c.b16 %v1321, %v1319
        %v1686 = vpack.c.b16 %v1322, %v1320
        %v1687 = vpack.c.b16 %v1325, %v1323
        %v1688 = vpack.c.b16 %v1326, %v1324
        %v1689 = vpack.c.b16 %v1329, %v1327
        %v1690 = vpack.c.b16 %v1330, %v1328
        %v1691 = vpack.c.b16 %v1333, %v1331
        %v1692 = vpack.c.b16 %v1334, %v1332
        %v1693 = vpack.c.b16 %v1337, %v1335
        %v1694 = vpack.c.b16 %v1338, %v1336
        %v1695 = vpack.c.b16 %v1341, %v1339
        %v1696 = vpack.c.b16 %v1342, %v1340
        %v1697 = vpack.c.b16 %v1345, %v1343
        %v1698 = vpack.c.b16 %v1346, %v1344
        %v1699 = vpack.c.b16 %v1349, %v1347
        %v1700 = vpack.c.b16 %v1350, %v1348
        %v1701 = vpack.c.b16 %v1353, %v1351
        %v1702 = vpack.c.b16 %v1354, %v1352
        %v1703 = vpack.c.b16 %v1357, %v1355
        %v1704 = vpack.c.b16 %v1358, %v1356
        %v1705 = vpack.c.b16 %v1361, %v1359
        %v1706 = vpack.c.b16 %v1362, %v1360
        %v1707 = vpack.c.b16 %v1365, %v1363
        %v1708 = vpack.c.b16 %v1366, %v1364
        %v1709 = vpack.c.b16 %v1369, %v1367
        %v1710 = vpack.c.b16 %v1370, %v1368
        %v1711 = vpack.c.b16 %v1373, %v1371
        %v1712 = vpack.c.b16 %v1374, %v1372
        %v1713 = vpack.c.b16 %v1377, %v1375
        %v1714 = vpack.c.b16 %v1378, %v1376
        %v1715 = vpack.c.b16 %v1381, %v1379
        %v1716 = vpack.c.b16 %v1382, %v1380
        %v1717 = vpack.c.b16 %v1385, %v1383
        %v1718 = vpack.c.b16 %v1386, %v1384
        %v1719 = vpack.c.b16 %v1389, %v1387
        %v1720 = vpack.c.b16 %v1390, %v1388
        %v1721 = vpack.c.b16 %v1393, %v1391
        %v1722 = vpack.c.b16 %v1394, %v1392
        %v1723 = vpack.c.b16 %v1397, %v1395
        %v1724 = vpack.c.b16 %v1398, %v1396
        %v1725 = vpack.c.b16 %v1401, %v1399
        %v1726 = vpack.c.b16 %v1402, %v1400
        %v1727 = vpack.c.b16 %v1405, %v1403
        %v1728 = vpack.c.b16 %v1406, %v1404
        %v1729 = vpack.c.b16 %v1409, %v1407
        %v1730 = vpack.c.b16 %v1410, %v1408
        %v1731 = vpack.c.b16 %v1413, %v1411
        %v1732 = vpack.c.b16 %v1414, %v1412
        %v1733 = vpack.c.b16 %v1417, %v1415
        %v1734 = vpack.c.b16 %v1418, %v1416
        %v1735 = vpack.c.b16 %v1421, %v1419
        %v1736 = vpack.c.b16 %v1422, %v1420
        %v1737 = vpack.c.b16 %v1425, %v1423
        %v1738 = vpack.c.b16 %v1426, %v1424
        %v1739 = vpack.c.b16 %v1429, %v1427
        %v1740 = vpack.c.b16 %v1430, %v1428
        %v1741 = vpack.c.b16 %v1433, %v1431
        %v1742 = vpack.c.b16 %v1434, %v1432
        %v1743 = vpack.c.b16 %v1437, %v1435
        %v1744 = vpack.c.b16 %v1438, %v1436
        %v1745 = vpack.c.b16 %v1441, %v1439
        %v1746 = vpack.c.b16 %v1442, %v1440
        %v1747 = vpack.c.b16 %v1445, %v1443
        %v1748 = vpack.c.b16 %v1446, %v1444
        %v1749 = vpack.c.b16 %v1449, %v1447
        %v1750 = vpack.c.b16 %v1450, %v1448
        %v1751 = vpack.c.b16 %v1453, %v1451
        %v1752 = vpack.c.b16 %v1454, %v1452
        %v1753 = vpack.c.b16 %v1457, %v1455
        %v1754 = vpack.c.b16 %v1458, %v1456
        %v1755 = vpack.c.b16 %v1461, %v1459
        %v1756 = vpack.c.b16 %v1462, %v1460
        %v1757 = vpack.c.b16 %v1465, %v1463
        %v1758 = vpack.c.b16 %v1466, %v1464
        %v1759 = vpack.c.b16 %v1469, %v1467
        %v1760 = vpack.c.b16 %v1470, %v1468
        %v1761 = vpack.c.b16 %v1473, %v1471
        %v1762 = vpack.c.b16 %v1474, %v1472
        %v2083 = vunpack.c.l.b16 %v572
        %v2084 = vunpack.c.l.b16 %v573
        %v2085 = vunpack.c.l.b16 %v574
        %v2086 = vunpack.c.l.b16 %v575
        %v2087 = vunpack.c.l.b16 %v576
        %v2088 = vunpack.c.l.b16 %v577
        %v2089 = vunpack.c.l.b16 %v578
        %v2090 = vunpack.c.l.b16 %v579
        %v2091 = vunpack.c.l.b16 %v580
        %v2092 = vunpack.c.l.b16 %v581
        %v2093 = vunpack.c.l.b16 %v582
        %v2094 = vunpack.c.l.b16 %v583
        %v2095 = vunpack.c.l.b16 %v584
        %v2096 = vunpack.c.l.b16 %v585
        %v2097 = vunpack.c.l.b16 %v586
        %v2098 = vunpack.c.l.b16 %v587
        %v2099 = vunpack.c.l.b16 %v588
        %v2100 = vunpack.c.l.b16 %v589
        %v2101 = vunpack.c.l.b16 %v590
        %v2102 = vunpack.c.l.b16 %v591
        %v2103 = vunpack.c.l.b16 %v592
        %v2104 = vunpack.c.l.b16 %v593
        %v2105 = vunpack.c.l.b16 %v594
        %v2106 = vunpack.c.l.b16 %v595
        %v2107 = vunpack.c.l.b16 %v596
        %v2108 = vunpack.c.l.b16 %v597
        %v2109 = vunpack.c.l.b16 %v598
        %v2110 = vunpack.c.l.b16 %v599
        %v2111 = vunpack.c.l.b16 %v600
        %v2112 = vunpack.c.l.b16 %v601
        %v2113 = vunpack.c.l.b16 %v602
        %v2114 = vunpack.c.l.b16 %v603
        %v2115 = vpack.c.b16 %v2084, %v2083
        %v2116 = vpack.c.b16 %v2086, %v2085
        %v2117 = vpack.c.b16 %v2088, %v2087
        %v2118 = vpack.c.b16 %v2090, %v2089
        %v2119 = vpack.c.b16 %v2092, %v2091
        %v2120 = vpack.c.b16 %v2094, %v2093
        %v2121 = vpack.c.b16 %v2096, %v2095
        %v2122 = vpack.c.b16 %v2098, %v2097
        %v2123 = vpack.c.b16 %v2100, %v2099
        %v2124 = vpack.c.b16 %v2102, %v2101
        %v2125 = vpack.c.b16 %v2104, %v2103
        %v2126 = vpack.c.b16 %v2106, %v2105
        %v2127 = vpack.c.b16 %v2108, %v2107
        %v2128 = vpack.c.b16 %v2110, %v2109
        %v2129 = vpack.c.b16 %v2112, %v2111
        %v2130 = vpack.c.b16 %v2114, %v2113
        %2147 = vmatprep.subr.bf16.mxu0 0
        %2148 = vmatpush1.bf16.msra.mxu0 %v2115
        %2149 = vmatprep.subr.bf16.mxu0 0
        %2150 = vmatpush1.bf16.msra.mxu0 %v2116
        %2151 = vmatprep.subr.bf16.mxu0 0
        %2152 = vmatpush1.bf16.msra.mxu0 %v2117
        %2153 = vmatprep.subr.bf16.mxu0 0
        %2154 = vmatpush1.bf16.msra.mxu0 %v2118
        %2155 = vmatprep.subr.bf16.mxu0 0
        %2156 = vmatpush1.bf16.msra.mxu0 %v2119
        %2157 = vmatprep.subr.bf16.mxu0 0
        %2158 = vmatpush1.bf16.msra.mxu0 %v2120
        %2159 = vmatprep.subr.bf16.mxu0 0
        %2160 = vmatpush1.bf16.msra.mxu0 %v2121
        %2161 = vmatprep.subr.bf16.mxu0 0
        %2162 = vmatpush1.bf16.msra.mxu0 %v2122
        %2163 = vmatprep.subr.bf16.mxu0 0
        %2164 = vmatpush1.bf16.msra.mxu0 %v2123
        %2165 = vmatprep.subr.bf16.mxu0 0
        %2166 = vmatpush1.bf16.msra.mxu0 %v2124
        %2167 = vmatprep.subr.bf16.mxu0 0
        %2168 = vmatpush1.bf16.msra.mxu0 %v2125
        %2169 = vmatprep.subr.bf16.mxu0 0
        %2170 = vmatpush1.bf16.msra.mxu0 %v2126
        %2171 = vmatprep.subr.bf16.mxu0 0
        %2172 = vmatpush1.bf16.msra.mxu0 %v2127
        %2173 = vmatprep.subr.bf16.mxu0 0
        %2174 = vmatpush1.bf16.msra.mxu0 %v2128
        %2175 = vmatprep.subr.bf16.mxu0 0
        %2176 = vmatpush1.bf16.msra.mxu0 %v2129
        %2177 = vmatprep.subr.bf16.mxu0 0
        %2178 = vmatpush1.bf16.msra.mxu0 %v2130
        %2179 = vmatprep.mubr.bf16.mxu0 %v1476
        %2180 = vmatmul.mubr.bf16.gmra.mrb[0].mxu0 %v1475
        %v2181 = vpop.f32.mrb[0].mxu0
        %v2182 = vadd.f32 %v609, %v2181
        %v2183 = vpop.f32.mrb[0].mxu0
        %v2184 = vpop.f32.mrb[0].mxu0
        %v2185 = vadd.f32 %v609, %v2184
        %v2186 = vpop.f32.mrb[0].mxu0
        %2187 = vmatprep.mubr.bf16.mxu0 %v1478
        %2188 = vmatmul.mubr.bf16.gmra.mrb[0].mxu0 %v1477
        %v2189 = vpop.f32.mrb[0].mxu0
        %v2190 = vadd.f32 %v609, %v2189
        %v2191 = vpop.f32.mrb[0].mxu0
        %v2192 = vpop.f32.mrb[0].mxu0
        %v2193 = vadd.f32 %v609, %v2192
        %v2194 = vpop.f32.mrb[0].mxu0
        %2195 = vmatprep.mubr.bf16.mxu0 %v1480
        %2196 = vmatmul.mubr.bf16.gmra.mrb[0].mxu0 %v1479
        %v2197 = vpop.f32.mrb[0].mxu0
        %v2198 = vadd.f32 %v609, %v2197
        %v2199 = vpop.f32.mrb[0].mxu0
        %v2200 = vpop.f32.mrb[0].mxu0
        %v2201 = vadd.f32 %v609, %v2200
        %v2202 = vpop.f32.mrb[0].mxu0
        %2203 = vmatprep.mubr.bf16.mxu0 %v1482
        %2204 = vmatmul.mubr.bf16.gmra.mrb[0].mxu0 %v1481
        %v2205 = vpop.f32.mrb[0].mxu0
        %v2206 = vadd.f32 %v609, %v2205
        %v2207 = vpop.f32.mrb[0].mxu0
        %v2208 = vpop.f32.mrb[0].mxu0
        %v2209 = vadd.f32 %v609, %v2208
        %v2210 = vpop.f32.mrb[0].mxu0
        %2211 = vmatprep.mubr.bf16.mxu0 %v1484
        %2212 = vmatmul.mubr.bf16.gmra.mrb[0].mxu0 %v1483
        %v2213 = vpop.f32.mrb[0].mxu0
        %v2214 = vadd.f32 %v609, %v2213
        %v2215 = vpop.f32.mrb[0].mxu0
        %v2216 = vpop.f32.mrb[0].mxu0
        %v2217 = vadd.f32 %v609, %v2216
        %v2218 = vpop.f32.mrb[0].mxu0
        %2219 = vmatprep.mubr.bf16.mxu0 %v1486
        %2220 = vmatmul.mubr.bf16.gmra.mrb[0].mxu0 %v1485
        %v2221 = vpop.f32.mrb[0].mxu0
        %v2222 = vadd.f32 %v609, %v2221
        %v2223 = vpop.f32.mrb[0].mxu0
        %v2224 = vpop.f32.mrb[0].mxu0
        %v2225 = vadd.f32 %v609, %v2224
        %v2226 = vpop.f32.mrb[0].mxu0
        %2227 = vmatprep.mubr.bf16.mxu0 %v1488
        %2228 = vmatmul.mubr.bf16.gmra.mrb[0].mxu0 %v1487
        %v2229 = vpop.f32.mrb[0].mxu0
        %v2230 = vadd.f32 %v609, %v2229
        %v2231 = vpop.f32.mrb[0].mxu0
        %v2232 = vpop.f32.mrb[0].mxu0
        %v2233 = vadd.f32 %v609, %v2232
        %v2234 = vpop.f32.mrb[0].mxu0
        %2235 = vmatprep.mubr.bf16.mxu0 %v1490
        %2236 = vmatmul.mubr.bf16.gmra.mrb[0].mxu0 %v1489
        %v2237 = vpop.f32.mrb[0].mxu0
        %v2238 = vadd.f32 %v609, %v2237
        %v2239 = vpop.f32.mrb[0].mxu0
        %v2240 = vpop.f32.mrb[0].mxu0
        %v2241 = vadd.f32 %v609, %v2240
        %v2242 = vpop.f32.mrb[0].mxu0
        %2243 = vmatprep.mubr.bf16.mxu0 %v1492
        %2244 = vmatmul.mubr.bf16.gmra.mrb[0].mxu0 %v1491
        %v2245 = vpop.f32.mrb[0].mxu0
        %v2246 = vadd.f32 %v609, %v2245
        %v2247 = vpop.f32.mrb[0].mxu0
        %v2248 = vpop.f32.mrb[0].mxu0
        %v2249 = vadd.f32 %v609, %v2248
        %v2250 = vpop.f32.mrb[0].mxu0
        %2251 = vmatprep.mubr.bf16.mxu0 %v1494
        %2252 = vmatmul.mubr.bf16.gmra.mrb[0].mxu0 %v1493
        %v2253 = vpop.f32.mrb[0].mxu0
        %v2254 = vadd.f32 %v609, %v2253
        %v2255 = vpop.f32.mrb[0].mxu0
        %v2256 = vpop.f32.mrb[0].mxu0
        %v2257 = vadd.f32 %v609, %v2256
        %v2258 = vpop.f32.mrb[0].mxu0
        %2259 = vmatprep.mubr.bf16.mxu0 %v1496
        %2260 = vmatmul.mubr.bf16.gmra.mrb[0].mxu0 %v1495
        %v2261 = vpop.f32.mrb[0].mxu0
        %v2262 = vadd.f32 %v609, %v2261
        %v2263 = vpop.f32.mrb[0].mxu0
        %v2264 = vpop.f32.mrb[0].mxu0
        %v2265 = vadd.f32 %v609, %v2264
        %v2266 = vpop.f32.mrb[0].mxu0
        %2267 = vmatprep.mubr.bf16.mxu0 %v1498
        %2268 = vmatmul.mubr.bf16.gmra.mrb[0].mxu0 %v1497
        %v2269 = vpop.f32.mrb[0].mxu0
        %v2270 = vadd.f32 %v609, %v2269
        %v2271 = vpop.f32.mrb[0].mxu0
        %v2272 = vpop.f32.mrb[0].mxu0
        %v2273 = vadd.f32 %v609, %v2272
        %v2274 = vpop.f32.mrb[0].mxu0
        %2275 = vmatprep.mubr.bf16.mxu0 %v1500
        %2276 = vmatmul.mubr.bf16.gmra.mrb[0].mxu0 %v1499
        %v2277 = vpop.f32.mrb[0].mxu0
        %v2278 = vadd.f32 %v609, %v2277
        %v2279 = vpop.f32.mrb[0].mxu0
        %v2280 = vpop.f32.mrb[0].mxu0
        %v2281 = vadd.f32 %v609, %v2280
        %v2282 = vpop.f32.mrb[0].mxu0
        %2283 = vmatprep.mubr.bf16.mxu0 %v1502
        %2284 = vmatmul.mubr.bf16.gmra.mrb[0].mxu0 %v1501
        %v2285 = vpop.f32.mrb[0].mxu0
        %v2286 = vadd.f32 %v609, %v2285
        %v2287 = vpop.f32.mrb[0].mxu0
        %v2288 = vpop.f32.mrb[0].mxu0
        %v2289 = vadd.f32 %v609, %v2288
        %v2290 = vpop.f32.mrb[0].mxu0
        %2291 = vmatprep.mubr.bf16.mxu0 %v1504
        %2292 = vmatmul.mubr.bf16.gmra.mrb[0].mxu0 %v1503
        %v2293 = vpop.f32.mrb[0].mxu0
        %v2294 = vadd.f32 %v609, %v2293
        %v2295 = vpop.f32.mrb[0].mxu0
        %v2296 = vpop.f32.mrb[0].mxu0
        %v2297 = vadd.f32 %v609, %v2296
        %v2298 = vpop.f32.mrb[0].mxu0
        %2299 = vmatprep.mubr.bf16.mxu0 %v1506
        %2300 = vmatmul.mubr.bf16.gmra.mrb[0].mxu0 %v1505
        %v2301 = vpop.f32.mrb[0].mxu0
        %v2302 = vadd.f32 %v609, %v2301
        %v2303 = vpop.f32.mrb[0].mxu0
        %v2304 = vpop.f32.mrb[0].mxu0
        %v2305 = vadd.f32 %v609, %v2304
        %v2306 = vpop.f32.mrb[0].mxu0
        %2307 = vmatprep.mubr.bf16.mxu0 %v1508
        %2308 = vmatmul.mubr.bf16.gmra.mrb[0].mxu0 %v1507
        %v2309 = vpop.f32.mrb[0].mxu0
        %v2310 = vadd.f32 %v609, %v2309
        %v2311 = vpop.f32.mrb[0].mxu0
        %v2312 = vpop.f32.mrb[0].mxu0
        %v2313 = vadd.f32 %v609, %v2312
        %v2314 = vpop.f32.mrb[0].mxu0
        %2315 = vmatprep.mubr.bf16.mxu0 %v1510
        %2316 = vmatmul.mubr.bf16.gmra.mrb[0].mxu0 %v1509
        %v2317 = vpop.f32.mrb[0].mxu0
        %v2318 = vadd.f32 %v609, %v2317
        %v2319 = vpop.f32.mrb[0].mxu0
        %v2320 = vpop.f32.mrb[0].mxu0
        %v2321 = vadd.f32 %v609, %v2320
        %v2322 = vpop.f32.mrb[0].mxu0
        %2323 = vmatprep.mubr.bf16.mxu0 %v1512
        %2324 = vmatmul.mubr.bf16.gmra.mrb[0].mxu0 %v1511
        %v2325 = vpop.f32.mrb[0].mxu0
        %v2326 = vadd.f32 %v609, %v2325
        %v2327 = vpop.f32.mrb[0].mxu0
        %v2328 = vpop.f32.mrb[0].mxu0
        %v2329 = vadd.f32 %v609, %v2328
        %v2330 = vpop.f32.mrb[0].mxu0
        %2331 = vmatprep.mubr.bf16.mxu0 %v1514
        %2332 = vmatmul.mubr.bf16.gmra.mrb[0].mxu0 %v1513
        %v2333 = vpop.f32.mrb[0].mxu0
        %v2334 = vadd.f32 %v609, %v2333
        %v2335 = vpop.f32.mrb[0].mxu0
        %v2336 = vpop.f32.mrb[0].mxu0
        %v2337 = vadd.f32 %v609, %v2336
        %v2338 = vpop.f32.mrb[0].mxu0
        %2339 = vmatprep.mubr.bf16.mxu0 %v1516
        %2340 = vmatmul.mubr.bf16.gmra.mrb[0].mxu0 %v1515
        %v2341 = vpop.f32.mrb[0].mxu0
        %v2342 = vadd.f32 %v609, %v2341
        %v2343 = vpop.f32.mrb[0].mxu0
        %v2344 = vpop.f32.mrb[0].mxu0
        %v2345 = vadd.f32 %v609, %v2344
        %v2346 = vpop.f32.mrb[0].mxu0
        %2347 = vmatprep.mubr.bf16.mxu0 %v1518
        %2348 = vmatmul.mubr.bf16.gmra.mrb[0].mxu0 %v1517
        %v2349 = vpop.f32.mrb[0].mxu0
        %v2350 = vadd.f32 %v609, %v2349
        %v2351 = vpop.f32.mrb[0].mxu0
        %v2352 = vpop.f32.mrb[0].mxu0
        %v2353 = vadd.f32 %v609, %v2352
        %v2354 = vpop.f32.mrb[0].mxu0
        %2355 = vmatprep.mubr.bf16.mxu0 %v1520
        %2356 = vmatmul.mubr.bf16.gmra.mrb[0].mxu0 %v1519
        %v2357 = vpop.f32.mrb[0].mxu0
        %v2358 = vadd.f32 %v609, %v2357
        %v2359 = vpop.f32.mrb[0].mxu0
        %v2360 = vpop.f32.mrb[0].mxu0
        %v2361 = vadd.f32 %v609, %v2360
        %v2362 = vpop.f32.mrb[0].mxu0
        %2363 = vmatprep.mubr.bf16.mxu0 %v1522
        %2364 = vmatmul.mubr.bf16.gmra.mrb[0].mxu0 %v1521
        %v2365 = vpop.f32.mrb[0].mxu0
        %v2366 = vadd.f32 %v609, %v2365
        %v2367 = vpop.f32.mrb[0].mxu0
        %v2368 = vpop.f32.mrb[0].mxu0
        %v2369 = vadd.f32 %v609, %v2368
        %v2370 = vpop.f32.mrb[0].mxu0
        %2371 = vmatprep.mubr.bf16.mxu0 %v1524
        %2372 = vmatmul.mubr.bf16.gmra.mrb[0].mxu0 %v1523
        %v2373 = vpop.f32.mrb[0].mxu0
        %v2374 = vadd.f32 %v609, %v2373
        %v2375 = vpop.f32.mrb[0].mxu0
        %v2376 = vpop.f32.mrb[0].mxu0
        %v2377 = vadd.f32 %v609, %v2376
        %v2378 = vpop.f32.mrb[0].mxu0
        %2379 = vmatprep.mubr.bf16.mxu0 %v1526
        %2380 = vmatmul.mubr.bf16.gmra.mrb[0].mxu0 %v1525
        %v2381 = vpop.f32.mrb[0].mxu0
        %v2382 = vadd.f32 %v609, %v2381
        %v2383 = vpop.f32.mrb[0].mxu0
        %v2384 = vpop.f32.mrb[0].mxu0
        %v2385 = vadd.f32 %v609, %v2384
        %v2386 = vpop.f32.mrb[0].mxu0
        %2387 = vmatprep.mubr.bf16.mxu0 %v1528
        %2388 = vmatmul.mubr.bf16.gmra.mrb[0].mxu0 %v1527
        %v2389 = vpop.f32.mrb[0].mxu0
        %v2390 = vadd.f32 %v609, %v2389
        %v2391 = vpop.f32.mrb[0].mxu0
        %v2392 = vpop.f32.mrb[0].mxu0
        %v2393 = vadd.f32 %v609, %v2392
        %v2394 = vpop.f32.mrb[0].mxu0
        %2395 = vmatprep.mubr.bf16.mxu0 %v1530
        %2396 = vmatmul.mubr.bf16.gmra.mrb[0].mxu0 %v1529
        %v2397 = vpop.f32.mrb[0].mxu0
        %v2398 = vadd.f32 %v609, %v2397
        %v2399 = vpop.f32.mrb[0].mxu0
        %v2400 = vpop.f32.mrb[0].mxu0
        %v2401 = vadd.f32 %v609, %v2400
        %v2402 = vpop.f32.mrb[0].mxu0
        %2403 = vmatprep.mubr.bf16.mxu0 %v1532
        %2404 = vmatmul.mubr.bf16.gmra.mrb[0].mxu0 %v1531
        %v2405 = vpop.f32.mrb[0].mxu0
        %v2406 = vadd.f32 %v609, %v2405
        %v2407 = vpop.f32.mrb[0].mxu0
        %v2408 = vpop.f32.mrb[0].mxu0
        %v2409 = vadd.f32 %v609, %v2408
        %v2410 = vpop.f32.mrb[0].mxu0
        %2411 = vmatprep.mubr.bf16.mxu0 %v1534
        %2412 = vmatmul.mubr.bf16.gmra.mrb[0].mxu0 %v1533
        %v2413 = vpop.f32.mrb[0].mxu0
        %v2414 = vadd.f32 %v609, %v2413
        %v2415 = vpop.f32.mrb[0].mxu0
        %v2416 = vpop.f32.mrb[0].mxu0
        %v2417 = vadd.f32 %v609, %v2416
        %v2418 = vpop.f32.mrb[0].mxu0
        %2419 = vmatprep.mubr.bf16.mxu0 %v1536
        %2420 = vmatmul.mubr.bf16.gmra.mrb[0].mxu0 %v1535
        %v2421 = vpop.f32.mrb[0].mxu0
        %v2422 = vadd.f32 %v609, %v2421
        %v2423 = vpop.f32.mrb[0].mxu0
        %v2424 = vpop.f32.mrb[0].mxu0
        %v2425 = vadd.f32 %v609, %v2424
        %v2426 = vpop.f32.mrb[0].mxu0
        %2427 = vmatprep.mubr.bf16.mxu0 %v1538
        %2428 = vmatmul.mubr.bf16.gmra.mrb[0].mxu0 %v1537
        %v2429 = vpop.f32.mrb[0].mxu0
        %v2430 = vadd.f32 %v609, %v2429
        %v2431 = vpop.f32.mrb[0].mxu0
        %v2432 = vpop.f32.mrb[0].mxu0
        %v2433 = vadd.f32 %v609, %v2432
        %v2434 = vpop.f32.mrb[0].mxu0
        %2435 = vmatprep.mubr.bf16.mxu0 %v1540
        %2436 = vmatmul.mubr.bf16.gmra.mrb[0].mxu0 %v1539
        %v2437 = vpop.f32.mrb[0].mxu0
        %v2438 = vadd.f32 %v609, %v2437
        %v2439 = vpop.f32.mrb[0].mxu0
        %v2440 = vpop.f32.mrb[0].mxu0
        %v2441 = vadd.f32 %v609, %v2440
        %v2442 = vpop.f32.mrb[0].mxu0
        %2443 = vmatprep.mubr.bf16.mxu0 %v1542
        %2444 = vmatmul.mubr.bf16.gmra.mrb[0].mxu0 %v1541
        %v2445 = vpop.f32.mrb[0].mxu0
        %v2446 = vadd.f32 %v609, %v2445
        %v2447 = vpop.f32.mrb[0].mxu0
        %v2448 = vpop.f32.mrb[0].mxu0
        %v2449 = vadd.f32 %v609, %v2448
        %v2450 = vpop.f32.mrb[0].mxu0
        %2451 = vmatprep.mubr.bf16.mxu0 %v1544
        %2452 = vmatmul.mubr.bf16.gmra.mrb[0].mxu0 %v1543
        %v2453 = vpop.f32.mrb[0].mxu0
        %v2454 = vadd.f32 %v609, %v2453
        %v2455 = vpop.f32.mrb[0].mxu0
        %v2456 = vpop.f32.mrb[0].mxu0
        %v2457 = vadd.f32 %v609, %v2456
        %v2458 = vpop.f32.mrb[0].mxu0
        %2459 = vmatprep.mubr.bf16.mxu0 %v1546
        %2460 = vmatmul.mubr.bf16.gmra.mrb[0].mxu0 %v1545
        %v2461 = vpop.f32.mrb[0].mxu0
        %v2462 = vadd.f32 %v609, %v2461
        %v2463 = vpop.f32.mrb[0].mxu0
        %v2464 = vpop.f32.mrb[0].mxu0
        %v2465 = vadd.f32 %v609, %v2464
        %v2466 = vpop.f32.mrb[0].mxu0
        %2467 = vmatprep.mubr.bf16.mxu0 %v1548
        %2468 = vmatmul.mubr.bf16.gmra.mrb[0].mxu0 %v1547
        %v2469 = vpop.f32.mrb[0].mxu0
        %v2470 = vadd.f32 %v609, %v2469
        %v2471 = vpop.f32.mrb[0].mxu0
        %v2472 = vpop.f32.mrb[0].mxu0
        %v2473 = vadd.f32 %v609, %v2472
        %v2474 = vpop.f32.mrb[0].mxu0
        %2475 = vmatprep.mubr.bf16.mxu0 %v1550
        %2476 = vmatmul.mubr.bf16.gmra.mrb[0].mxu0 %v1549
        %v2477 = vpop.f32.mrb[0].mxu0
        %v2478 = vadd.f32 %v609, %v2477
        %v2479 = vpop.f32.mrb[0].mxu0
        %v2480 = vpop.f32.mrb[0].mxu0
        %v2481 = vadd.f32 %v609, %v2480
        %v2482 = vpop.f32.mrb[0].mxu0
        %2483 = vmatprep.mubr.bf16.mxu0 %v1552
        %2484 = vmatmul.mubr.bf16.gmra.mrb[0].mxu0 %v1551
        %v2485 = vpop.f32.mrb[0].mxu0
        %v2486 = vadd.f32 %v609, %v2485
        %v2487 = vpop.f32.mrb[0].mxu0
        %v2488 = vpop.f32.mrb[0].mxu0
        %v2489 = vadd.f32 %v609, %v2488
        %v2490 = vpop.f32.mrb[0].mxu0
        %2491 = vmatprep.mubr.bf16.mxu0 %v1554
        %2492 = vmatmul.mubr.bf16.gmra.mrb[0].mxu0 %v1553
        %v2493 = vpop.f32.mrb[0].mxu0
        %v2494 = vadd.f32 %v609, %v2493
        %v2495 = vpop.f32.mrb[0].mxu0
        %v2496 = vpop.f32.mrb[0].mxu0
        %v2497 = vadd.f32 %v609, %v2496
        %v2498 = vpop.f32.mrb[0].mxu0
        %2499 = vmatprep.mubr.bf16.mxu0 %v1556
        %2500 = vmatmul.mubr.bf16.gmra.mrb[0].mxu0 %v1555
        %v2501 = vpop.f32.mrb[0].mxu0
        %v2502 = vadd.f32 %v609, %v2501
        %v2503 = vpop.f32.mrb[0].mxu0
        %v2504 = vpop.f32.mrb[0].mxu0
        %v2505 = vadd.f32 %v609, %v2504
        %v2506 = vpop.f32.mrb[0].mxu0
        %2507 = vmatprep.mubr.bf16.mxu0 %v1558
        %2508 = vmatmul.mubr.bf16.gmra.mrb[0].mxu0 %v1557
        %v2509 = vpop.f32.mrb[0].mxu0
        %v2510 = vadd.f32 %v609, %v2509
        %v2511 = vpop.f32.mrb[0].mxu0
        %v2512 = vpop.f32.mrb[0].mxu0
        %v2513 = vadd.f32 %v609, %v2512
        %v2514 = vpop.f32.mrb[0].mxu0
        %2515 = vmatprep.mubr.bf16.mxu0 %v1560
        %2516 = vmatmul.mubr.bf16.gmra.mrb[0].mxu0 %v1559
        %v2517 = vpop.f32.mrb[0].mxu0
        %v2518 = vadd.f32 %v609, %v2517
        %v2519 = vpop.f32.mrb[0].mxu0
        %v2520 = vpop.f32.mrb[0].mxu0
        %v2521 = vadd.f32 %v609, %v2520
        %v2522 = vpop.f32.mrb[0].mxu0
        %2523 = vmatprep.mubr.bf16.mxu0 %v1562
        %2524 = vmatmul.mubr.bf16.gmra.mrb[0].mxu0 %v1561
        %v2525 = vpop.f32.mrb[0].mxu0
        %v2526 = vadd.f32 %v609, %v2525
        %v2527 = vpop.f32.mrb[0].mxu0
        %v2528 = vpop.f32.mrb[0].mxu0
        %v2529 = vadd.f32 %v609, %v2528
        %v2530 = vpop.f32.mrb[0].mxu0
        %2531 = vmatprep.mubr.bf16.mxu0 %v1564
        %2532 = vmatmul.mubr.bf16.gmra.mrb[0].mxu0 %v1563
        %v2533 = vpop.f32.mrb[0].mxu0
        %v2534 = vadd.f32 %v609, %v2533
        %v2535 = vpop.f32.mrb[0].mxu0
        %v2536 = vpop.f32.mrb[0].mxu0
        %v2537 = vadd.f32 %v609, %v2536
        %v2538 = vpop.f32.mrb[0].mxu0
        %2539 = vmatprep.mubr.bf16.mxu0 %v1566
        %2540 = vmatmul.mubr.bf16.gmra.mrb[0].mxu0 %v1565
        %v2541 = vpop.f32.mrb[0].mxu0
        %v2542 = vadd.f32 %v609, %v2541
        %v2543 = vpop.f32.mrb[0].mxu0
        %v2544 = vpop.f32.mrb[0].mxu0
        %v2545 = vadd.f32 %v609, %v2544
        %v2546 = vpop.f32.mrb[0].mxu0
        %2547 = vmatprep.mubr.bf16.mxu0 %v1568
        %2548 = vmatmul.mubr.bf16.gmra.mrb[0].mxu0 %v1567
        %v2549 = vpop.f32.mrb[0].mxu0
        %v2550 = vadd.f32 %v609, %v2549
        %v2551 = vpop.f32.mrb[0].mxu0
        %v2552 = vpop.f32.mrb[0].mxu0
        %v2553 = vadd.f32 %v609, %v2552
        %v2554 = vpop.f32.mrb[0].mxu0
        %2555 = vmatprep.mubr.bf16.mxu0 %v1570
        %2556 = vmatmul.mubr.bf16.gmra.mrb[0].mxu0 %v1569
        %v2557 = vpop.f32.mrb[0].mxu0
        %v2558 = vadd.f32 %v609, %v2557
        %v2559 = vpop.f32.mrb[0].mxu0
        %v2560 = vpop.f32.mrb[0].mxu0
        %v2561 = vadd.f32 %v609, %v2560
        %v2562 = vpop.f32.mrb[0].mxu0
        %2563 = vmatprep.mubr.bf16.mxu0 %v1572
        %2564 = vmatmul.mubr.bf16.gmra.mrb[0].mxu0 %v1571
        %v2565 = vpop.f32.mrb[0].mxu0
        %v2566 = vadd.f32 %v609, %v2565
        %v2567 = vpop.f32.mrb[0].mxu0
        %v2568 = vpop.f32.mrb[0].mxu0
        %v2569 = vadd.f32 %v609, %v2568
        %v2570 = vpop.f32.mrb[0].mxu0
        %2571 = vmatprep.mubr.bf16.mxu0 %v1574
        %2572 = vmatmul.mubr.bf16.gmra.mrb[0].mxu0 %v1573
        %v2573 = vpop.f32.mrb[0].mxu0
        %v2574 = vadd.f32 %v609, %v2573
        %v2575 = vpop.f32.mrb[0].mxu0
        %v2576 = vpop.f32.mrb[0].mxu0
        %v2577 = vadd.f32 %v609, %v2576
        %v2578 = vpop.f32.mrb[0].mxu0
        %2579 = vmatprep.mubr.bf16.mxu0 %v1576
        %2580 = vmatmul.mubr.bf16.gmra.mrb[0].mxu0 %v1575
        %v2581 = vpop.f32.mrb[0].mxu0
        %v2582 = vadd.f32 %v609, %v2581
        %v2583 = vpop.f32.mrb[0].mxu0
        %v2584 = vpop.f32.mrb[0].mxu0
        %v2585 = vadd.f32 %v609, %v2584
        %v2586 = vpop.f32.mrb[0].mxu0
        %2587 = vmatprep.mubr.bf16.mxu0 %v1578
        %2588 = vmatmul.mubr.bf16.gmra.mrb[0].mxu0 %v1577
        %v2589 = vpop.f32.mrb[0].mxu0
        %v2590 = vadd.f32 %v609, %v2589
        %v2591 = vpop.f32.mrb[0].mxu0
        %v2592 = vpop.f32.mrb[0].mxu0
        %v2593 = vadd.f32 %v609, %v2592
        %v2594 = vpop.f32.mrb[0].mxu0
        %2595 = vmatprep.mubr.bf16.mxu0 %v1580
        %2596 = vmatmul.mubr.bf16.gmra.mrb[0].mxu0 %v1579
        %v2597 = vpop.f32.mrb[0].mxu0
        %v2598 = vadd.f32 %v609, %v2597
        %v2599 = vpop.f32.mrb[0].mxu0
        %v2600 = vpop.f32.mrb[0].mxu0
        %v2601 = vadd.f32 %v609, %v2600
        %v2602 = vpop.f32.mrb[0].mxu0
        %2603 = vmatprep.mubr.bf16.mxu0 %v1582
        %2604 = vmatmul.mubr.bf16.gmra.mrb[0].mxu0 %v1581
        %v2605 = vpop.f32.mrb[0].mxu0
        %v2606 = vadd.f32 %v609, %v2605
        %v2607 = vpop.f32.mrb[0].mxu0
        %v2608 = vpop.f32.mrb[0].mxu0
        %v2609 = vadd.f32 %v609, %v2608
        %v2610 = vpop.f32.mrb[0].mxu0
        %2611 = vmatprep.mubr.bf16.mxu0 %v1584
        %2612 = vmatmul.mubr.bf16.gmra.mrb[0].mxu0 %v1583
        %v2613 = vpop.f32.mrb[0].mxu0
        %v2614 = vadd.f32 %v609, %v2613
        %v2615 = vpop.f32.mrb[0].mxu0
        %v2616 = vpop.f32.mrb[0].mxu0
        %v2617 = vadd.f32 %v609, %v2616
        %v2618 = vpop.f32.mrb[0].mxu0
        %2619 = vmatprep.mubr.bf16.mxu0 %v1586
        %2620 = vmatmul.mubr.bf16.gmra.mrb[0].mxu0 %v1585
        %v2621 = vpop.f32.mrb[0].mxu0
        %v2622 = vadd.f32 %v609, %v2621
        %v2623 = vpop.f32.mrb[0].mxu0
        %v2624 = vpop.f32.mrb[0].mxu0
        %v2625 = vadd.f32 %v609, %v2624
        %v2626 = vpop.f32.mrb[0].mxu0
        %2627 = vmatprep.mubr.bf16.mxu0 %v1588
        %2628 = vmatmul.mubr.bf16.gmra.mrb[0].mxu0 %v1587
        %v2629 = vpop.f32.mrb[0].mxu0
        %v2630 = vadd.f32 %v609, %v2629
        %v2631 = vpop.f32.mrb[0].mxu0
        %v2632 = vpop.f32.mrb[0].mxu0
        %v2633 = vadd.f32 %v609, %v2632
        %v2634 = vpop.f32.mrb[0].mxu0
        %2635 = vmatprep.mubr.bf16.mxu0 %v1590
        %2636 = vmatmul.mubr.bf16.gmra.mrb[0].mxu0 %v1589
        %v2637 = vpop.f32.mrb[0].mxu0
        %v2638 = vadd.f32 %v609, %v2637
        %v2639 = vpop.f32.mrb[0].mxu0
        %v2640 = vpop.f32.mrb[0].mxu0
        %v2641 = vadd.f32 %v609, %v2640
        %v2642 = vpop.f32.mrb[0].mxu0
        %2643 = vmatprep.mubr.bf16.mxu0 %v1592
        %2644 = vmatmul.mubr.bf16.gmra.mrb[0].mxu0 %v1591
        %v2645 = vpop.f32.mrb[0].mxu0
        %v2646 = vadd.f32 %v609, %v2645
        %v2647 = vpop.f32.mrb[0].mxu0
        %v2648 = vpop.f32.mrb[0].mxu0
        %v2649 = vadd.f32 %v609, %v2648
        %v2650 = vpop.f32.mrb[0].mxu0
        %2651 = vmatprep.mubr.bf16.mxu0 %v1594
        %2652 = vmatmul.mubr.bf16.gmra.mrb[0].mxu0 %v1593
        %v2653 = vpop.f32.mrb[0].mxu0
        %v2654 = vadd.f32 %v609, %v2653
        %v2655 = vpop.f32.mrb[0].mxu0
        %v2656 = vpop.f32.mrb[0].mxu0
        %v2657 = vadd.f32 %v609, %v2656
        %v2658 = vpop.f32.mrb[0].mxu0
        %2659 = vmatprep.mubr.bf16.mxu0 %v1596
        %2660 = vmatmul.mubr.bf16.gmra.mrb[0].mxu0 %v1595
        %v2661 = vpop.f32.mrb[0].mxu0
        %v2662 = vadd.f32 %v609, %v2661
        %v2663 = vpop.f32.mrb[0].mxu0
        %v2664 = vpop.f32.mrb[0].mxu0
        %v2665 = vadd.f32 %v609, %v2664
        %v2666 = vpop.f32.mrb[0].mxu0
        %2667 = vmatprep.mubr.bf16.mxu0 %v1598
        %2668 = vmatmul.mubr.bf16.gmra.mrb[0].mxu0 %v1597
        %v2669 = vpop.f32.mrb[0].mxu0
        %v2670 = vadd.f32 %v609, %v2669
        %v2671 = vpop.f32.mrb[0].mxu0
        %v2672 = vpop.f32.mrb[0].mxu0
        %v2673 = vadd.f32 %v609, %v2672
        %v2674 = vpop.f32.mrb[0].mxu0
        %2675 = vmatprep.mubr.bf16.mxu0 %v1600
        %2676 = vmatmul.mubr.bf16.gmra.mrb[0].mxu0 %v1599
        %v2677 = vpop.f32.mrb[0].mxu0
        %v2678 = vadd.f32 %v609, %v2677
        %v2679 = vpop.f32.mrb[0].mxu0
        %v2680 = vpop.f32.mrb[0].mxu0
        %v2681 = vadd.f32 %v609, %v2680
        %v2682 = vpop.f32.mrb[0].mxu0
        %2683 = vmatprep.mubr.bf16.mxu0 %v1602
        %2684 = vmatmul.mubr.bf16.gmra.mrb[0].mxu0 %v1601
        %v2685 = vpop.f32.mrb[0].mxu0
        %v2686 = vadd.f32 %v609, %v2685
        %v2687 = vpop.f32.mrb[0].mxu0
        %v2688 = vpop.f32.mrb[0].mxu0
        %v2689 = vadd.f32 %v609, %v2688
        %v2690 = vpop.f32.mrb[0].mxu0
        %2691 = vmatprep.mubr.bf16.mxu0 %v1604
        %2692 = vmatmul.mubr.bf16.gmra.mrb[0].mxu0 %v1603
        %v2693 = vpop.f32.mrb[0].mxu0
        %v2694 = vadd.f32 %v609, %v2693
        %v2695 = vpop.f32.mrb[0].mxu0
        %v2696 = vpop.f32.mrb[0].mxu0
        %v2697 = vadd.f32 %v609, %v2696
        %v2698 = vpop.f32.mrb[0].mxu0
        %2699 = vmatprep.mubr.bf16.mxu0 %v1606
        %2700 = vmatmul.mubr.bf16.gmra.mrb[0].mxu0 %v1605
        %v2701 = vpop.f32.mrb[0].mxu0
        %v2702 = vadd.f32 %v609, %v2701
        %v2703 = vpop.f32.mrb[0].mxu0
        %v2704 = vpop.f32.mrb[0].mxu0
        %v2705 = vadd.f32 %v609, %v2704
        %v2706 = vpop.f32.mrb[0].mxu0
        %2707 = vmatprep.mubr.bf16.mxu0 %v1608
        %2708 = vmatmul.mubr.bf16.gmra.mrb[0].mxu0 %v1607
        %v2709 = vpop.f32.mrb[0].mxu0
        %v2710 = vadd.f32 %v609, %v2709
        %v2711 = vpop.f32.mrb[0].mxu0
        %v2712 = vpop.f32.mrb[0].mxu0
        %v2713 = vadd.f32 %v609, %v2712
        %v2714 = vpop.f32.mrb[0].mxu0
        %2715 = vmatprep.mubr.bf16.mxu0 %v1610
        %2716 = vmatmul.mubr.bf16.gmra.mrb[0].mxu0 %v1609
        %v2717 = vpop.f32.mrb[0].mxu0
        %v2718 = vadd.f32 %v609, %v2717
        %v2719 = vpop.f32.mrb[0].mxu0
        %v2720 = vpop.f32.mrb[0].mxu0
        %v2721 = vadd.f32 %v609, %v2720
        %v2722 = vpop.f32.mrb[0].mxu0
        %2723 = vmatprep.mubr.bf16.mxu0 %v1612
        %2724 = vmatmul.mubr.bf16.gmra.mrb[0].mxu0 %v1611
        %v2725 = vpop.f32.mrb[0].mxu0
        %v2726 = vadd.f32 %v609, %v2725
        %v2727 = vpop.f32.mrb[0].mxu0
        %v2728 = vpop.f32.mrb[0].mxu0
        %v2729 = vadd.f32 %v609, %v2728
        %v2730 = vpop.f32.mrb[0].mxu0
        %2731 = vmatprep.mubr.bf16.mxu0 %v1614
        %2732 = vmatmul.mubr.bf16.gmra.mrb[0].mxu0 %v1613
        %v2733 = vpop.f32.mrb[0].mxu0
        %v2734 = vadd.f32 %v609, %v2733
        %v2735 = vpop.f32.mrb[0].mxu0
        %v2736 = vpop.f32.mrb[0].mxu0
        %v2737 = vadd.f32 %v609, %v2736
        %v2738 = vpop.f32.mrb[0].mxu0
        %2739 = vmatprep.mubr.bf16.mxu0 %v1616
        %2740 = vmatmul.mubr.bf16.gmra.mrb[0].mxu0 %v1615
        %v2741 = vpop.f32.mrb[0].mxu0
        %v2742 = vadd.f32 %v609, %v2741
        %v2743 = vpop.f32.mrb[0].mxu0
        %v2744 = vpop.f32.mrb[0].mxu0
        %v2745 = vadd.f32 %v609, %v2744
        %v2746 = vpop.f32.mrb[0].mxu0
        %2747 = vmatprep.mubr.bf16.mxu0 %v1618
        %2748 = vmatmul.mubr.bf16.gmra.mrb[0].mxu0 %v1617
        %v2749 = vpop.f32.mrb[0].mxu0
        %v2750 = vadd.f32 %v609, %v2749
        %v2751 = vpop.f32.mrb[0].mxu0
        %v2752 = vpop.f32.mrb[0].mxu0
        %v2753 = vadd.f32 %v609, %v2752
        %v2754 = vpop.f32.mrb[0].mxu0
        %2755 = vmatprep.mubr.bf16.mxu0 %v1620
        %2756 = vmatmul.mubr.bf16.gmra.mrb[0].mxu0 %v1619
        %v2757 = vpop.f32.mrb[0].mxu0
        %v2758 = vadd.f32 %v609, %v2757
        %v2759 = vpop.f32.mrb[0].mxu0
        %v2760 = vpop.f32.mrb[0].mxu0
        %v2761 = vadd.f32 %v609, %v2760
        %v2762 = vpop.f32.mrb[0].mxu0
        %2763 = vmatprep.mubr.bf16.mxu0 %v1622
        %2764 = vmatmul.mubr.bf16.gmra.mrb[0].mxu0 %v1621
        %v2765 = vpop.f32.mrb[0].mxu0
        %v2766 = vadd.f32 %v609, %v2765
        %v2767 = vpop.f32.mrb[0].mxu0
        %v2768 = vpop.f32.mrb[0].mxu0
        %v2769 = vadd.f32 %v609, %v2768
        %v2770 = vpop.f32.mrb[0].mxu0
        %2771 = vmatprep.mubr.bf16.mxu0 %v1624
        %2772 = vmatmul.mubr.bf16.gmra.mrb[0].mxu0 %v1623
        %v2773 = vpop.f32.mrb[0].mxu0
        %v2774 = vadd.f32 %v609, %v2773
        %v2775 = vpop.f32.mrb[0].mxu0
        %v2776 = vpop.f32.mrb[0].mxu0
        %v2777 = vadd.f32 %v609, %v2776
        %v2778 = vpop.f32.mrb[0].mxu0
        %2779 = vmatprep.mubr.bf16.mxu0 %v1626
        %2780 = vmatmul.mubr.bf16.gmra.mrb[0].mxu0 %v1625
        %v2781 = vpop.f32.mrb[0].mxu0
        %v2782 = vadd.f32 %v609, %v2781
        %v2783 = vpop.f32.mrb[0].mxu0
        %v2784 = vpop.f32.mrb[0].mxu0
        %v2785 = vadd.f32 %v609, %v2784
        %v2786 = vpop.f32.mrb[0].mxu0
        %2787 = vmatprep.mubr.bf16.mxu0 %v1628
        %2788 = vmatmul.mubr.bf16.gmra.mrb[0].mxu0 %v1627
        %v2789 = vpop.f32.mrb[0].mxu0
        %v2790 = vadd.f32 %v609, %v2789
        %v2791 = vpop.f32.mrb[0].mxu0
        %v2792 = vpop.f32.mrb[0].mxu0
        %v2793 = vadd.f32 %v609, %v2792
        %v2794 = vpop.f32.mrb[0].mxu0
        %2795 = vmatprep.mubr.bf16.mxu0 %v1630
        %2796 = vmatmul.mubr.bf16.gmra.mrb[0].mxu0 %v1629
        %v2797 = vpop.f32.mrb[0].mxu0
        %v2798 = vadd.f32 %v609, %v2797
        %v2799 = vpop.f32.mrb[0].mxu0
        %v2800 = vpop.f32.mrb[0].mxu0
        %v2801 = vadd.f32 %v609, %v2800
        %v2802 = vpop.f32.mrb[0].mxu0
        %2803 = vmatprep.mubr.bf16.mxu0 %v1632
        %2804 = vmatmul.mubr.bf16.gmra.mrb[0].mxu0 %v1631
        %v2805 = vpop.f32.mrb[0].mxu0
        %v2806 = vadd.f32 %v609, %v2805
        %v2807 = vpop.f32.mrb[0].mxu0
        %v2808 = vpop.f32.mrb[0].mxu0
        %v2809 = vadd.f32 %v609, %v2808
        %v2810 = vpop.f32.mrb[0].mxu0
        %2811 = vmatprep.mubr.bf16.mxu0 %v1634
        %2812 = vmatmul.mubr.bf16.gmra.mrb[0].mxu0 %v1633
        %v2813 = vpop.f32.mrb[0].mxu0
        %v2814 = vadd.f32 %v609, %v2813
        %v2815 = vpop.f32.mrb[0].mxu0
        %v2816 = vpop.f32.mrb[0].mxu0
        %v2817 = vadd.f32 %v609, %v2816
        %v2818 = vpop.f32.mrb[0].mxu0
        %2819 = vmatprep.mubr.bf16.mxu0 %v1636
        %2820 = vmatmul.mubr.bf16.gmra.mrb[0].mxu0 %v1635
        %v2821 = vpop.f32.mrb[0].mxu0
        %v2822 = vadd.f32 %v609, %v2821
        %v2823 = vpop.f32.mrb[0].mxu0
        %v2824 = vpop.f32.mrb[0].mxu0
        %v2825 = vadd.f32 %v609, %v2824
        %v2826 = vpop.f32.mrb[0].mxu0
        %2827 = vmatprep.mubr.bf16.mxu0 %v1638
        %2828 = vmatmul.mubr.bf16.gmra.mrb[0].mxu0 %v1637
        %v2829 = vpop.f32.mrb[0].mxu0
        %v2830 = vadd.f32 %v609, %v2829
        %v2831 = vpop.f32.mrb[0].mxu0
        %v2832 = vpop.f32.mrb[0].mxu0
        %v2833 = vadd.f32 %v609, %v2832
        %v2834 = vpop.f32.mrb[0].mxu0
        %2835 = vmatprep.mubr.bf16.mxu0 %v1640
        %2836 = vmatmul.mubr.bf16.gmra.mrb[0].mxu0 %v1639
        %v2837 = vpop.f32.mrb[0].mxu0
        %v2838 = vadd.f32 %v609, %v2837
        %v2839 = vpop.f32.mrb[0].mxu0
        %v2840 = vpop.f32.mrb[0].mxu0
        %v2841 = vadd.f32 %v609, %v2840
        %v2842 = vpop.f32.mrb[0].mxu0
        %2843 = vmatprep.mubr.bf16.mxu0 %v1642
        %2844 = vmatmul.mubr.bf16.gmra.mrb[0].mxu0 %v1641
        %v2845 = vpop.f32.mrb[0].mxu0
        %v2846 = vadd.f32 %v609, %v2845
        %v2847 = vpop.f32.mrb[0].mxu0
        %v2848 = vpop.f32.mrb[0].mxu0
        %v2849 = vadd.f32 %v609, %v2848
        %v2850 = vpop.f32.mrb[0].mxu0
        %2851 = vmatprep.mubr.bf16.mxu0 %v1644
        %2852 = vmatmul.mubr.bf16.gmra.mrb[0].mxu0 %v1643
        %v2853 = vpop.f32.mrb[0].mxu0
        %v2854 = vadd.f32 %v609, %v2853
        %v2855 = vpop.f32.mrb[0].mxu0
        %v2856 = vpop.f32.mrb[0].mxu0
        %v2857 = vadd.f32 %v609, %v2856
        %v2858 = vpop.f32.mrb[0].mxu0
        %2859 = vmatprep.mubr.bf16.mxu0 %v1646
        %2860 = vmatmul.mubr.bf16.gmra.mrb[0].mxu0 %v1645
        %v2861 = vpop.f32.mrb[0].mxu0
        %v2862 = vadd.f32 %v609, %v2861
        %v2863 = vpop.f32.mrb[0].mxu0
        %v2864 = vpop.f32.mrb[0].mxu0
        %v2865 = vadd.f32 %v609, %v2864
        %v2866 = vpop.f32.mrb[0].mxu0
        %2867 = vmatprep.mubr.bf16.mxu0 %v1648
        %2868 = vmatmul.mubr.bf16.gmra.mrb[0].mxu0 %v1647
        %v2869 = vpop.f32.mrb[0].mxu0
        %v2870 = vadd.f32 %v609, %v2869
        %v2871 = vpop.f32.mrb[0].mxu0
        %v2872 = vpop.f32.mrb[0].mxu0
        %v2873 = vadd.f32 %v609, %v2872
        %v2874 = vpop.f32.mrb[0].mxu0
        %2875 = vmatprep.mubr.bf16.mxu0 %v1650
        %2876 = vmatmul.mubr.bf16.gmra.mrb[0].mxu0 %v1649
        %v2877 = vpop.f32.mrb[0].mxu0
        %v2878 = vadd.f32 %v609, %v2877
        %v2879 = vpop.f32.mrb[0].mxu0
        %v2880 = vpop.f32.mrb[0].mxu0
        %v2881 = vadd.f32 %v609, %v2880
        %v2882 = vpop.f32.mrb[0].mxu0
        %2883 = vmatprep.mubr.bf16.mxu0 %v1652
        %2884 = vmatmul.mubr.bf16.gmra.mrb[0].mxu0 %v1651
        %v2885 = vpop.f32.mrb[0].mxu0
        %v2886 = vadd.f32 %v609, %v2885
        %v2887 = vpop.f32.mrb[0].mxu0
        %v2888 = vpop.f32.mrb[0].mxu0
        %v2889 = vadd.f32 %v609, %v2888
        %v2890 = vpop.f32.mrb[0].mxu0
        %2891 = vmatprep.mubr.bf16.mxu0 %v1654
        %2892 = vmatmul.mubr.bf16.gmra.mrb[0].mxu0 %v1653
        %v2893 = vpop.f32.mrb[0].mxu0
        %v2894 = vadd.f32 %v609, %v2893
        %v2895 = vpop.f32.mrb[0].mxu0
        %v2896 = vpop.f32.mrb[0].mxu0
        %v2897 = vadd.f32 %v609, %v2896
        %v2898 = vpop.f32.mrb[0].mxu0
        %2899 = vmatprep.mubr.bf16.mxu0 %v1656
        %2900 = vmatmul.mubr.bf16.gmra.mrb[0].mxu0 %v1655
        %v2901 = vpop.f32.mrb[0].mxu0
        %v2902 = vadd.f32 %v609, %v2901
        %v2903 = vpop.f32.mrb[0].mxu0
        %v2904 = vpop.f32.mrb[0].mxu0
        %v2905 = vadd.f32 %v609, %v2904
        %v2906 = vpop.f32.mrb[0].mxu0
        %2907 = vmatprep.mubr.bf16.mxu0 %v1658
        %2908 = vmatmul.mubr.bf16.gmra.mrb[0].mxu0 %v1657
        %v2909 = vpop.f32.mrb[0].mxu0
        %v2910 = vadd.f32 %v609, %v2909
        %v2911 = vpop.f32.mrb[0].mxu0
        %v2912 = vpop.f32.mrb[0].mxu0
        %v2913 = vadd.f32 %v609, %v2912
        %v2914 = vpop.f32.mrb[0].mxu0
        %2915 = vmatprep.mubr.bf16.mxu0 %v1660
        %2916 = vmatmul.mubr.bf16.gmra.mrb[0].mxu0 %v1659
        %v2917 = vpop.f32.mrb[0].mxu0
        %v2918 = vadd.f32 %v609, %v2917
        %v2919 = vpop.f32.mrb[0].mxu0
        %v2920 = vpop.f32.mrb[0].mxu0
        %v2921 = vadd.f32 %v609, %v2920
        %v2922 = vpop.f32.mrb[0].mxu0
        %2923 = vmatprep.mubr.bf16.mxu0 %v1662
        %2924 = vmatmul.mubr.bf16.gmra.mrb[0].mxu0 %v1661
        %v2925 = vpop.f32.mrb[0].mxu0
        %v2926 = vadd.f32 %v609, %v2925
        %v2927 = vpop.f32.mrb[0].mxu0
        %v2928 = vpop.f32.mrb[0].mxu0
        %v2929 = vadd.f32 %v609, %v2928
        %v2930 = vpop.f32.mrb[0].mxu0
        %2931 = vmatprep.mubr.bf16.mxu0 %v1664
        %2932 = vmatmul.mubr.bf16.gmra.mrb[0].mxu0 %v1663
        %v2933 = vpop.f32.mrb[0].mxu0
        %v2934 = vadd.f32 %v609, %v2933
        %v2935 = vpop.f32.mrb[0].mxu0
        %v2936 = vpop.f32.mrb[0].mxu0
        %v2937 = vadd.f32 %v609, %v2936
        %v2938 = vpop.f32.mrb[0].mxu0
        %2939 = vmatprep.mubr.bf16.mxu0 %v1666
        %2940 = vmatmul.mubr.bf16.gmra.mrb[0].mxu0 %v1665
        %v2941 = vpop.f32.mrb[0].mxu0
        %v2942 = vadd.f32 %v609, %v2941
        %v2943 = vpop.f32.mrb[0].mxu0
        %v2944 = vpop.f32.mrb[0].mxu0
        %v2945 = vadd.f32 %v609, %v2944
        %v2946 = vpop.f32.mrb[0].mxu0
        %2947 = vmatprep.mubr.bf16.mxu0 %v1668
        %2948 = vmatmul.mubr.bf16.gmra.mrb[0].mxu0 %v1667
        %v2949 = vpop.f32.mrb[0].mxu0
        %v2950 = vadd.f32 %v609, %v2949
        %v2951 = vpop.f32.mrb[0].mxu0
        %v2952 = vpop.f32.mrb[0].mxu0
        %v2953 = vadd.f32 %v609, %v2952
        %v2954 = vpop.f32.mrb[0].mxu0
        %2955 = vmatprep.mubr.bf16.mxu0 %v1670
        %2956 = vmatmul.mubr.bf16.gmra.mrb[0].mxu0 %v1669
        %v2957 = vpop.f32.mrb[0].mxu0
        %v2958 = vadd.f32 %v609, %v2957
        %v2959 = vpop.f32.mrb[0].mxu0
        %v2960 = vpop.f32.mrb[0].mxu0
        %v2961 = vadd.f32 %v609, %v2960
        %v2962 = vpop.f32.mrb[0].mxu0
        %2963 = vmatprep.mubr.bf16.mxu0 %v1672
        %2964 = vmatmul.mubr.bf16.gmra.mrb[0].mxu0 %v1671
        %v2965 = vpop.f32.mrb[0].mxu0
        %v2966 = vadd.f32 %v609, %v2965
        %v2967 = vpop.f32.mrb[0].mxu0
        %v2968 = vpop.f32.mrb[0].mxu0
        %v2969 = vadd.f32 %v609, %v2968
        %v2970 = vpop.f32.mrb[0].mxu0
        %2971 = vmatprep.mubr.bf16.mxu0 %v1674
        %2972 = vmatmul.mubr.bf16.gmra.mrb[0].mxu0 %v1673
        %v2973 = vpop.f32.mrb[0].mxu0
        %v2974 = vadd.f32 %v609, %v2973
        %v2975 = vpop.f32.mrb[0].mxu0
        %v2976 = vpop.f32.mrb[0].mxu0
        %v2977 = vadd.f32 %v609, %v2976
        %v2978 = vpop.f32.mrb[0].mxu0
        %2979 = vmatprep.mubr.bf16.mxu0 %v1676
        %2980 = vmatmul.mubr.bf16.gmra.mrb[0].mxu0 %v1675
        %v2981 = vpop.f32.mrb[0].mxu0
        %v2982 = vadd.f32 %v609, %v2981
        %v2983 = vpop.f32.mrb[0].mxu0
        %v2984 = vpop.f32.mrb[0].mxu0
        %v2985 = vadd.f32 %v609, %v2984
        %v2986 = vpop.f32.mrb[0].mxu0
        %2987 = vmatprep.mubr.bf16.mxu0 %v1678
        %2988 = vmatmul.mubr.bf16.gmra.mrb[0].mxu0 %v1677
        %v2989 = vpop.f32.mrb[0].mxu0
        %v2990 = vadd.f32 %v609, %v2989
        %v2991 = vpop.f32.mrb[0].mxu0
        %v2992 = vpop.f32.mrb[0].mxu0
        %v2993 = vadd.f32 %v609, %v2992
        %v2994 = vpop.f32.mrb[0].mxu0
        %2995 = vmatprep.mubr.bf16.mxu0 %v1680
        %2996 = vmatmul.mubr.bf16.gmra.mrb[0].mxu0 %v1679
        %v2997 = vpop.f32.mrb[0].mxu0
        %v2998 = vadd.f32 %v609, %v2997
        %v2999 = vpop.f32.mrb[0].mxu0
        %v3000 = vpop.f32.mrb[0].mxu0
        %v3001 = vadd.f32 %v609, %v3000
        %v3002 = vpop.f32.mrb[0].mxu0
        %3003 = vmatprep.mubr.bf16.mxu0 %v1682
        %3004 = vmatmul.mubr.bf16.gmra.mrb[0].mxu0 %v1681
        %v3005 = vpop.f32.mrb[0].mxu0
        %v3006 = vadd.f32 %v609, %v3005
        %v3007 = vpop.f32.mrb[0].mxu0
        %v3008 = vpop.f32.mrb[0].mxu0
        %v3009 = vadd.f32 %v609, %v3008
        %v3010 = vpop.f32.mrb[0].mxu0
        %3011 = vmatprep.mubr.bf16.mxu0 %v1684
        %3012 = vmatmul.mubr.bf16.gmra.mrb[0].mxu0 %v1683
        %v3013 = vpop.f32.mrb[0].mxu0
        %v3014 = vadd.f32 %v609, %v3013
        %v3015 = vpop.f32.mrb[0].mxu0
        %v3016 = vpop.f32.mrb[0].mxu0
        %v3017 = vadd.f32 %v609, %v3016
        %v3018 = vpop.f32.mrb[0].mxu0
        %3019 = vmatprep.mubr.bf16.mxu0 %v1686
        %3020 = vmatmul.mubr.bf16.gmra.mrb[0].mxu0 %v1685
        %v3021 = vpop.f32.mrb[0].mxu0
        %v3022 = vadd.f32 %v609, %v3021
        %v3023 = vpop.f32.mrb[0].mxu0
        %v3024 = vpop.f32.mrb[0].mxu0
        %v3025 = vadd.f32 %v609, %v3024
        %v3026 = vpop.f32.mrb[0].mxu0
        %3027 = vmatprep.mubr.bf16.mxu0 %v1688
        %3028 = vmatmul.mubr.bf16.gmra.mrb[0].mxu0 %v1687
        %v3029 = vpop.f32.mrb[0].mxu0
        %v3030 = vadd.f32 %v609, %v3029
        %v3031 = vpop.f32.mrb[0].mxu0
        %v3032 = vpop.f32.mrb[0].mxu0
        %v3033 = vadd.f32 %v609, %v3032
        %v3034 = vpop.f32.mrb[0].mxu0
        %3035 = vmatprep.mubr.bf16.mxu0 %v1690
        %3036 = vmatmul.mubr.bf16.gmra.mrb[0].mxu0 %v1689
        %v3037 = vpop.f32.mrb[0].mxu0
        %v3038 = vadd.f32 %v609, %v3037
        %v3039 = vpop.f32.mrb[0].mxu0
        %v3040 = vpop.f32.mrb[0].mxu0
        %v3041 = vadd.f32 %v609, %v3040
        %v3042 = vpop.f32.mrb[0].mxu0
        %3043 = vmatprep.mubr.bf16.mxu0 %v1692
        %3044 = vmatmul.mubr.bf16.gmra.mrb[0].mxu0 %v1691
        %v3045 = vpop.f32.mrb[0].mxu0
        %v3046 = vadd.f32 %v609, %v3045
        %v3047 = vpop.f32.mrb[0].mxu0
        %v3048 = vpop.f32.mrb[0].mxu0
        %v3049 = vadd.f32 %v609, %v3048
        %v3050 = vpop.f32.mrb[0].mxu0
        %3051 = vmatprep.mubr.bf16.mxu0 %v1694
        %3052 = vmatmul.mubr.bf16.gmra.mrb[0].mxu0 %v1693
        %v3053 = vpop.f32.mrb[0].mxu0
        %v3054 = vadd.f32 %v609, %v3053
        %v3055 = vpop.f32.mrb[0].mxu0
        %v3056 = vpop.f32.mrb[0].mxu0
        %v3057 = vadd.f32 %v609, %v3056
        %v3058 = vpop.f32.mrb[0].mxu0
        %3059 = vmatprep.mubr.bf16.mxu0 %v1696
        %3060 = vmatmul.mubr.bf16.gmra.mrb[0].mxu0 %v1695
        %v3061 = vpop.f32.mrb[0].mxu0
        %v3062 = vadd.f32 %v609, %v3061
        %v3063 = vpop.f32.mrb[0].mxu0
        %v3064 = vpop.f32.mrb[0].mxu0
        %v3065 = vadd.f32 %v609, %v3064
        %v3066 = vpop.f32.mrb[0].mxu0
        %3067 = vmatprep.mubr.bf16.mxu0 %v1698
        %3068 = vmatmul.mubr.bf16.gmra.mrb[0].mxu0 %v1697
        %v3069 = vpop.f32.mrb[0].mxu0
        %v3070 = vadd.f32 %v609, %v3069
        %v3071 = vpop.f32.mrb[0].mxu0
        %v3072 = vpop.f32.mrb[0].mxu0
        %v3073 = vadd.f32 %v609, %v3072
        %v3074 = vpop.f32.mrb[0].mxu0
        %3075 = vmatprep.mubr.bf16.mxu0 %v1700
        %3076 = vmatmul.mubr.bf16.gmra.mrb[0].mxu0 %v1699
        %v3077 = vpop.f32.mrb[0].mxu0
        %v3078 = vadd.f32 %v609, %v3077
        %v3079 = vpop.f32.mrb[0].mxu0
        %v3080 = vpop.f32.mrb[0].mxu0
        %v3081 = vadd.f32 %v609, %v3080
        %v3082 = vpop.f32.mrb[0].mxu0
        %3083 = vmatprep.mubr.bf16.mxu0 %v1702
        %3084 = vmatmul.mubr.bf16.gmra.mrb[0].mxu0 %v1701
        %v3085 = vpop.f32.mrb[0].mxu0
        %v3086 = vadd.f32 %v609, %v3085
        %v3087 = vpop.f32.mrb[0].mxu0
        %v3088 = vpop.f32.mrb[0].mxu0
        %v3089 = vadd.f32 %v609, %v3088
        %v3090 = vpop.f32.mrb[0].mxu0
        %3091 = vmatprep.mubr.bf16.mxu0 %v1704
        %3092 = vmatmul.mubr.bf16.gmra.mrb[0].mxu0 %v1703
        %v3093 = vpop.f32.mrb[0].mxu0
        %v3094 = vadd.f32 %v609, %v3093
        %v3095 = vpop.f32.mrb[0].mxu0
        %v3096 = vpop.f32.mrb[0].mxu0
        %v3097 = vadd.f32 %v609, %v3096
        %v3098 = vpop.f32.mrb[0].mxu0
        %3099 = vmatprep.mubr.bf16.mxu0 %v1706
        %3100 = vmatmul.mubr.bf16.gmra.mrb[0].mxu0 %v1705
        %v3101 = vpop.f32.mrb[0].mxu0
        %v3102 = vadd.f32 %v609, %v3101
        %v3103 = vpop.f32.mrb[0].mxu0
        %v3104 = vpop.f32.mrb[0].mxu0
        %v3105 = vadd.f32 %v609, %v3104
        %v3106 = vpop.f32.mrb[0].mxu0
        %3107 = vmatprep.mubr.bf16.mxu0 %v1708
        %3108 = vmatmul.mubr.bf16.gmra.mrb[0].mxu0 %v1707
        %v3109 = vpop.f32.mrb[0].mxu0
        %v3110 = vadd.f32 %v609, %v3109
        %v3111 = vpop.f32.mrb[0].mxu0
        %v3112 = vpop.f32.mrb[0].mxu0
        %v3113 = vadd.f32 %v609, %v3112
        %v3114 = vpop.f32.mrb[0].mxu0
        %3115 = vmatprep.mubr.bf16.mxu0 %v1710
        %3116 = vmatmul.mubr.bf16.gmra.mrb[0].mxu0 %v1709
        %v3117 = vpop.f32.mrb[0].mxu0
        %v3118 = vadd.f32 %v609, %v3117
        %v3119 = vpop.f32.mrb[0].mxu0
        %v3120 = vpop.f32.mrb[0].mxu0
        %v3121 = vadd.f32 %v609, %v3120
        %v3122 = vpop.f32.mrb[0].mxu0
        %3123 = vmatprep.mubr.bf16.mxu0 %v1712
        %3124 = vmatmul.mubr.bf16.gmra.mrb[0].mxu0 %v1711
        %v3125 = vpop.f32.mrb[0].mxu0
        %v3126 = vadd.f32 %v609, %v3125
        %v3127 = vpop.f32.mrb[0].mxu0
        %v3128 = vpop.f32.mrb[0].mxu0
        %v3129 = vadd.f32 %v609, %v3128
        %v3130 = vpop.f32.mrb[0].mxu0
        %3131 = vmatprep.mubr.bf16.mxu0 %v1714
        %3132 = vmatmul.mubr.bf16.gmra.mrb[0].mxu0 %v1713
        %v3133 = vpop.f32.mrb[0].mxu0
        %v3134 = vadd.f32 %v609, %v3133
        %v3135 = vpop.f32.mrb[0].mxu0
        %v3136 = vpop.f32.mrb[0].mxu0
        %v3137 = vadd.f32 %v609, %v3136
        %v3138 = vpop.f32.mrb[0].mxu0
        %3139 = vmatprep.mubr.bf16.mxu0 %v1716
        %3140 = vmatmul.mubr.bf16.gmra.mrb[0].mxu0 %v1715
        %v3141 = vpop.f32.mrb[0].mxu0
        %v3142 = vadd.f32 %v609, %v3141
        %v3143 = vpop.f32.mrb[0].mxu0
        %v3144 = vpop.f32.mrb[0].mxu0
        %v3145 = vadd.f32 %v609, %v3144
        %v3146 = vpop.f32.mrb[0].mxu0
        %3147 = vmatprep.mubr.bf16.mxu0 %v1718
        %3148 = vmatmul.mubr.bf16.gmra.mrb[0].mxu0 %v1717
        %v3149 = vpop.f32.mrb[0].mxu0
        %v3150 = vadd.f32 %v609, %v3149
        %v3151 = vpop.f32.mrb[0].mxu0
        %v3152 = vpop.f32.mrb[0].mxu0
        %v3153 = vadd.f32 %v609, %v3152
        %v3154 = vpop.f32.mrb[0].mxu0
        %3155 = vmatprep.mubr.bf16.mxu0 %v1720
        %3156 = vmatmul.mubr.bf16.gmra.mrb[0].mxu0 %v1719
        %v3157 = vpop.f32.mrb[0].mxu0
        %v3158 = vadd.f32 %v609, %v3157
        %v3159 = vpop.f32.mrb[0].mxu0
        %v3160 = vpop.f32.mrb[0].mxu0
        %v3161 = vadd.f32 %v609, %v3160
        %v3162 = vpop.f32.mrb[0].mxu0
        %3163 = vmatprep.mubr.bf16.mxu0 %v1722
        %3164 = vmatmul.mubr.bf16.gmra.mrb[0].mxu0 %v1721
        %v3165 = vpop.f32.mrb[0].mxu0
        %v3166 = vadd.f32 %v609, %v3165
        %v3167 = vpop.f32.mrb[0].mxu0
        %v3168 = vpop.f32.mrb[0].mxu0
        %v3169 = vadd.f32 %v609, %v3168
        %v3170 = vpop.f32.mrb[0].mxu0
        %3171 = vmatprep.mubr.bf16.mxu0 %v1724
        %3172 = vmatmul.mubr.bf16.gmra.mrb[0].mxu0 %v1723
        %v3173 = vpop.f32.mrb[0].mxu0
        %v3174 = vadd.f32 %v609, %v3173
        %v3175 = vpop.f32.mrb[0].mxu0
        %v3176 = vpop.f32.mrb[0].mxu0
        %v3177 = vadd.f32 %v609, %v3176
        %v3178 = vpop.f32.mrb[0].mxu0
        %3179 = vmatprep.mubr.bf16.mxu0 %v1726
        %3180 = vmatmul.mubr.bf16.gmra.mrb[0].mxu0 %v1725
        %v3181 = vpop.f32.mrb[0].mxu0
        %v3182 = vadd.f32 %v609, %v3181
        %v3183 = vpop.f32.mrb[0].mxu0
        %v3184 = vpop.f32.mrb[0].mxu0
        %v3185 = vadd.f32 %v609, %v3184
        %v3186 = vpop.f32.mrb[0].mxu0
        %3187 = vmatprep.mubr.bf16.mxu0 %v1728
        %3188 = vmatmul.mubr.bf16.gmra.mrb[0].mxu0 %v1727
        %v3189 = vpop.f32.mrb[0].mxu0
        %v3190 = vadd.f32 %v609, %v3189
        %v3191 = vpop.f32.mrb[0].mxu0
        %v3192 = vpop.f32.mrb[0].mxu0
        %v3193 = vadd.f32 %v609, %v3192
        %v3194 = vpop.f32.mrb[0].mxu0
        %3195 = vmatprep.mubr.bf16.mxu0 %v1730
        %3196 = vmatmul.mubr.bf16.gmra.mrb[0].mxu0 %v1729
        %v3197 = vpop.f32.mrb[0].mxu0
        %v3198 = vadd.f32 %v609, %v3197
        %v3199 = vpop.f32.mrb[0].mxu0
        %v3200 = vpop.f32.mrb[0].mxu0
        %v3201 = vadd.f32 %v609, %v3200
        %v3202 = vpop.f32.mrb[0].mxu0
        %3203 = vmatprep.mubr.bf16.mxu0 %v1732
        %3204 = vmatmul.mubr.bf16.gmra.mrb[0].mxu0 %v1731
        %v3205 = vpop.f32.mrb[0].mxu0
        %v3206 = vadd.f32 %v609, %v3205
        %v3207 = vpop.f32.mrb[0].mxu0
        %v3208 = vpop.f32.mrb[0].mxu0
        %v3209 = vadd.f32 %v609, %v3208
        %v3210 = vpop.f32.mrb[0].mxu0
        %3211 = vmatprep.mubr.bf16.mxu0 %v1734
        %3212 = vmatmul.mubr.bf16.gmra.mrb[0].mxu0 %v1733
        %v3213 = vpop.f32.mrb[0].mxu0
        %v3214 = vadd.f32 %v609, %v3213
        %v3215 = vpop.f32.mrb[0].mxu0
        %v3216 = vpop.f32.mrb[0].mxu0
        %v3217 = vadd.f32 %v609, %v3216
        %v3218 = vpop.f32.mrb[0].mxu0
        %3219 = vmatprep.mubr.bf16.mxu0 %v1736
        %3220 = vmatmul.mubr.bf16.gmra.mrb[0].mxu0 %v1735
        %v3221 = vpop.f32.mrb[0].mxu0
        %v3222 = vadd.f32 %v609, %v3221
        %v3223 = vpop.f32.mrb[0].mxu0
        %v3224 = vpop.f32.mrb[0].mxu0
        %v3225 = vadd.f32 %v609, %v3224
        %v3226 = vpop.f32.mrb[0].mxu0
        %3227 = vmatprep.mubr.bf16.mxu0 %v1738
        %3228 = vmatmul.mubr.bf16.gmra.mrb[0].mxu0 %v1737
        %v3229 = vpop.f32.mrb[0].mxu0
        %v3230 = vadd.f32 %v609, %v3229
        %v3231 = vpop.f32.mrb[0].mxu0
        %v3232 = vpop.f32.mrb[0].mxu0
        %v3233 = vadd.f32 %v609, %v3232
        %v3234 = vpop.f32.mrb[0].mxu0
        %3235 = vmatprep.mubr.bf16.mxu0 %v1740
        %3236 = vmatmul.mubr.bf16.gmra.mrb[0].mxu0 %v1739
        %v3237 = vpop.f32.mrb[0].mxu0
        %v3238 = vadd.f32 %v609, %v3237
        %v3239 = vpop.f32.mrb[0].mxu0
        %v3240 = vpop.f32.mrb[0].mxu0
        %v3241 = vadd.f32 %v609, %v3240
        %v3242 = vpop.f32.mrb[0].mxu0
        %3243 = vmatprep.mubr.bf16.mxu0 %v1742
        %3244 = vmatmul.mubr.bf16.gmra.mrb[0].mxu0 %v1741
        %v3245 = vpop.f32.mrb[0].mxu0
        %v3246 = vadd.f32 %v609, %v3245
        %v3247 = vpop.f32.mrb[0].mxu0
        %v3248 = vpop.f32.mrb[0].mxu0
        %v3249 = vadd.f32 %v609, %v3248
        %v3250 = vpop.f32.mrb[0].mxu0
        %3251 = vmatprep.mubr.bf16.mxu0 %v1744
        %3252 = vmatmul.mubr.bf16.gmra.mrb[0].mxu0 %v1743
        %v3253 = vpop.f32.mrb[0].mxu0
        %v3254 = vadd.f32 %v609, %v3253
        %v3255 = vpop.f32.mrb[0].mxu0
        %v3256 = vpop.f32.mrb[0].mxu0
        %v3257 = vadd.f32 %v609, %v3256
        %v3258 = vpop.f32.mrb[0].mxu0
        %3259 = vmatprep.mubr.bf16.mxu0 %v1746
        %3260 = vmatmul.mubr.bf16.gmra.mrb[0].mxu0 %v1745
        %v3261 = vpop.f32.mrb[0].mxu0
        %v3262 = vadd.f32 %v609, %v3261
        %v3263 = vpop.f32.mrb[0].mxu0
        %v3264 = vpop.f32.mrb[0].mxu0
        %v3265 = vadd.f32 %v609, %v3264
        %v3266 = vpop.f32.mrb[0].mxu0
        %3267 = vmatprep.mubr.bf16.mxu0 %v1748
        %3268 = vmatmul.mubr.bf16.gmra.mrb[0].mxu0 %v1747
        %v3269 = vpop.f32.mrb[0].mxu0
        %v3270 = vadd.f32 %v609, %v3269
        %v3271 = vpop.f32.mrb[0].mxu0
        %v3272 = vpop.f32.mrb[0].mxu0
        %v3273 = vadd.f32 %v609, %v3272
        %v3274 = vpop.f32.mrb[0].mxu0
        %3275 = vmatprep.mubr.bf16.mxu0 %v1750
        %3276 = vmatmul.mubr.bf16.gmra.mrb[0].mxu0 %v1749
        %v3277 = vpop.f32.mrb[0].mxu0
        %v3278 = vadd.f32 %v609, %v3277
        %v3279 = vpop.f32.mrb[0].mxu0
        %v3280 = vpop.f32.mrb[0].mxu0
        %v3281 = vadd.f32 %v609, %v3280
        %v3282 = vpop.f32.mrb[0].mxu0
        %3283 = vmatprep.mubr.bf16.mxu0 %v1752
        %3284 = vmatmul.mubr.bf16.gmra.mrb[0].mxu0 %v1751
        %v3285 = vpop.f32.mrb[0].mxu0
        %v3286 = vadd.f32 %v609, %v3285
        %v3287 = vpop.f32.mrb[0].mxu0
        %v3288 = vpop.f32.mrb[0].mxu0
        %v3289 = vadd.f32 %v609, %v3288
        %v3290 = vpop.f32.mrb[0].mxu0
        %3291 = vmatprep.mubr.bf16.mxu0 %v1754
        %3292 = vmatmul.mubr.bf16.gmra.mrb[0].mxu0 %v1753
        %v3293 = vpop.f32.mrb[0].mxu0
        %v3294 = vadd.f32 %v609, %v3293
        %v3295 = vpop.f32.mrb[0].mxu0
        %v3296 = vpop.f32.mrb[0].mxu0
        %v3297 = vadd.f32 %v609, %v3296
        %v3298 = vpop.f32.mrb[0].mxu0
        %3299 = vmatprep.mubr.bf16.mxu0 %v1756
        %3300 = vmatmul.mubr.bf16.gmra.mrb[0].mxu0 %v1755
        %v3301 = vpop.f32.mrb[0].mxu0
        %v3302 = vadd.f32 %v609, %v3301
        %v3303 = vpop.f32.mrb[0].mxu0
        %v3304 = vpop.f32.mrb[0].mxu0
        %v3305 = vadd.f32 %v609, %v3304
        %v3306 = vpop.f32.mrb[0].mxu0
        %3307 = vmatprep.mubr.bf16.mxu0 %v1758
        %3308 = vmatmul.mubr.bf16.gmra.mrb[0].mxu0 %v1757
        %v3309 = vpop.f32.mrb[0].mxu0
        %v3310 = vadd.f32 %v609, %v3309
        %v3311 = vpop.f32.mrb[0].mxu0
        %v3312 = vpop.f32.mrb[0].mxu0
        %v3313 = vadd.f32 %v609, %v3312
        %v3314 = vpop.f32.mrb[0].mxu0
        %3315 = vmatprep.mubr.bf16.mxu0 %v1760
        %3316 = vmatmul.mubr.bf16.gmra.mrb[0].mxu0 %v1759
        %v3317 = vpop.f32.mrb[0].mxu0
        %v3318 = vadd.f32 %v609, %v3317
        %v3319 = vpop.f32.mrb[0].mxu0
        %v3320 = vpop.f32.mrb[0].mxu0
        %v3321 = vadd.f32 %v609, %v3320
        %v3322 = vpop.f32.mrb[0].mxu0
        %3323 = vmatprep.mubr.bf16.mxu0 %v1762
        %3324 = vmatmul.mubr.bf16.gmra.mrb[0].mxu0 %v1761
        %v3325 = vpop.f32.mrb[0].mxu0
        %v3326 = vadd.f32 %v609, %v3325
        %v3327 = vpop.f32.mrb[0].mxu0
        %v3328 = vpop.f32.mrb[0].mxu0
        %v3329 = vadd.f32 %v609, %v3328
        %v3330 = vpop.f32.mrb[0].mxu0
        %3331 = vdwg.mxu0
        %v3332 = vmax.f32 %v2182, 0.0
        %v3333 = vmax.f32 %v2185, 0.0
        %v3334 = vmax.f32 %v2190, 0.0
        %v3335 = vmax.f32 %v2193, 0.0
        %v3336 = vmax.f32 %v2198, 0.0
        %v3337 = vmax.f32 %v2201, 0.0
        %v3338 = vmax.f32 %v2206, 0.0
        %v3339 = vmax.f32 %v2209, 0.0
        %v3340 = vmax.f32 %v2214, 0.0
        %v3341 = vmax.f32 %v2217, 0.0
        %v3342 = vmax.f32 %v2222, 0.0
        %v3343 = vmax.f32 %v2225, 0.0
        %v3344 = vmax.f32 %v2230, 0.0
        %v3345 = vmax.f32 %v2233, 0.0
        %v3346 = vmax.f32 %v2238, 0.0
        %v3347 = vmax.f32 %v2241, 0.0
        %v3348 = vmax.f32 %v2246, 0.0
        %v3349 = vmax.f32 %v2249, 0.0
        %v3350 = vmax.f32 %v2254, 0.0
        %v3351 = vmax.f32 %v2257, 0.0
        %v3352 = vmax.f32 %v2262, 0.0
        %v3353 = vmax.f32 %v2265, 0.0
        %v3354 = vmax.f32 %v2270, 0.0
        %v3355 = vmax.f32 %v2273, 0.0
        %v3356 = vmax.f32 %v2278, 0.0
        %v3357 = vmax.f32 %v2281, 0.0
        %v3358 = vmax.f32 %v2286, 0.0
        %v3359 = vmax.f32 %v2289, 0.0
        %v3360 = vmax.f32 %v2294, 0.0
        %v3361 = vmax.f32 %v2297, 0.0
        %v3362 = vmax.f32 %v2302, 0.0
        %v3363 = vmax.f32 %v2305, 0.0
        %v3364 = vmax.f32 %v2310, 0.0
        %v3365 = vmax.f32 %v2313, 0.0
        %v3366 = vmax.f32 %v2318, 0.0
        %v3367 = vmax.f32 %v2321, 0.0
        %v3368 = vmax.f32 %v2326, 0.0
        %v3369 = vmax.f32 %v2329, 0.0
        %v3370 = vmax.f32 %v2334, 0.0
        %v3371 = vmax.f32 %v2337, 0.0
        %v3372 = vmax.f32 %v2342, 0.0
        %v3373 = vmax.f32 %v2345, 0.0
        %v3374 = vmax.f32 %v2350, 0.0
        %v3375 = vmax.f32 %v2353, 0.0
        %v3376 = vmax.f32 %v2358, 0.0
        %v3377 = vmax.f32 %v2361, 0.0
        %v3378 = vmax.f32 %v2366, 0.0
        %v3379 = vmax.f32 %v2369, 0.0
        %v3380 = vmax.f32 %v2374, 0.0
        %v3381 = vmax.f32 %v2377, 0.0
        %v3382 = vmax.f32 %v2382, 0.0
        %v3383 = vmax.f32 %v2385, 0.0
        %v3384 = vmax.f32 %v2390, 0.0
        %v3385 = vmax.f32 %v2393, 0.0
        %v3386 = vmax.f32 %v2398, 0.0
        %v3387 = vmax.f32 %v2401, 0.0
        %v3388 = vmax.f32 %v2406, 0.0
        %v3389 = vmax.f32 %v2409, 0.0
        %v3390 = vmax.f32 %v2414, 0.0
        %v3391 = vmax.f32 %v2417, 0.0
        %v3392 = vmax.f32 %v2422, 0.0
        %v3393 = vmax.f32 %v2425, 0.0
        %v3394 = vmax.f32 %v2430, 0.0
        %v3395 = vmax.f32 %v2433, 0.0
        %v3396 = vmax.f32 %v2438, 0.0
        %v3397 = vmax.f32 %v2441, 0.0
        %v3398 = vmax.f32 %v2446, 0.0
        %v3399 = vmax.f32 %v2449, 0.0
        %v3400 = vmax.f32 %v2454, 0.0
        %v3401 = vmax.f32 %v2457, 0.0
        %v3402 = vmax.f32 %v2462, 0.0
        %v3403 = vmax.f32 %v2465, 0.0
        %v3404 = vmax.f32 %v2470, 0.0
        %v3405 = vmax.f32 %v2473, 0.0
        %v3406 = vmax.f32 %v2478, 0.0
        %v3407 = vmax.f32 %v2481, 0.0
        %v3408 = vmax.f32 %v2486, 0.0
        %v3409 = vmax.f32 %v2489, 0.0
        %v3410 = vmax.f32 %v2494, 0.0
        %v3411 = vmax.f32 %v2497, 0.0
        %v3412 = vmax.f32 %v2502, 0.0
        %v3413 = vmax.f32 %v2505, 0.0
        %v3414 = vmax.f32 %v2510, 0.0
        %v3415 = vmax.f32 %v2513, 0.0
        %v3416 = vmax.f32 %v2518, 0.0
        %v3417 = vmax.f32 %v2521, 0.0
        %v3418 = vmax.f32 %v2526, 0.0
        %v3419 = vmax.f32 %v2529, 0.0
        %v3420 = vmax.f32 %v2534, 0.0
        %v3421 = vmax.f32 %v2537, 0.0
        %v3422 = vmax.f32 %v2542, 0.0
        %v3423 = vmax.f32 %v2545, 0.0
        %v3424 = vmax.f32 %v2550, 0.0
        %v3425 = vmax.f32 %v2553, 0.0
        %v3426 = vmax.f32 %v2558, 0.0
        %v3427 = vmax.f32 %v2561, 0.0
        %v3428 = vmax.f32 %v2566, 0.0
        %v3429 = vmax.f32 %v2569, 0.0
        %v3430 = vmax.f32 %v2574, 0.0
        %v3431 = vmax.f32 %v2577, 0.0
        %v3432 = vmax.f32 %v2582, 0.0
        %v3433 = vmax.f32 %v2585, 0.0
        %v3434 = vmax.f32 %v2590, 0.0
        %v3435 = vmax.f32 %v2593, 0.0
        %v3436 = vmax.f32 %v2598, 0.0
        %v3437 = vmax.f32 %v2601, 0.0
        %v3438 = vmax.f32 %v2606, 0.0
        %v3439 = vmax.f32 %v2609, 0.0
        %v3440 = vmax.f32 %v2614, 0.0
        %v3441 = vmax.f32 %v2617, 0.0
        %v3442 = vmax.f32 %v2622, 0.0
        %v3443 = vmax.f32 %v2625, 0.0
        %v3444 = vmax.f32 %v2630, 0.0
        %v3445 = vmax.f32 %v2633, 0.0
        %v3446 = vmax.f32 %v2638, 0.0
        %v3447 = vmax.f32 %v2641, 0.0
        %v3448 = vmax.f32 %v2646, 0.0
        %v3449 = vmax.f32 %v2649, 0.0
        %v3450 = vmax.f32 %v2654, 0.0
        %v3451 = vmax.f32 %v2657, 0.0
        %v3452 = vmax.f32 %v2662, 0.0
        %v3453 = vmax.f32 %v2665, 0.0
        %v3454 = vmax.f32 %v2670, 0.0
        %v3455 = vmax.f32 %v2673, 0.0
        %v3456 = vmax.f32 %v2678, 0.0
        %v3457 = vmax.f32 %v2681, 0.0
        %v3458 = vmax.f32 %v2686, 0.0
        %v3459 = vmax.f32 %v2689, 0.0
        %v3460 = vmax.f32 %v2694, 0.0
        %v3461 = vmax.f32 %v2697, 0.0
        %v3462 = vmax.f32 %v2702, 0.0
        %v3463 = vmax.f32 %v2705, 0.0
        %v3464 = vmax.f32 %v2710, 0.0
        %v3465 = vmax.f32 %v2713, 0.0
        %v3466 = vmax.f32 %v2718, 0.0
        %v3467 = vmax.f32 %v2721, 0.0
        %v3468 = vmax.f32 %v2726, 0.0
        %v3469 = vmax.f32 %v2729, 0.0
        %v3470 = vmax.f32 %v2734, 0.0
        %v3471 = vmax.f32 %v2737, 0.0
        %v3472 = vmax.f32 %v2742, 0.0
        %v3473 = vmax.f32 %v2745, 0.0
        %v3474 = vmax.f32 %v2750, 0.0
        %v3475 = vmax.f32 %v2753, 0.0
        %v3476 = vmax.f32 %v2758, 0.0
        %v3477 = vmax.f32 %v2761, 0.0
        %v3478 = vmax.f32 %v2766, 0.0
        %v3479 = vmax.f32 %v2769, 0.0
        %v3480 = vmax.f32 %v2774, 0.0
        %v3481 = vmax.f32 %v2777, 0.0
        %v3482 = vmax.f32 %v2782, 0.0
        %v3483 = vmax.f32 %v2785, 0.0
        %v3484 = vmax.f32 %v2790, 0.0
        %v3485 = vmax.f32 %v2793, 0.0
        %v3486 = vmax.f32 %v2798, 0.0
        %v3487 = vmax.f32 %v2801, 0.0
        %v3488 = vmax.f32 %v2806, 0.0
        %v3489 = vmax.f32 %v2809, 0.0
        %v3490 = vmax.f32 %v2814, 0.0
        %v3491 = vmax.f32 %v2817, 0.0
        %v3492 = vmax.f32 %v2822, 0.0
        %v3493 = vmax.f32 %v2825, 0.0
        %v3494 = vmax.f32 %v2830, 0.0
        %v3495 = vmax.f32 %v2833, 0.0
        %v3496 = vmax.f32 %v2838, 0.0
        %v3497 = vmax.f32 %v2841, 0.0
        %v3498 = vmax.f32 %v2846, 0.0
        %v3499 = vmax.f32 %v2849, 0.0
        %v3500 = vmax.f32 %v2854, 0.0
        %v3501 = vmax.f32 %v2857, 0.0
        %v3502 = vmax.f32 %v2862, 0.0
        %v3503 = vmax.f32 %v2865, 0.0
        %v3504 = vmax.f32 %v2870, 0.0
        %v3505 = vmax.f32 %v2873, 0.0
        %v3506 = vmax.f32 %v2878, 0.0
        %v3507 = vmax.f32 %v2881, 0.0
        %v3508 = vmax.f32 %v2886, 0.0
        %v3509 = vmax.f32 %v2889, 0.0
        %v3510 = vmax.f32 %v2894, 0.0
        %v3511 = vmax.f32 %v2897, 0.0
        %v3512 = vmax.f32 %v2902, 0.0
        %v3513 = vmax.f32 %v2905, 0.0
        %v3514 = vmax.f32 %v2910, 0.0
        %v3515 = vmax.f32 %v2913, 0.0
        %v3516 = vmax.f32 %v2918, 0.0
        %v3517 = vmax.f32 %v2921, 0.0
        %v3518 = vmax.f32 %v2926, 0.0
        %v3519 = vmax.f32 %v2929, 0.0
        %v3520 = vmax.f32 %v2934, 0.0
        %v3521 = vmax.f32 %v2937, 0.0
        %v3522 = vmax.f32 %v2942, 0.0
        %v3523 = vmax.f32 %v2945, 0.0
        %v3524 = vmax.f32 %v2950, 0.0
        %v3525 = vmax.f32 %v2953, 0.0
        %v3526 = vmax.f32 %v2958, 0.0
        %v3527 = vmax.f32 %v2961, 0.0
        %v3528 = vmax.f32 %v2966, 0.0
        %v3529 = vmax.f32 %v2969, 0.0
        %v3530 = vmax.f32 %v2974, 0.0
        %v3531 = vmax.f32 %v2977, 0.0
        %v3532 = vmax.f32 %v2982, 0.0
        %v3533 = vmax.f32 %v2985, 0.0
        %v3534 = vmax.f32 %v2990, 0.0
        %v3535 = vmax.f32 %v2993, 0.0
        %v3536 = vmax.f32 %v2998, 0.0
        %v3537 = vmax.f32 %v3001, 0.0
        %v3538 = vmax.f32 %v3006, 0.0
        %v3539 = vmax.f32 %v3009, 0.0
        %v3540 = vmax.f32 %v3014, 0.0
        %v3541 = vmax.f32 %v3017, 0.0
        %v3542 = vmax.f32 %v3022, 0.0
        %v3543 = vmax.f32 %v3025, 0.0
        %v3544 = vmax.f32 %v3030, 0.0
        %v3545 = vmax.f32 %v3033, 0.0
        %v3546 = vmax.f32 %v3038, 0.0
        %v3547 = vmax.f32 %v3041, 0.0
        %v3548 = vmax.f32 %v3046, 0.0
        %v3549 = vmax.f32 %v3049, 0.0
        %v3550 = vmax.f32 %v3054, 0.0
        %v3551 = vmax.f32 %v3057, 0.0
        %v3552 = vmax.f32 %v3062, 0.0
        %v3553 = vmax.f32 %v3065, 0.0
        %v3554 = vmax.f32 %v3070, 0.0
        %v3555 = vmax.f32 %v3073, 0.0
        %v3556 = vmax.f32 %v3078, 0.0
        %v3557 = vmax.f32 %v3081, 0.0
        %v3558 = vmax.f32 %v3086, 0.0
        %v3559 = vmax.f32 %v3089, 0.0
        %v3560 = vmax.f32 %v3094, 0.0
        %v3561 = vmax.f32 %v3097, 0.0
        %v3562 = vmax.f32 %v3102, 0.0
        %v3563 = vmax.f32 %v3105, 0.0
        %v3564 = vmax.f32 %v3110, 0.0
        %v3565 = vmax.f32 %v3113, 0.0
        %v3566 = vmax.f32 %v3118, 0.0
        %v3567 = vmax.f32 %v3121, 0.0
        %v3568 = vmax.f32 %v3126, 0.0
        %v3569 = vmax.f32 %v3129, 0.0
        %v3570 = vmax.f32 %v3134, 0.0
        %v3571 = vmax.f32 %v3137, 0.0
        %v3572 = vmax.f32 %v3142, 0.0
        %v3573 = vmax.f32 %v3145, 0.0
        %v3574 = vmax.f32 %v3150, 0.0
        %v3575 = vmax.f32 %v3153, 0.0
        %v3576 = vmax.f32 %v3158, 0.0
        %v3577 = vmax.f32 %v3161, 0.0
        %v3578 = vmax.f32 %v3166, 0.0
        %v3579 = vmax.f32 %v3169, 0.0
        %v3580 = vmax.f32 %v3174, 0.0
        %v3581 = vmax.f32 %v3177, 0.0
        %v3582 = vmax.f32 %v3182, 0.0
        %v3583 = vmax.f32 %v3185, 0.0
        %v3584 = vmax.f32 %v3190, 0.0
        %v3585 = vmax.f32 %v3193, 0.0
        %v3586 = vmax.f32 %v3198, 0.0
        %v3587 = vmax.f32 %v3201, 0.0
        %v3588 = vmax.f32 %v3206, 0.0
        %v3589 = vmax.f32 %v3209, 0.0
        %v3590 = vmax.f32 %v3214, 0.0
        %v3591 = vmax.f32 %v3217, 0.0
        %v3592 = vmax.f32 %v3222, 0.0
        %v3593 = vmax.f32 %v3225, 0.0
        %v3594 = vmax.f32 %v3230, 0.0
        %v3595 = vmax.f32 %v3233, 0.0
        %v3596 = vmax.f32 %v3238, 0.0
        %v3597 = vmax.f32 %v3241, 0.0
        %v3598 = vmax.f32 %v3246, 0.0
        %v3599 = vmax.f32 %v3249, 0.0
        %v3600 = vmax.f32 %v3254, 0.0
        %v3601 = vmax.f32 %v3257, 0.0
        %v3602 = vmax.f32 %v3262, 0.0
        %v3603 = vmax.f32 %v3265, 0.0
        %v3604 = vmax.f32 %v3270, 0.0
        %v3605 = vmax.f32 %v3273, 0.0
        %v3606 = vmax.f32 %v3278, 0.0
        %v3607 = vmax.f32 %v3281, 0.0
        %v3608 = vmax.f32 %v3286, 0.0
        %v3609 = vmax.f32 %v3289, 0.0
        %v3610 = vmax.f32 %v3294, 0.0
        %v3611 = vmax.f32 %v3297, 0.0
        %v3612 = vmax.f32 %v3302, 0.0
        %v3613 = vmax.f32 %v3305, 0.0
        %v3614 = vmax.f32 %v3310, 0.0
        %v3615 = vmax.f32 %v3313, 0.0
        %v3616 = vmax.f32 %v3318, 0.0
        %v3617 = vmax.f32 %v3321, 0.0
        %v3618 = vmax.f32 %v3326, 0.0
        %v3619 = vmax.f32 %v3329, 0.0
        %v3620 = vpack.c.bf16 %v3333, %v3332
        %v3621 = vpack.c.bf16 %v3335, %v3334
        %v3622 = vpack.c.bf16 %v3337, %v3336
        %v3623 = vpack.c.bf16 %v3339, %v3338
        %v3624 = vpack.c.bf16 %v3341, %v3340
        %v3625 = vpack.c.bf16 %v3343, %v3342
        %v3626 = vpack.c.bf16 %v3345, %v3344
        %v3627 = vpack.c.bf16 %v3347, %v3346
        %v3628 = vpack.c.bf16 %v3349, %v3348
        %v3629 = vpack.c.bf16 %v3351, %v3350
        %v3630 = vpack.c.bf16 %v3353, %v3352
        %v3631 = vpack.c.bf16 %v3355, %v3354
        %v3632 = vpack.c.bf16 %v3357, %v3356
        %v3633 = vpack.c.bf16 %v3359, %v3358
        %v3634 = vpack.c.bf16 %v3361, %v3360
        %v3635 = vpack.c.bf16 %v3363, %v3362
        %v3636 = vpack.c.bf16 %v3365, %v3364
        %v3637 = vpack.c.bf16 %v3367, %v3366
        %v3638 = vpack.c.bf16 %v3369, %v3368
        %v3639 = vpack.c.bf16 %v3371, %v3370
        %v3640 = vpack.c.bf16 %v3373, %v3372
        %v3641 = vpack.c.bf16 %v3375, %v3374
        %v3642 = vpack.c.bf16 %v3377, %v3376
        %v3643 = vpack.c.bf16 %v3379, %v3378
        %v3644 = vpack.c.bf16 %v3381, %v3380
        %v3645 = vpack.c.bf16 %v3383, %v3382
        %v3646 = vpack.c.bf16 %v3385, %v3384
        %v3647 = vpack.c.bf16 %v3387, %v3386
        %v3648 = vpack.c.bf16 %v3389, %v3388
        %v3649 = vpack.c.bf16 %v3391, %v3390
        %v3650 = vpack.c.bf16 %v3393, %v3392
        %v3651 = vpack.c.bf16 %v3395, %v3394
        %v3652 = vpack.c.bf16 %v3397, %v3396
        %v3653 = vpack.c.bf16 %v3399, %v3398
        %v3654 = vpack.c.bf16 %v3401, %v3400
        %v3655 = vpack.c.bf16 %v3403, %v3402
        %v3656 = vpack.c.bf16 %v3405, %v3404
        %v3657 = vpack.c.bf16 %v3407, %v3406
        %v3658 = vpack.c.bf16 %v3409, %v3408
        %v3659 = vpack.c.bf16 %v3411, %v3410
        %v3660 = vpack.c.bf16 %v3413, %v3412
        %v3661 = vpack.c.bf16 %v3415, %v3414
        %v3662 = vpack.c.bf16 %v3417, %v3416
        %v3663 = vpack.c.bf16 %v3419, %v3418
        %v3664 = vpack.c.bf16 %v3421, %v3420
        %v3665 = vpack.c.bf16 %v3423, %v3422
        %v3666 = vpack.c.bf16 %v3425, %v3424
        %v3667 = vpack.c.bf16 %v3427, %v3426
        %v3668 = vpack.c.bf16 %v3429, %v3428
        %v3669 = vpack.c.bf16 %v3431, %v3430
        %v3670 = vpack.c.bf16 %v3433, %v3432
        %v3671 = vpack.c.bf16 %v3435, %v3434
        %v3672 = vpack.c.bf16 %v3437, %v3436
        %v3673 = vpack.c.bf16 %v3439, %v3438
        %v3674 = vpack.c.bf16 %v3441, %v3440
        %v3675 = vpack.c.bf16 %v3443, %v3442
        %v3676 = vpack.c.bf16 %v3445, %v3444
        %v3677 = vpack.c.bf16 %v3447, %v3446
        %v3678 = vpack.c.bf16 %v3449, %v3448
        %v3679 = vpack.c.bf16 %v3451, %v3450
        %v3680 = vpack.c.bf16 %v3453, %v3452
        %v3681 = vpack.c.bf16 %v3455, %v3454
        %v3682 = vpack.c.bf16 %v3457, %v3456
        %v3683 = vpack.c.bf16 %v3459, %v3458
        %v3684 = vpack.c.bf16 %v3461, %v3460
        %v3685 = vpack.c.bf16 %v3463, %v3462
        %v3686 = vpack.c.bf16 %v3465, %v3464
        %v3687 = vpack.c.bf16 %v3467, %v3466
        %v3688 = vpack.c.bf16 %v3469, %v3468
        %v3689 = vpack.c.bf16 %v3471, %v3470
        %v3690 = vpack.c.bf16 %v3473, %v3472
        %v3691 = vpack.c.bf16 %v3475, %v3474
        %v3692 = vpack.c.bf16 %v3477, %v3476
        %v3693 = vpack.c.bf16 %v3479, %v3478
        %v3694 = vpack.c.bf16 %v3481, %v3480
        %v3695 = vpack.c.bf16 %v3483, %v3482
        %v3696 = vpack.c.bf16 %v3485, %v3484
        %v3697 = vpack.c.bf16 %v3487, %v3486
        %v3698 = vpack.c.bf16 %v3489, %v3488
        %v3699 = vpack.c.bf16 %v3491, %v3490
        %v3700 = vpack.c.bf16 %v3493, %v3492
        %v3701 = vpack.c.bf16 %v3495, %v3494
        %v3702 = vpack.c.bf16 %v3497, %v3496
        %v3703 = vpack.c.bf16 %v3499, %v3498
        %v3704 = vpack.c.bf16 %v3501, %v3500
        %v3705 = vpack.c.bf16 %v3503, %v3502
        %v3706 = vpack.c.bf16 %v3505, %v3504
        %v3707 = vpack.c.bf16 %v3507, %v3506
        %v3708 = vpack.c.bf16 %v3509, %v3508
        %v3709 = vpack.c.bf16 %v3511, %v3510
        %v3710 = vpack.c.bf16 %v3513, %v3512
        %v3711 = vpack.c.bf16 %v3515, %v3514
        %v3712 = vpack.c.bf16 %v3517, %v3516
        %v3713 = vpack.c.bf16 %v3519, %v3518
        %v3714 = vpack.c.bf16 %v3521, %v3520
        %v3715 = vpack.c.bf16 %v3523, %v3522
        %v3716 = vpack.c.bf16 %v3525, %v3524
        %v3717 = vpack.c.bf16 %v3527, %v3526
        %v3718 = vpack.c.bf16 %v3529, %v3528
        %v3719 = vpack.c.bf16 %v3531, %v3530
        %v3720 = vpack.c.bf16 %v3533, %v3532
        %v3721 = vpack.c.bf16 %v3535, %v3534
        %v3722 = vpack.c.bf16 %v3537, %v3536
        %v3723 = vpack.c.bf16 %v3539, %v3538
        %v3724 = vpack.c.bf16 %v3541, %v3540
        %v3725 = vpack.c.bf16 %v3543, %v3542
        %v3726 = vpack.c.bf16 %v3545, %v3544
        %v3727 = vpack.c.bf16 %v3547, %v3546
        %v3728 = vpack.c.bf16 %v3549, %v3548
        %v3729 = vpack.c.bf16 %v3551, %v3550
        %v3730 = vpack.c.bf16 %v3553, %v3552
        %v3731 = vpack.c.bf16 %v3555, %v3554
        %v3732 = vpack.c.bf16 %v3557, %v3556
        %v3733 = vpack.c.bf16 %v3559, %v3558
        %v3734 = vpack.c.bf16 %v3561, %v3560
        %v3735 = vpack.c.bf16 %v3563, %v3562
        %v3736 = vpack.c.bf16 %v3565, %v3564
        %v3737 = vpack.c.bf16 %v3567, %v3566
        %v3738 = vpack.c.bf16 %v3569, %v3568
        %v3739 = vpack.c.bf16 %v3571, %v3570
        %v3740 = vpack.c.bf16 %v3573, %v3572
        %v3741 = vpack.c.bf16 %v3575, %v3574
        %v3742 = vpack.c.bf16 %v3577, %v3576
        %v3743 = vpack.c.bf16 %v3579, %v3578
        %v3744 = vpack.c.bf16 %v3581, %v3580
        %v3745 = vpack.c.bf16 %v3583, %v3582
        %v3746 = vpack.c.bf16 %v3585, %v3584
        %v3747 = vpack.c.bf16 %v3587, %v3586
        %v3748 = vpack.c.bf16 %v3589, %v3588
        %v3749 = vpack.c.bf16 %v3591, %v3590
        %v3750 = vpack.c.bf16 %v3593, %v3592
        %v3751 = vpack.c.bf16 %v3595, %v3594
        %v3752 = vpack.c.bf16 %v3597, %v3596
        %v3753 = vpack.c.bf16 %v3599, %v3598
        %v3754 = vpack.c.bf16 %v3601, %v3600
        %v3755 = vpack.c.bf16 %v3603, %v3602
        %v3756 = vpack.c.bf16 %v3605, %v3604
        %v3757 = vpack.c.bf16 %v3607, %v3606
        %v3758 = vpack.c.bf16 %v3609, %v3608
        %v3759 = vpack.c.bf16 %v3611, %v3610
        %v3760 = vpack.c.bf16 %v3613, %v3612
        %v3761 = vpack.c.bf16 %v3615, %v3614
        %v3762 = vpack.c.bf16 %v3617, %v3616
        %v3763 = vpack.c.bf16 %v3619, %v3618
        %vm3764 = vcmask 261120
        %3765 = vst.msk [vmem:[#allocation2] sm:$0xff] %vm3764, %v3620
        %3766 = vst.msk [vmem:[#allocation2 + $0x20] sm:$0xff] %vm3764, %v3621
        %3767 = vst.msk [vmem:[#allocation2 + $0x40] sm:$0xff] %vm3764, %v3622
        %3768 = vst.msk [vmem:[#allocation2 + $0x60] sm:$0xff] %vm3764, %v3623
        %3769 = vst.msk [vmem:[#allocation2 + $0x80] sm:$0xff] %vm3764, %v3624
        %3770 = vst.msk [vmem:[#allocation2 + $0xa0] sm:$0xff] %vm3764, %v3625
        %3771 = vst.msk [vmem:[#allocation2 + $0xc0] sm:$0xff] %vm3764, %v3626
        %3772 = vst.msk [vmem:[#allocation2 + $0xe0] sm:$0xff] %vm3764, %v3627
        %3773 = vst.msk [vmem:[#allocation2 + $0x100] sm:$0xff] %vm3764, %v3628
        %3783 = vrot.lane.b32.xlu0 %v3629, 32
        %v3784 = vpop.permute.xlu0 %3783
        %3785 = vrot.lane.b32.xlu0 %v3630, 32
        %v3786 = vpop.permute.xlu0 %3785
        %3787 = vrot.lane.b32.xlu0 %v3631, 32
        %v3788 = vpop.permute.xlu0 %3787
        %3789 = vrot.lane.b32.xlu0 %v3632, 32
        %v3790 = vpop.permute.xlu0 %3789
        %3791 = vrot.lane.b32.xlu0 %v3633, 32
        %v3792 = vpop.permute.xlu0 %3791
        %3793 = vrot.lane.b32.xlu0 %v3634, 32
        %v3794 = vpop.permute.xlu0 %3793
        %3795 = vrot.lane.b32.xlu0 %v3635, 32
        %v3796 = vpop.permute.xlu0 %3795
        %3797 = vrot.lane.b32.xlu0 %v3636, 32
        %v3798 = vpop.permute.xlu0 %3797
        %3799 = vrot.lane.b32.xlu0 %v3637, 32
        %v3800 = vpop.permute.xlu0 %3799
        %vm3810 = vcmask 523520
        %3811 = vst.msk [vmem:[#allocation2] sm:$0xff] %vm3810, %v3784
        %3812 = vst.msk [vmem:[#allocation2 + $0x20] sm:$0xff] %vm3810, %v3786
        %3813 = vst.msk [vmem:[#allocation2 + $0x40] sm:$0xff] %vm3810, %v3788
        %3814 = vst.msk [vmem:[#allocation2 + $0x60] sm:$0xff] %vm3810, %v3790
        %3815 = vst.msk [vmem:[#allocation2 + $0x80] sm:$0xff] %vm3810, %v3792
        %3816 = vst.msk [vmem:[#allocation2 + $0xa0] sm:$0xff] %vm3810, %v3794
        %3817 = vst.msk [vmem:[#allocation2 + $0xc0] sm:$0xff] %vm3810, %v3796
        %3818 = vst.msk [vmem:[#allocation2 + $0xe0] sm:$0xff] %vm3810, %v3798
        %3819 = vst.msk [vmem:[#allocation2 + $0x100] sm:$0xff] %vm3810, %v3800
        %3829 = vrot.lane.b32.xlu0 %v3638, 64
        %v3830 = vpop.permute.xlu0 %3829
        %3831 = vrot.lane.b32.xlu0 %v3639, 64
        %v3832 = vpop.permute.xlu0 %3831
        %3833 = vrot.lane.b32.xlu0 %v3640, 64
        %v3834 = vpop.permute.xlu0 %3833
        %3835 = vrot.lane.b32.xlu0 %v3641, 64
        %v3836 = vpop.permute.xlu0 %3835
        %3837 = vrot.lane.b32.xlu0 %v3642, 64
        %v3838 = vpop.permute.xlu0 %3837
        %3839 = vrot.lane.b32.xlu0 %v3643, 64
        %v3840 = vpop.permute.xlu0 %3839
        %3841 = vrot.lane.b32.xlu0 %v3644, 64
        %v3842 = vpop.permute.xlu0 %3841
        %3843 = vrot.lane.b32.xlu0 %v3645, 64
        %v3844 = vpop.permute.xlu0 %3843
        %3845 = vrot.lane.b32.xlu0 %v3646, 64
        %v3846 = vpop.permute.xlu0 %3845
        %vm3856 = vcmask 785920
        %3857 = vst.msk [vmem:[#allocation2] sm:$0xff] %vm3856, %v3830
        %3858 = vst.msk [vmem:[#allocation2 + $0x20] sm:$0xff] %vm3856, %v3832
        %3859 = vst.msk [vmem:[#allocation2 + $0x40] sm:$0xff] %vm3856, %v3834
        %3860 = vst.msk [vmem:[#allocation2 + $0x60] sm:$0xff] %vm3856, %v3836
        %3861 = vst.msk [vmem:[#allocation2 + $0x80] sm:$0xff] %vm3856, %v3838
        %3862 = vst.msk [vmem:[#allocation2 + $0xa0] sm:$0xff] %vm3856, %v3840
        %3863 = vst.msk [vmem:[#allocation2 + $0xc0] sm:$0xff] %vm3856, %v3842
        %3864 = vst.msk [vmem:[#allocation2 + $0xe0] sm:$0xff] %vm3856, %v3844
        %3865 = vst.msk [vmem:[#allocation2 + $0x100] sm:$0xff] %vm3856, %v3846
        %3875 = vrot.lane.b32.xlu0 %v3647, 96
        %v3876 = vpop.permute.xlu0 %3875
        %3877 = vrot.lane.b32.xlu0 %v3648, 96
        %v3878 = vpop.permute.xlu0 %3877
        %3879 = vrot.lane.b32.xlu0 %v3649, 96
        %v3880 = vpop.permute.xlu0 %3879
        %3881 = vrot.lane.b32.xlu0 %v3650, 96
        %v3882 = vpop.permute.xlu0 %3881
        %3883 = vrot.lane.b32.xlu0 %v3651, 96
        %v3884 = vpop.permute.xlu0 %3883
        %3885 = vrot.lane.b32.xlu0 %v3652, 96
        %v3886 = vpop.permute.xlu0 %3885
        %3887 = vrot.lane.b32.xlu0 %v3653, 96
        %v3888 = vpop.permute.xlu0 %3887
        %3889 = vrot.lane.b32.xlu0 %v3654, 96
        %v3890 = vpop.permute.xlu0 %3889
        %3891 = vrot.lane.b32.xlu0 %v3655, 96
        %v3892 = vpop.permute.xlu0 %3891
        %vm3902 = vcmask 1048320
        %3903 = vst.msk [vmem:[#allocation2] sm:$0xff] %vm3902, %v3876
        %3904 = vst.msk [vmem:[#allocation2 + $0x20] sm:$0xff] %vm3902, %v3878
        %3905 = vst.msk [vmem:[#allocation2 + $0x40] sm:$0xff] %vm3902, %v3880
        %3906 = vst.msk [vmem:[#allocation2 + $0x60] sm:$0xff] %vm3902, %v3882
        %3907 = vst.msk [vmem:[#allocation2 + $0x80] sm:$0xff] %vm3902, %v3884
        %3908 = vst.msk [vmem:[#allocation2 + $0xa0] sm:$0xff] %vm3902, %v3886
        %3909 = vst.msk [vmem:[#allocation2 + $0xc0] sm:$0xff] %vm3902, %v3888
        %3910 = vst.msk [vmem:[#allocation2 + $0xe0] sm:$0xff] %vm3902, %v3890
        %3911 = vst.msk [vmem:[#allocation2 + $0x100] sm:$0xff] %vm3902, %v3892
        %3912 = vst.msk [vmem:[#allocation2 + $0x8] sm:$0xff] %vm3764, %v3656
        %3913 = vst.msk [vmem:[#allocation2 + $0x28] sm:$0xff] %vm3764, %v3657
        %3914 = vst.msk [vmem:[#allocation2 + $0x48] sm:$0xff] %vm3764, %v3658
        %3915 = vst.msk [vmem:[#allocation2 + $0x68] sm:$0xff] %vm3764, %v3659
        %3916 = vst.msk [vmem:[#allocation2 + $0x88] sm:$0xff] %vm3764, %v3660
        %3917 = vst.msk [vmem:[#allocation2 + $0xa8] sm:$0xff] %vm3764, %v3661
        %3918 = vst.msk [vmem:[#allocation2 + $0xc8] sm:$0xff] %vm3764, %v3662
        %3919 = vst.msk [vmem:[#allocation2 + $0xe8] sm:$0xff] %vm3764, %v3663
        %3920 = vst.msk [vmem:[#allocation2 + $0x108] sm:$0xff] %vm3764, %v3664
        %3930 = vrot.lane.b32.xlu0 %v3665, 32
        %v3931 = vpop.permute.xlu0 %3930
        %3932 = vrot.lane.b32.xlu0 %v3666, 32
        %v3933 = vpop.permute.xlu0 %3932
        %3934 = vrot.lane.b32.xlu0 %v3667, 32
        %v3935 = vpop.permute.xlu0 %3934
        %3936 = vrot.lane.b32.xlu0 %v3668, 32
        %v3937 = vpop.permute.xlu0 %3936
        %3938 = vrot.lane.b32.xlu0 %v3669, 32
        %v3939 = vpop.permute.xlu0 %3938
        %3940 = vrot.lane.b32.xlu0 %v3670, 32
        %v3941 = vpop.permute.xlu0 %3940
        %3942 = vrot.lane.b32.xlu0 %v3671, 32
        %v3943 = vpop.permute.xlu0 %3942
        %3944 = vrot.lane.b32.xlu0 %v3672, 32
        %v3945 = vpop.permute.xlu0 %3944
        %3946 = vrot.lane.b32.xlu0 %v3673, 32
        %v3947 = vpop.permute.xlu0 %3946
        %3957 = vst.msk [vmem:[#allocation2 + $0x8] sm:$0xff] %vm3810, %v3931
        %3958 = vst.msk [vmem:[#allocation2 + $0x28] sm:$0xff] %vm3810, %v3933
        %3959 = vst.msk [vmem:[#allocation2 + $0x48] sm:$0xff] %vm3810, %v3935
        %3960 = vst.msk [vmem:[#allocation2 + $0x68] sm:$0xff] %vm3810, %v3937
        %3961 = vst.msk [vmem:[#allocation2 + $0x88] sm:$0xff] %vm3810, %v3939
        %3962 = vst.msk [vmem:[#allocation2 + $0xa8] sm:$0xff] %vm3810, %v3941
        %3963 = vst.msk [vmem:[#allocation2 + $0xc8] sm:$0xff] %vm3810, %v3943
        %3964 = vst.msk [vmem:[#allocation2 + $0xe8] sm:$0xff] %vm3810, %v3945
        %3965 = vst.msk [vmem:[#allocation2 + $0x108] sm:$0xff] %vm3810, %v3947
        %3975 = vrot.lane.b32.xlu0 %v3674, 64
        %v3976 = vpop.permute.xlu0 %3975
        %3977 = vrot.lane.b32.xlu0 %v3675, 64
        %v3978 = vpop.permute.xlu0 %3977
        %3979 = vrot.lane.b32.xlu0 %v3676, 64
        %v3980 = vpop.permute.xlu0 %3979
        %3981 = vrot.lane.b32.xlu0 %v3677, 64
        %v3982 = vpop.permute.xlu0 %3981
        %3983 = vrot.lane.b32.xlu0 %v3678, 64
        %v3984 = vpop.permute.xlu0 %3983
        %3985 = vrot.lane.b32.xlu0 %v3679, 64
        %v3986 = vpop.permute.xlu0 %3985
        %3987 = vrot.lane.b32.xlu0 %v3680, 64
        %v3988 = vpop.permute.xlu0 %3987
        %3989 = vrot.lane.b32.xlu0 %v3681, 64
        %v3990 = vpop.permute.xlu0 %3989
        %3991 = vrot.lane.b32.xlu0 %v3682, 64
        %v3992 = vpop.permute.xlu0 %3991
        %4002 = vst.msk [vmem:[#allocation2 + $0x8] sm:$0xff] %vm3856, %v3976
        %4003 = vst.msk [vmem:[#allocation2 + $0x28] sm:$0xff] %vm3856, %v3978
        %4004 = vst.msk [vmem:[#allocation2 + $0x48] sm:$0xff] %vm3856, %v3980
        %4005 = vst.msk [vmem:[#allocation2 + $0x68] sm:$0xff] %vm3856, %v3982
        %4006 = vst.msk [vmem:[#allocation2 + $0x88] sm:$0xff] %vm3856, %v3984
        %4007 = vst.msk [vmem:[#allocation2 + $0xa8] sm:$0xff] %vm3856, %v3986
        %4008 = vst.msk [vmem:[#allocation2 + $0xc8] sm:$0xff] %vm3856, %v3988
        %4009 = vst.msk [vmem:[#allocation2 + $0xe8] sm:$0xff] %vm3856, %v3990
        %4010 = vst.msk [vmem:[#allocation2 + $0x108] sm:$0xff] %vm3856, %v3992
        %4020 = vrot.lane.b32.xlu0 %v3683, 96
        %v4021 = vpop.permute.xlu0 %4020
        %4022 = vrot.lane.b32.xlu0 %v3684, 96
        %v4023 = vpop.permute.xlu0 %4022
        %4024 = vrot.lane.b32.xlu0 %v3685, 96
        %v4025 = vpop.permute.xlu0 %4024
        %4026 = vrot.lane.b32.xlu0 %v3686, 96
        %v4027 = vpop.permute.xlu0 %4026
        %4028 = vrot.lane.b32.xlu0 %v3687, 96
        %v4029 = vpop.permute.xlu0 %4028
        %4030 = vrot.lane.b32.xlu0 %v3688, 96
        %v4031 = vpop.permute.xlu0 %4030
        %4032 = vrot.lane.b32.xlu0 %v3689, 96
        %v4033 = vpop.permute.xlu0 %4032
        %4034 = vrot.lane.b32.xlu0 %v3690, 96
        %v4035 = vpop.permute.xlu0 %4034
        %4036 = vrot.lane.b32.xlu0 %v3691, 96
        %v4037 = vpop.permute.xlu0 %4036
        %4047 = vst.msk [vmem:[#allocation2 + $0x8] sm:$0xff] %vm3902, %v4021
        %4048 = vst.msk [vmem:[#allocation2 + $0x28] sm:$0xff] %vm3902, %v4023
        %4049 = vst.msk [vmem:[#allocation2 + $0x48] sm:$0xff] %vm3902, %v4025
        %4050 = vst.msk [vmem:[#allocation2 + $0x68] sm:$0xff] %vm3902, %v4027
        %4051 = vst.msk [vmem:[#allocation2 + $0x88] sm:$0xff] %vm3902, %v4029
        %4052 = vst.msk [vmem:[#allocation2 + $0xa8] sm:$0xff] %vm3902, %v4031
        %4053 = vst.msk [vmem:[#allocation2 + $0xc8] sm:$0xff] %vm3902, %v4033
        %4054 = vst.msk [vmem:[#allocation2 + $0xe8] sm:$0xff] %vm3902, %v4035
        %4055 = vst.msk [vmem:[#allocation2 + $0x108] sm:$0xff] %vm3902, %v4037
        %4056 = vst.msk [vmem:[#allocation2 + $0x10] sm:$0xff] %vm3764, %v3692
        %4057 = vst.msk [vmem:[#allocation2 + $0x30] sm:$0xff] %vm3764, %v3693
        %4058 = vst.msk [vmem:[#allocation2 + $0x50] sm:$0xff] %vm3764, %v3694
        %4059 = vst.msk [vmem:[#allocation2 + $0x70] sm:$0xff] %vm3764, %v3695
        %4060 = vst.msk [vmem:[#allocation2 + $0x90] sm:$0xff] %vm3764, %v3696
        %4061 = vst.msk [vmem:[#allocation2 + $0xb0] sm:$0xff] %vm3764, %v3697
        %4062 = vst.msk [vmem:[#allocation2 + $0xd0] sm:$0xff] %vm3764, %v3698
        %4063 = vst.msk [vmem:[#allocation2 + $0xf0] sm:$0xff] %vm3764, %v3699
        %4064 = vst.msk [vmem:[#allocation2 + $0x110] sm:$0xff] %vm3764, %v3700
        %4074 = vrot.lane.b32.xlu0 %v3701, 32
        %v4075 = vpop.permute.xlu0 %4074
        %4076 = vrot.lane.b32.xlu0 %v3702, 32
        %v4077 = vpop.permute.xlu0 %4076
        %4078 = vrot.lane.b32.xlu0 %v3703, 32
        %v4079 = vpop.permute.xlu0 %4078
        %4080 = vrot.lane.b32.xlu0 %v3704, 32
        %v4081 = vpop.permute.xlu0 %4080
        %4082 = vrot.lane.b32.xlu0 %v3705, 32
        %v4083 = vpop.permute.xlu0 %4082
        %4084 = vrot.lane.b32.xlu0 %v3706, 32
        %v4085 = vpop.permute.xlu0 %4084
        %4086 = vrot.lane.b32.xlu0 %v3707, 32
        %v4087 = vpop.permute.xlu0 %4086
        %4088 = vrot.lane.b32.xlu0 %v3708, 32
        %v4089 = vpop.permute.xlu0 %4088
        %4090 = vrot.lane.b32.xlu0 %v3709, 32
        %v4091 = vpop.permute.xlu0 %4090
        %4101 = vst.msk [vmem:[#allocation2 + $0x10] sm:$0xff] %vm3810, %v4075
        %4102 = vst.msk [vmem:[#allocation2 + $0x30] sm:$0xff] %vm3810, %v4077
        %4103 = vst.msk [vmem:[#allocation2 + $0x50] sm:$0xff] %vm3810, %v4079
        %4104 = vst.msk [vmem:[#allocation2 + $0x70] sm:$0xff] %vm3810, %v4081
        %4105 = vst.msk [vmem:[#allocation2 + $0x90] sm:$0xff] %vm3810, %v4083
        %4106 = vst.msk [vmem:[#allocation2 + $0xb0] sm:$0xff] %vm3810, %v4085
        %4107 = vst.msk [vmem:[#allocation2 + $0xd0] sm:$0xff] %vm3810, %v4087
        %4108 = vst.msk [vmem:[#allocation2 + $0xf0] sm:$0xff] %vm3810, %v4089
        %4109 = vst.msk [vmem:[#allocation2 + $0x110] sm:$0xff] %vm3810, %v4091
        %4119 = vrot.lane.b32.xlu0 %v3710, 64
        %v4120 = vpop.permute.xlu0 %4119
        %4121 = vrot.lane.b32.xlu0 %v3711, 64
        %v4122 = vpop.permute.xlu0 %4121
        %4123 = vrot.lane.b32.xlu0 %v3712, 64
        %v4124 = vpop.permute.xlu0 %4123
        %4125 = vrot.lane.b32.xlu0 %v3713, 64
        %v4126 = vpop.permute.xlu0 %4125
        %4127 = vrot.lane.b32.xlu0 %v3714, 64
        %v4128 = vpop.permute.xlu0 %4127
        %4129 = vrot.lane.b32.xlu0 %v3715, 64
        %v4130 = vpop.permute.xlu0 %4129
        %4131 = vrot.lane.b32.xlu0 %v3716, 64
        %v4132 = vpop.permute.xlu0 %4131
        %4133 = vrot.lane.b32.xlu0 %v3717, 64
        %v4134 = vpop.permute.xlu0 %4133
        %4135 = vrot.lane.b32.xlu0 %v3718, 64
        %v4136 = vpop.permute.xlu0 %4135
        %4146 = vst.msk [vmem:[#allocation2 + $0x10] sm:$0xff] %vm3856, %v4120
        %4147 = vst.msk [vmem:[#allocation2 + $0x30] sm:$0xff] %vm3856, %v4122
        %4148 = vst.msk [vmem:[#allocation2 + $0x50] sm:$0xff] %vm3856, %v4124
        %4149 = vst.msk [vmem:[#allocation2 + $0x70] sm:$0xff] %vm3856, %v4126
        %4150 = vst.msk [vmem:[#allocation2 + $0x90] sm:$0xff] %vm3856, %v4128
        %4151 = vst.msk [vmem:[#allocation2 + $0xb0] sm:$0xff] %vm3856, %v4130
        %4152 = vst.msk [vmem:[#allocation2 + $0xd0] sm:$0xff] %vm3856, %v4132
        %4153 = vst.msk [vmem:[#allocation2 + $0xf0] sm:$0xff] %vm3856, %v4134
        %4154 = vst.msk [vmem:[#allocation2 + $0x110] sm:$0xff] %vm3856, %v4136
        %4164 = vrot.lane.b32.xlu0 %v3719, 96
        %v4165 = vpop.permute.xlu0 %4164
        %4166 = vrot.lane.b32.xlu0 %v3720, 96
        %v4167 = vpop.permute.xlu0 %4166
        %4168 = vrot.lane.b32.xlu0 %v3721, 96
        %v4169 = vpop.permute.xlu0 %4168
        %4170 = vrot.lane.b32.xlu0 %v3722, 96
        %v4171 = vpop.permute.xlu0 %4170
        %4172 = vrot.lane.b32.xlu0 %v3723, 96
        %v4173 = vpop.permute.xlu0 %4172
        %4174 = vrot.lane.b32.xlu0 %v3724, 96
        %v4175 = vpop.permute.xlu0 %4174
        %4176 = vrot.lane.b32.xlu0 %v3725, 96
        %v4177 = vpop.permute.xlu0 %4176
        %4178 = vrot.lane.b32.xlu0 %v3726, 96
        %v4179 = vpop.permute.xlu0 %4178
        %4180 = vrot.lane.b32.xlu0 %v3727, 96
        %v4181 = vpop.permute.xlu0 %4180
        %4191 = vst.msk [vmem:[#allocation2 + $0x10] sm:$0xff] %vm3902, %v4165
        %4192 = vst.msk [vmem:[#allocation2 + $0x30] sm:$0xff] %vm3902, %v4167
        %4193 = vst.msk [vmem:[#allocation2 + $0x50] sm:$0xff] %vm3902, %v4169
        %4194 = vst.msk [vmem:[#allocation2 + $0x70] sm:$0xff] %vm3902, %v4171
        %4195 = vst.msk [vmem:[#allocation2 + $0x90] sm:$0xff] %vm3902, %v4173
        %4196 = vst.msk [vmem:[#allocation2 + $0xb0] sm:$0xff] %vm3902, %v4175
        %4197 = vst.msk [vmem:[#allocation2 + $0xd0] sm:$0xff] %vm3902, %v4177
        %4198 = vst.msk [vmem:[#allocation2 + $0xf0] sm:$0xff] %vm3902, %v4179
        %4199 = vst.msk [vmem:[#allocation2 + $0x110] sm:$0xff] %vm3902, %v4181
        %4200 = vst.msk [vmem:[#allocation2 + $0x18] sm:$0xff] %vm3764, %v3728
        %4201 = vst.msk [vmem:[#allocation2 + $0x38] sm:$0xff] %vm3764, %v3729
        %4202 = vst.msk [vmem:[#allocation2 + $0x58] sm:$0xff] %vm3764, %v3730
        %4203 = vst.msk [vmem:[#allocation2 + $0x78] sm:$0xff] %vm3764, %v3731
        %4204 = vst.msk [vmem:[#allocation2 + $0x98] sm:$0xff] %vm3764, %v3732
        %4205 = vst.msk [vmem:[#allocation2 + $0xb8] sm:$0xff] %vm3764, %v3733
        %4206 = vst.msk [vmem:[#allocation2 + $0xd8] sm:$0xff] %vm3764, %v3734
        %4207 = vst.msk [vmem:[#allocation2 + $0xf8] sm:$0xff] %vm3764, %v3735
        %4208 = vst.msk [vmem:[#allocation2 + $0x118] sm:$0xff] %vm3764, %v3736
        %4218 = vrot.lane.b32.xlu0 %v3737, 32
        %v4219 = vpop.permute.xlu0 %4218
        %4220 = vrot.lane.b32.xlu0 %v3738, 32
        %v4221 = vpop.permute.xlu0 %4220
        %4222 = vrot.lane.b32.xlu0 %v3739, 32
        %v4223 = vpop.permute.xlu0 %4222
        %4224 = vrot.lane.b32.xlu0 %v3740, 32
        %v4225 = vpop.permute.xlu0 %4224
        %4226 = vrot.lane.b32.xlu0 %v3741, 32
        %v4227 = vpop.permute.xlu0 %4226
        %4228 = vrot.lane.b32.xlu0 %v3742, 32
        %v4229 = vpop.permute.xlu0 %4228
        %4230 = vrot.lane.b32.xlu0 %v3743, 32
        %v4231 = vpop.permute.xlu0 %4230
        %4232 = vrot.lane.b32.xlu0 %v3744, 32
        %v4233 = vpop.permute.xlu0 %4232
        %4234 = vrot.lane.b32.xlu0 %v3745, 32
        %v4235 = vpop.permute.xlu0 %4234
        %4245 = vst.msk [vmem:[#allocation2 + $0x18] sm:$0xff] %vm3810, %v4219
        %4246 = vst.msk [vmem:[#allocation2 + $0x38] sm:$0xff] %vm3810, %v4221
        %4247 = vst.msk [vmem:[#allocation2 + $0x58] sm:$0xff] %vm3810, %v4223
        %4248 = vst.msk [vmem:[#allocation2 + $0x78] sm:$0xff] %vm3810, %v4225
        %4249 = vst.msk [vmem:[#allocation2 + $0x98] sm:$0xff] %vm3810, %v4227
        %4250 = vst.msk [vmem:[#allocation2 + $0xb8] sm:$0xff] %vm3810, %v4229
        %4251 = vst.msk [vmem:[#allocation2 + $0xd8] sm:$0xff] %vm3810, %v4231
        %4252 = vst.msk [vmem:[#allocation2 + $0xf8] sm:$0xff] %vm3810, %v4233
        %4253 = vst.msk [vmem:[#allocation2 + $0x118] sm:$0xff] %vm3810, %v4235
        %4263 = vrot.lane.b32.xlu0 %v3746, 64
        %v4264 = vpop.permute.xlu0 %4263
        %4265 = vrot.lane.b32.xlu0 %v3747, 64
        %v4266 = vpop.permute.xlu0 %4265
        %4267 = vrot.lane.b32.xlu0 %v3748, 64
        %v4268 = vpop.permute.xlu0 %4267
        %4269 = vrot.lane.b32.xlu0 %v3749, 64
        %v4270 = vpop.permute.xlu0 %4269
        %4271 = vrot.lane.b32.xlu0 %v3750, 64
        %v4272 = vpop.permute.xlu0 %4271
        %4273 = vrot.lane.b32.xlu0 %v3751, 64
        %v4274 = vpop.permute.xlu0 %4273
        %4275 = vrot.lane.b32.xlu0 %v3752, 64
        %v4276 = vpop.permute.xlu0 %4275
        %4277 = vrot.lane.b32.xlu0 %v3753, 64
        %v4278 = vpop.permute.xlu0 %4277
        %4279 = vrot.lane.b32.xlu0 %v3754, 64
        %v4280 = vpop.permute.xlu0 %4279
        %4290 = vst.msk [vmem:[#allocation2 + $0x18] sm:$0xff] %vm3856, %v4264
        %4291 = vst.msk [vmem:[#allocation2 + $0x38] sm:$0xff] %vm3856, %v4266
        %4292 = vst.msk [vmem:[#allocation2 + $0x58] sm:$0xff] %vm3856, %v4268
        %4293 = vst.msk [vmem:[#allocation2 + $0x78] sm:$0xff] %vm3856, %v4270
        %4294 = vst.msk [vmem:[#allocation2 + $0x98] sm:$0xff] %vm3856, %v4272
        %4295 = vst.msk [vmem:[#allocation2 + $0xb8] sm:$0xff] %vm3856, %v4274
        %4296 = vst.msk [vmem:[#allocation2 + $0xd8] sm:$0xff] %vm3856, %v4276
        %4297 = vst.msk [vmem:[#allocation2 + $0xf8] sm:$0xff] %vm3856, %v4278
        %4298 = vst.msk [vmem:[#allocation2 + $0x118] sm:$0xff] %vm3856, %v4280
        %4308 = vrot.lane.b32.xlu0 %v3755, 96
        %v4309 = vpop.permute.xlu0 %4308
        %4310 = vrot.lane.b32.xlu0 %v3756, 96
        %v4311 = vpop.permute.xlu0 %4310
        %4312 = vrot.lane.b32.xlu0 %v3757, 96
        %v4313 = vpop.permute.xlu0 %4312
        %4314 = vrot.lane.b32.xlu0 %v3758, 96
        %v4315 = vpop.permute.xlu0 %4314
        %4316 = vrot.lane.b32.xlu0 %v3759, 96
        %v4317 = vpop.permute.xlu0 %4316
        %4318 = vrot.lane.b32.xlu0 %v3760, 96
        %v4319 = vpop.permute.xlu0 %4318
        %4320 = vrot.lane.b32.xlu0 %v3761, 96
        %v4321 = vpop.permute.xlu0 %4320
        %4322 = vrot.lane.b32.xlu0 %v3762, 96
        %v4323 = vpop.permute.xlu0 %4322
        %4324 = vrot.lane.b32.xlu0 %v3763, 96
        %v4325 = vpop.permute.xlu0 %4324
        %4335 = vst.msk [vmem:[#allocation2 + $0x18] sm:$0xff] %vm3902, %v4309
        %4336 = vst.msk [vmem:[#allocation2 + $0x38] sm:$0xff] %vm3902, %v4311
        %4337 = vst.msk [vmem:[#allocation2 + $0x58] sm:$0xff] %vm3902, %v4313
        %4338 = vst.msk [vmem:[#allocation2 + $0x78] sm:$0xff] %vm3902, %v4315
        %4339 = vst.msk [vmem:[#allocation2 + $0x98] sm:$0xff] %vm3902, %v4317
        %4340 = vst.msk [vmem:[#allocation2 + $0xb8] sm:$0xff] %vm3902, %v4319
        %4341 = vst.msk [vmem:[#allocation2 + $0xd8] sm:$0xff] %vm3902, %v4321
        %4342 = vst.msk [vmem:[#allocation2 + $0xf8] sm:$0xff] %vm3902, %v4323
        %4343 = vst.msk [vmem:[#allocation2 + $0x118] sm:$0xff] %vm3902, %v4325
        %v4344 = vld [vmem:[#allocation2] sm:$0xff]
        %v4345 = vld [vmem:[#allocation2 + $0x8] sm:$0xff]
        %v4346 = vld [vmem:[#allocation2 + $0x10] sm:$0xff]
        %v4347 = vld [vmem:[#allocation2 + $0x18] sm:$0xff]
        %v4348 = vld [vmem:[#allocation2 + $0x20] sm:$0xff]
        %v4349 = vld [vmem:[#allocation2 + $0x28] sm:$0xff]
        %v4350 = vld [vmem:[#allocation2 + $0x30] sm:$0xff]
        %v4351 = vld [vmem:[#allocation2 + $0x38] sm:$0xff]
        %v4352 = vld [vmem:[#allocation2 + $0x40] sm:$0xff]
        %v4353 = vld [vmem:[#allocation2 + $0x48] sm:$0xff]
        %v4354 = vld [vmem:[#allocation2 + $0x50] sm:$0xff]
        %v4355 = vld [vmem:[#allocation2 + $0x58] sm:$0xff]
        %v4356 = vld [vmem:[#allocation2 + $0x60] sm:$0xff]
        %v4357 = vld [vmem:[#allocation2 + $0x68] sm:$0xff]
        %v4358 = vld [vmem:[#allocation2 + $0x70] sm:$0xff]
        %v4359 = vld [vmem:[#allocation2 + $0x78] sm:$0xff]
        %v4360 = vld [vmem:[#allocation2 + $0x80] sm:$0xff]
        %v4361 = vld [vmem:[#allocation2 + $0x88] sm:$0xff]
        %v4362 = vld [vmem:[#allocation2 + $0x90] sm:$0xff]
        %v4363 = vld [vmem:[#allocation2 + $0x98] sm:$0xff]
        %v4364 = vld [vmem:[#allocation2 + $0xa0] sm:$0xff]
        %v4365 = vld [vmem:[#allocation2 + $0xa8] sm:$0xff]
        %v4366 = vld [vmem:[#allocation2 + $0xb0] sm:$0xff]
        %v4367 = vld [vmem:[#allocation2 + $0xb8] sm:$0xff]
        %v4368 = vld [vmem:[#allocation2 + $0xc0] sm:$0xff]
        %v4369 = vld [vmem:[#allocation2 + $0xc8] sm:$0xff]
        %v4370 = vld [vmem:[#allocation2 + $0xd0] sm:$0xff]
        %v4371 = vld [vmem:[#allocation2 + $0xd8] sm:$0xff]
        %v4372 = vld [vmem:[#allocation2 + $0xe0] sm:$0xff]
        %v4373 = vld [vmem:[#allocation2 + $0xe8] sm:$0xff]
        %v4374 = vld [vmem:[#allocation2 + $0xf0] sm:$0xff]
        %v4375 = vld [vmem:[#allocation2 + $0xf8] sm:$0xff]
        %v4376 = vld [vmem:[#allocation2 + $0x100] sm:$0xff]
        %v4377 = vld [vmem:[#allocation2 + $0x108] sm:$0xff]
        %v4378 = vld [vmem:[#allocation2 + $0x110] sm:$0xff]
        %v4379 = vld [vmem:[#allocation2 + $0x118] sm:$0xff]
        %v4380 = vld [vmem:[%s3] sm:$0xf]
        %v4381 = vld [vmem:[%s3 + $0x4] sm:$0xf]
        %v4382 = vld [vmem:[%s3 + $0x8] sm:$0xf]
        %v4383 = vld [vmem:[%s3 + $0xc] sm:$0xf]
        %v4384 = vld [vmem:[%s3 + $0x10] sm:$0xf]
        %v4385 = vld [vmem:[%s3 + $0x14] sm:$0xf]
        %v4386 = vld [vmem:[%s3 + $0x18] sm:$0xf]
        %v4387 = vld [vmem:[%s3 + $0x1c] sm:$0xf]
        %v4388 = vld [vmem:[%s3 + $0x20] sm:$0xf]
        %v4389 = vld [vmem:[%s3 + $0x24] sm:$0xf]
        %v4390 = vld [vmem:[%s3 + $0x28] sm:$0xf]
        %v4391 = vld [vmem:[%s3 + $0x2c] sm:$0xf]
        %v4392 = vld [vmem:[%s3 + $0x30] sm:$0xf]
        %v4393 = vld [vmem:[%s3 + $0x34] sm:$0xf]
        %v4394 = vld [vmem:[%s3 + $0x38] sm:$0xf]
        %v4395 = vld [vmem:[%s3 + $0x3c] sm:$0xf]
        %v4396 = vld [vmem:[%s3 + $0x40] sm:$0xf]
        %v4397 = vld [vmem:[%s3 + $0x44] sm:$0xf]
        %v4398 = vld [vmem:[%s3 + $0x48] sm:$0xf]
        %v4399 = vld [vmem:[%s3 + $0x4c] sm:$0xf]
        %v4400 = vld [vmem:[%s3 + $0x50] sm:$0xf]
        %v4401 = vld [vmem:[%s3 + $0x54] sm:$0xf]
        %v4402 = vld [vmem:[%s3 + $0x58] sm:$0xf]
        %v4403 = vld [vmem:[%s3 + $0x5c] sm:$0xf]
        %v4404 = vld [vmem:[%s3 + $0x60] sm:$0xf]
        %v4405 = vld [vmem:[%s3 + $0x64] sm:$0xf]
        %v4406 = vld [vmem:[%s3 + $0x68] sm:$0xf]
        %v4407 = vld [vmem:[%s3 + $0x6c] sm:$0xf]
        %v4408 = vld [vmem:[%s3 + $0x70] sm:$0xf]
        %v4409 = vld [vmem:[%s3 + $0x74] sm:$0xf]
        %v4410 = vld [vmem:[%s3 + $0x78] sm:$0xf]
        %v4411 = vld [vmem:[%s3 + $0x7c] sm:$0xf]
        %v4412 = vld [vmem:[%s3 + $0x80] sm:$0xf]
        %v4413 = vld [vmem:[%s3 + $0x84] sm:$0xf]
        %v4414 = vld [vmem:[%s3 + $0x88] sm:$0xf]
        %v4415 = vld [vmem:[%s3 + $0x8c] sm:$0xf]
        %v4416 = vld [vmem:[%s3 + $0x90] sm:$0xf]
        %v4417 = vld [vmem:[%s3 + $0x94] sm:$0xf]
        %v4418 = vld [vmem:[%s3 + $0x98] sm:$0xf]
        %v4419 = vld [vmem:[%s3 + $0x9c] sm:$0xf]
        %v4420 = vld [vmem:[%s3 + $0xa0] sm:$0xf]
        %v4421 = vld [vmem:[%s3 + $0xa4] sm:$0xf]
        %v4422 = vld [vmem:[%s3 + $0xa8] sm:$0xf]
        %v4423 = vld [vmem:[%s3 + $0xac] sm:$0xf]
        %v4424 = vld [vmem:[%s3 + $0xb0] sm:$0xf]
        %v4425 = vld [vmem:[%s3 + $0xb4] sm:$0xf]
        %v4426 = vld [vmem:[%s3 + $0xb8] sm:$0xf]
        %v4427 = vld [vmem:[%s3 + $0xbc] sm:$0xf]
        %v4428 = vld [vmem:[%s3 + $0xc0] sm:$0xf]
        %v4429 = vld [vmem:[%s3 + $0xc4] sm:$0xf]
        %v4430 = vld [vmem:[%s3 + $0xc8] sm:$0xf]
        %v4431 = vld [vmem:[%s3 + $0xcc] sm:$0xf]
        %v4432 = vld [vmem:[%s3 + $0xd0] sm:$0xf]
        %v4433 = vld [vmem:[%s3 + $0xd4] sm:$0xf]
        %v4434 = vld [vmem:[%s3 + $0xd8] sm:$0xf]
        %v4435 = vld [vmem:[%s3 + $0xdc] sm:$0xf]
        %v4436 = vld [vmem:[%s3 + $0xe0] sm:$0xf]
        %v4437 = vld [vmem:[%s3 + $0xe4] sm:$0xf]
        %v4438 = vld [vmem:[%s3 + $0xe8] sm:$0xf]
        %v4439 = vld [vmem:[%s3 + $0xec] sm:$0xf]
        %v4440 = vld [vmem:[%s3 + $0xf0] sm:$0xf]
        %v4441 = vld [vmem:[%s3 + $0xf4] sm:$0xf]
        %v4442 = vld [vmem:[%s3 + $0xf8] sm:$0xf]
        %v4443 = vld [vmem:[%s3 + $0xfc] sm:$0xf]
        %v4444 = vld [vmem:[%s4] sm:$0x1]
        %v4446 = vlaneseq
        %v4447 = vshrl.u32 %v4446, 7
        %v4448 = vsub.s32 0, %v4447
        %v4449 = vrot.slane %v4444, %v4448
        %v4515 = vunpack.c.l.b16 %v4380
        %v4516 = vunpack.c.l.b16 %v4381
        %v4517 = vunpack.c.l.b16 %v4382
        %v4518 = vunpack.c.l.b16 %v4383
        %v4519 = vunpack.c.l.b16 %v4384
        %v4520 = vunpack.c.l.b16 %v4385
        %v4521 = vunpack.c.l.b16 %v4386
        %v4522 = vunpack.c.l.b16 %v4387
        %v4523 = vunpack.c.l.b16 %v4388
        %v4524 = vunpack.c.l.b16 %v4389
        %v4525 = vunpack.c.l.b16 %v4390
        %v4526 = vunpack.c.l.b16 %v4391
        %v4527 = vunpack.c.l.b16 %v4392
        %v4528 = vunpack.c.l.b16 %v4393
        %v4529 = vunpack.c.l.b16 %v4394
        %v4530 = vunpack.c.l.b16 %v4395
        %v4531 = vunpack.c.l.b16 %v4396
        %v4532 = vunpack.c.l.b16 %v4397
        %v4533 = vunpack.c.l.b16 %v4398
        %v4534 = vunpack.c.l.b16 %v4399
        %v4535 = vunpack.c.l.b16 %v4400
        %v4536 = vunpack.c.l.b16 %v4401
        %v4537 = vunpack.c.l.b16 %v4402
        %v4538 = vunpack.c.l.b16 %v4403
        %v4539 = vunpack.c.l.b16 %v4404
        %v4540 = vunpack.c.l.b16 %v4405
        %v4541 = vunpack.c.l.b16 %v4406
        %v4542 = vunpack.c.l.b16 %v4407
        %v4543 = vunpack.c.l.b16 %v4408
        %v4544 = vunpack.c.l.b16 %v4409
        %v4545 = vunpack.c.l.b16 %v4410
        %v4546 = vunpack.c.l.b16 %v4411
        %v4547 = vunpack.c.l.b16 %v4412
        %v4548 = vunpack.c.l.b16 %v4413
        %v4549 = vunpack.c.l.b16 %v4414
        %v4550 = vunpack.c.l.b16 %v4415
        %v4551 = vunpack.c.l.b16 %v4416
        %v4552 = vunpack.c.l.b16 %v4417
        %v4553 = vunpack.c.l.b16 %v4418
        %v4554 = vunpack.c.l.b16 %v4419
        %v4555 = vunpack.c.l.b16 %v4420
        %v4556 = vunpack.c.l.b16 %v4421
        %v4557 = vunpack.c.l.b16 %v4422
        %v4558 = vunpack.c.l.b16 %v4423
        %v4559 = vunpack.c.l.b16 %v4424
        %v4560 = vunpack.c.l.b16 %v4425
        %v4561 = vunpack.c.l.b16 %v4426
        %v4562 = vunpack.c.l.b16 %v4427
        %v4563 = vunpack.c.l.b16 %v4428
        %v4564 = vunpack.c.l.b16 %v4429
        %v4565 = vunpack.c.l.b16 %v4430
        %v4566 = vunpack.c.l.b16 %v4431
        %v4567 = vunpack.c.l.b16 %v4432
        %v4568 = vunpack.c.l.b16 %v4433
        %v4569 = vunpack.c.l.b16 %v4434
        %v4570 = vunpack.c.l.b16 %v4435
        %v4571 = vunpack.c.l.b16 %v4436
        %v4572 = vunpack.c.l.b16 %v4437
        %v4573 = vunpack.c.l.b16 %v4438
        %v4574 = vunpack.c.l.b16 %v4439
        %v4575 = vunpack.c.l.b16 %v4440
        %v4576 = vunpack.c.l.b16 %v4441
        %v4577 = vunpack.c.l.b16 %v4442
        %v4578 = vunpack.c.l.b16 %v4443
        %v4579 = vpack.c.b16 %v4516, %v4515
        %v4580 = vpack.c.b16 %v4518, %v4517
        %v4581 = vpack.c.b16 %v4520, %v4519
        %v4582 = vpack.c.b16 %v4522, %v4521
        %v4583 = vpack.c.b16 %v4524, %v4523
        %v4584 = vpack.c.b16 %v4526, %v4525
        %v4585 = vpack.c.b16 %v4528, %v4527
        %v4586 = vpack.c.b16 %v4530, %v4529
        %v4587 = vpack.c.b16 %v4532, %v4531
        %v4588 = vpack.c.b16 %v4534, %v4533
        %v4589 = vpack.c.b16 %v4536, %v4535
        %v4590 = vpack.c.b16 %v4538, %v4537
        %v4591 = vpack.c.b16 %v4540, %v4539
        %v4592 = vpack.c.b16 %v4542, %v4541
        %v4593 = vpack.c.b16 %v4544, %v4543
        %v4594 = vpack.c.b16 %v4546, %v4545
        %v4595 = vpack.c.b16 %v4548, %v4547
        %v4596 = vpack.c.b16 %v4550, %v4549
        %v4597 = vpack.c.b16 %v4552, %v4551
        %v4598 = vpack.c.b16 %v4554, %v4553
        %v4599 = vpack.c.b16 %v4556, %v4555
        %v4600 = vpack.c.b16 %v4558, %v4557
        %v4601 = vpack.c.b16 %v4560, %v4559
        %v4602 = vpack.c.b16 %v4562, %v4561
        %v4603 = vpack.c.b16 %v4564, %v4563
        %v4604 = vpack.c.b16 %v4566, %v4565
        %v4605 = vpack.c.b16 %v4568, %v4567
        %v4606 = vpack.c.b16 %v4570, %v4569
        %v4607 = vpack.c.b16 %v4572, %v4571
        %v4608 = vpack.c.b16 %v4574, %v4573
        %v4609 = vpack.c.b16 %v4576, %v4575
        %v4610 = vpack.c.b16 %v4578, %v4577
        %4643 = vmatprep.subr.bf16.mxu0 0
        %4644 = vmatpush1.bf16.msra.mxu0 %v4579
        %4645 = vmatprep.subr.bf16.mxu0 0
        %4646 = vmatpush1.bf16.msra.mxu0 %v4580
        %4647 = vmatprep.subr.bf16.mxu0 0
        %4648 = vmatpush1.bf16.msra.mxu0 %v4581
        %4649 = vmatprep.subr.bf16.mxu0 0
        %4650 = vmatpush1.bf16.msra.mxu0 %v4582
        %4651 = vmatprep.subr.bf16.mxu0 0
        %4652 = vmatpush1.bf16.msra.mxu0 %v4583
        %4653 = vmatprep.subr.bf16.mxu0 0
        %4654 = vmatpush1.bf16.msra.mxu0 %v4584
        %4655 = vmatprep.subr.bf16.mxu0 0
        %4656 = vmatpush1.bf16.msra.mxu0 %v4585
        %4657 = vmatprep.subr.bf16.mxu0 0
        %4658 = vmatpush1.bf16.msra.mxu0 %v4586
        %4659 = vmatprep.subr.bf16.mxu0 0
        %4660 = vmatpush1.bf16.msra.mxu0 %v4587
        %4661 = vmatprep.subr.bf16.mxu0 0
        %4662 = vmatpush1.bf16.msra.mxu0 %v4588
        %4663 = vmatprep.subr.bf16.mxu0 0
        %4664 = vmatpush1.bf16.msra.mxu0 %v4589
        %4665 = vmatprep.subr.bf16.mxu0 0
        %4666 = vmatpush1.bf16.msra.mxu0 %v4590
        %4667 = vmatprep.subr.bf16.mxu0 0
        %4668 = vmatpush1.bf16.msra.mxu0 %v4591
        %4669 = vmatprep.subr.bf16.mxu0 0
        %4670 = vmatpush1.bf16.msra.mxu0 %v4592
        %4671 = vmatprep.subr.bf16.mxu0 0
        %4672 = vmatpush1.bf16.msra.mxu0 %v4593
        %4673 = vmatprep.subr.bf16.mxu0 0
        %4674 = vmatpush1.bf16.msra.mxu0 %v4594
        %4675 = vmatprep.mubr.bf16.mxu0 %v4345
        %4676 = vmatmul.mubr.bf16.gmra.mrb[0].mxu0 %v4344
        %v4677 = vpop.f32.mrb[0].mxu0
        %v4678 = vadd.f32 %v4449, %v4677
        %v4679 = vpop.f32.mrb[0].mxu0
        %v4680 = vpop.f32.mrb[0].mxu0
        %v4681 = vadd.f32 %v4449, %v4680
        %v4682 = vpop.f32.mrb[0].mxu0
        %4683 = vmatprep.mubr.bf16.mxu0 %v4349
        %4684 = vmatmul.mubr.bf16.gmra.mrb[0].mxu0 %v4348
        %v4685 = vpop.f32.mrb[0].mxu0
        %v4686 = vadd.f32 %v4449, %v4685
        %v4687 = vpop.f32.mrb[0].mxu0
        %v4688 = vpop.f32.mrb[0].mxu0
        %v4689 = vadd.f32 %v4449, %v4688
        %v4690 = vpop.f32.mrb[0].mxu0
        %4691 = vmatprep.mubr.bf16.mxu0 %v4353
        %4692 = vmatmul.mubr.bf16.gmra.mrb[0].mxu0 %v4352
        %v4693 = vpop.f32.mrb[0].mxu0
        %v4694 = vadd.f32 %v4449, %v4693
        %v4695 = vpop.f32.mrb[0].mxu0
        %v4696 = vpop.f32.mrb[0].mxu0
        %v4697 = vadd.f32 %v4449, %v4696
        %v4698 = vpop.f32.mrb[0].mxu0
        %4699 = vmatprep.mubr.bf16.mxu0 %v4357
        %4700 = vmatmul.mubr.bf16.gmra.mrb[0].mxu0 %v4356
        %v4701 = vpop.f32.mrb[0].mxu0
        %v4702 = vadd.f32 %v4449, %v4701
        %v4703 = vpop.f32.mrb[0].mxu0
        %v4704 = vpop.f32.mrb[0].mxu0
        %v4705 = vadd.f32 %v4449, %v4704
        %v4706 = vpop.f32.mrb[0].mxu0
        %4707 = vmatprep.mubr.bf16.mxu0 %v4361
        %4708 = vmatmul.mubr.bf16.gmra.mrb[0].mxu0 %v4360
        %v4709 = vpop.f32.mrb[0].mxu0
        %v4710 = vadd.f32 %v4449, %v4709
        %v4711 = vpop.f32.mrb[0].mxu0
        %v4712 = vpop.f32.mrb[0].mxu0
        %v4713 = vadd.f32 %v4449, %v4712
        %v4714 = vpop.f32.mrb[0].mxu0
        %4715 = vmatprep.mubr.bf16.mxu0 %v4365
        %4716 = vmatmul.mubr.bf16.gmra.mrb[0].mxu0 %v4364
        %v4717 = vpop.f32.mrb[0].mxu0
        %v4718 = vadd.f32 %v4449, %v4717
        %v4719 = vpop.f32.mrb[0].mxu0
        %v4720 = vpop.f32.mrb[0].mxu0
        %v4721 = vadd.f32 %v4449, %v4720
        %v4722 = vpop.f32.mrb[0].mxu0
        %4723 = vmatprep.mubr.bf16.mxu0 %v4369
        %4724 = vmatmul.mubr.bf16.gmra.mrb[0].mxu0 %v4368
        %v4725 = vpop.f32.mrb[0].mxu0
        %v4726 = vadd.f32 %v4449, %v4725
        %v4727 = vpop.f32.mrb[0].mxu0
        %v4728 = vpop.f32.mrb[0].mxu0
        %v4729 = vadd.f32 %v4449, %v4728
        %v4730 = vpop.f32.mrb[0].mxu0
        %4731 = vmatprep.mubr.bf16.mxu0 %v4373
        %4732 = vmatmul.mubr.bf16.gmra.mrb[0].mxu0 %v4372
        %v4733 = vpop.f32.mrb[0].mxu0
        %v4734 = vadd.f32 %v4449, %v4733
        %v4735 = vpop.f32.mrb[0].mxu0
        %v4736 = vpop.f32.mrb[0].mxu0
        %v4737 = vadd.f32 %v4449, %v4736
        %v4738 = vpop.f32.mrb[0].mxu0
        %4739 = vmatprep.mubr.bf16.mxu0 %v4377
        %4740 = vmatmul.mubr.bf16.gmra.mrb[0].mxu0 %v4376
        %v4741 = vpop.f32.mrb[0].mxu0
        %v4742 = vadd.f32 %v4449, %v4741
        %v4743 = vpop.f32.mrb[0].mxu0
        %v4744 = vpop.f32.mrb[0].mxu0
        %v4745 = vadd.f32 %v4449, %v4744
        %v4746 = vpop.f32.mrb[0].mxu0
        %4747 = vdwg.mxu0
        %4748 = vmatprep.subr.bf16.mxu0 0
        %4749 = vmatpush1.bf16.msra.mxu0 %v4595
        %4750 = vmatprep.subr.bf16.mxu0 0
        %4751 = vmatpush1.bf16.msra.mxu0 %v4596
        %4752 = vmatprep.subr.bf16.mxu0 0
        %4753 = vmatpush1.bf16.msra.mxu0 %v4597
        %4754 = vmatprep.subr.bf16.mxu0 0
        %4755 = vmatpush1.bf16.msra.mxu0 %v4598
        %4756 = vmatprep.subr.bf16.mxu0 0
        %4757 = vmatpush1.bf16.msra.mxu0 %v4599
        %4758 = vmatprep.subr.bf16.mxu0 0
        %4759 = vmatpush1.bf16.msra.mxu0 %v4600
        %4760 = vmatprep.subr.bf16.mxu0 0
        %4761 = vmatpush1.bf16.msra.mxu0 %v4601
        %4762 = vmatprep.subr.bf16.mxu0 0
        %4763 = vmatpush1.bf16.msra.mxu0 %v4602
        %4764 = vmatprep.subr.bf16.mxu0 0
        %4765 = vmatpush1.bf16.msra.mxu0 %v4603
        %4766 = vmatprep.subr.bf16.mxu0 0
        %4767 = vmatpush1.bf16.msra.mxu0 %v4604
        %4768 = vmatprep.subr.bf16.mxu0 0
        %4769 = vmatpush1.bf16.msra.mxu0 %v4605
        %4770 = vmatprep.subr.bf16.mxu0 0
        %4771 = vmatpush1.bf16.msra.mxu0 %v4606
        %4772 = vmatprep.subr.bf16.mxu0 0
        %4773 = vmatpush1.bf16.msra.mxu0 %v4607
        %4774 = vmatprep.subr.bf16.mxu0 0
        %4775 = vmatpush1.bf16.msra.mxu0 %v4608
        %4776 = vmatprep.subr.bf16.mxu0 0
        %4777 = vmatpush1.bf16.msra.mxu0 %v4609
        %4778 = vmatprep.subr.bf16.mxu0 0
        %4779 = vmatpush1.bf16.msra.mxu0 %v4610
        %4780 = vmatprep.mubr.bf16.mxu0 %v4347
        %4781 = vmatmul.mubr.bf16.gmra.mrb[0].mxu0 %v4346
        %v4782 = vpop.f32.mrb[0].mxu0
        %v4783 = vadd.f32 %v4678, %v4782
        %v4784 = vpop.f32.mrb[0].mxu0
        %v4785 = vpop.f32.mrb[0].mxu0
        %v4786 = vadd.f32 %v4681, %v4785
        %v4787 = vpop.f32.mrb[0].mxu0
        %4788 = vmatprep.mubr.bf16.mxu0 %v4351
        %4789 = vmatmul.mubr.bf16.gmra.mrb[0].mxu0 %v4350
        %v4790 = vpop.f32.mrb[0].mxu0
        %v4791 = vadd.f32 %v4686, %v4790
        %v4792 = vpop.f32.mrb[0].mxu0
        %v4793 = vpop.f32.mrb[0].mxu0
        %v4794 = vadd.f32 %v4689, %v4793
        %v4795 = vpop.f32.mrb[0].mxu0
        %4796 = vmatprep.mubr.bf16.mxu0 %v4355
        %4797 = vmatmul.mubr.bf16.gmra.mrb[0].mxu0 %v4354
        %v4798 = vpop.f32.mrb[0].mxu0
        %v4799 = vadd.f32 %v4694, %v4798
        %v4800 = vpop.f32.mrb[0].mxu0
        %v4801 = vpop.f32.mrb[0].mxu0
        %v4802 = vadd.f32 %v4697, %v4801
        %v4803 = vpop.f32.mrb[0].mxu0
        %4804 = vmatprep.mubr.bf16.mxu0 %v4359
        %4805 = vmatmul.mubr.bf16.gmra.mrb[0].mxu0 %v4358
        %v4806 = vpop.f32.mrb[0].mxu0
        %v4807 = vadd.f32 %v4702, %v4806
        %v4808 = vpop.f32.mrb[0].mxu0
        %v4809 = vpop.f32.mrb[0].mxu0
        %v4810 = vadd.f32 %v4705, %v4809
        %v4811 = vpop.f32.mrb[0].mxu0
        %4812 = vmatprep.mubr.bf16.mxu0 %v4363
        %4813 = vmatmul.mubr.bf16.gmra.mrb[0].mxu0 %v4362
        %v4814 = vpop.f32.mrb[0].mxu0
        %v4815 = vadd.f32 %v4710, %v4814
        %v4816 = vpop.f32.mrb[0].mxu0
        %v4817 = vpop.f32.mrb[0].mxu0
        %v4818 = vadd.f32 %v4713, %v4817
        %v4819 = vpop.f32.mrb[0].mxu0
        %4820 = vmatprep.mubr.bf16.mxu0 %v4367
        %4821 = vmatmul.mubr.bf16.gmra.mrb[0].mxu0 %v4366
        %v4822 = vpop.f32.mrb[0].mxu0
        %v4823 = vadd.f32 %v4718, %v4822
        %v4824 = vpop.f32.mrb[0].mxu0
        %v4825 = vpop.f32.mrb[0].mxu0
        %v4826 = vadd.f32 %v4721, %v4825
        %v4827 = vpop.f32.mrb[0].mxu0
        %4828 = vmatprep.mubr.bf16.mxu0 %v4371
        %4829 = vmatmul.mubr.bf16.gmra.mrb[0].mxu0 %v4370
        %v4830 = vpop.f32.mrb[0].mxu0
        %v4831 = vadd.f32 %v4726, %v4830
        %v4832 = vpop.f32.mrb[0].mxu0
        %v4833 = vpop.f32.mrb[0].mxu0
        %v4834 = vadd.f32 %v4729, %v4833
        %v4835 = vpop.f32.mrb[0].mxu0
        %4836 = vmatprep.mubr.bf16.mxu0 %v4375
        %4837 = vmatmul.mubr.bf16.gmra.mrb[0].mxu0 %v4374
        %v4838 = vpop.f32.mrb[0].mxu0
        %v4839 = vadd.f32 %v4734, %v4838
        %v4840 = vpop.f32.mrb[0].mxu0
        %v4841 = vpop.f32.mrb[0].mxu0
        %v4842 = vadd.f32 %v4737, %v4841
        %v4843 = vpop.f32.mrb[0].mxu0
        %4844 = vmatprep.mubr.bf16.mxu0 %v4379
        %4845 = vmatmul.mubr.bf16.gmra.mrb[0].mxu0 %v4378
        %v4846 = vpop.f32.mrb[0].mxu0
        %v4847 = vadd.f32 %v4742, %v4846
        %v4848 = vpop.f32.mrb[0].mxu0
        %v4849 = vpop.f32.mrb[0].mxu0
        %v4850 = vadd.f32 %v4745, %v4849
        %v4851 = vpop.f32.mrb[0].mxu0
        %4852 = vdwg.mxu0
        %v4853 = vmax.f32 %v4783, 0.0
        %v4854 = vmax.f32 %v4786, 0.0
        %v4855 = vmax.f32 %v4791, 0.0
        %v4856 = vmax.f32 %v4794, 0.0
        %v4857 = vmax.f32 %v4799, 0.0
        %v4858 = vmax.f32 %v4802, 0.0
        %v4859 = vmax.f32 %v4807, 0.0
        %v4860 = vmax.f32 %v4810, 0.0
        %v4861 = vmax.f32 %v4815, 0.0
        %v4862 = vmax.f32 %v4818, 0.0
        %v4863 = vmax.f32 %v4823, 0.0
        %v4864 = vmax.f32 %v4826, 0.0
        %v4865 = vmax.f32 %v4831, 0.0
        %v4866 = vmax.f32 %v4834, 0.0
        %v4867 = vmax.f32 %v4839, 0.0
        %v4868 = vmax.f32 %v4842, 0.0
        %v4869 = vmax.f32 %v4847, 0.0
        %v4870 = vmax.f32 %v4850, 0.0
        %v4871 = vpack.c.bf16 %v4854, %v4853
        %v4872 = vpack.c.bf16 %v4856, %v4855
        %v4873 = vpack.c.bf16 %v4858, %v4857
        %v4874 = vpack.c.bf16 %v4860, %v4859
        %v4875 = vpack.c.bf16 %v4862, %v4861
        %v4876 = vpack.c.bf16 %v4864, %v4863
        %v4877 = vpack.c.bf16 %v4866, %v4865
        %v4878 = vpack.c.bf16 %v4868, %v4867
        %v4879 = vpack.c.bf16 %v4870, %v4869
        %vm4880 = vcmask 523264
        %4881 = vst.msk [vmem:[#allocation3] sm:$0xff] %vm4880, %v4871
        %4883 = vrot.lane.b32.xlu0 %v4872, 64
        %v4884 = vpop.permute.xlu0 %4883
        %vm4886 = vcmask 1048064
        %4887 = vst.msk [vmem:[#allocation3] sm:$0xff] %vm4886, %v4884
        %4888 = vst.msk [vmem:[#allocation3 + $0x8] sm:$0xff] %vm4880, %v4873
        %4890 = vrot.lane.b32.xlu0 %v4874, 64
        %v4891 = vpop.permute.xlu0 %4890
        %4893 = vst.msk [vmem:[#allocation3 + $0x8] sm:$0xff] %vm4886, %v4891
        %4894 = vst.msk [vmem:[#allocation3 + $0x10] sm:$0xff] %vm4880, %v4875
        %4896 = vrot.lane.b32.xlu0 %v4876, 64
        %v4897 = vpop.permute.xlu0 %4896
        %4899 = vst.msk [vmem:[#allocation3 + $0x10] sm:$0xff] %vm4886, %v4897
        %4900 = vst.msk [vmem:[#allocation3 + $0x18] sm:$0xff] %vm4880, %v4877
        %4902 = vrot.lane.b32.xlu0 %v4878, 64
        %v4903 = vpop.permute.xlu0 %4902
        %4905 = vst.msk [vmem:[#allocation3 + $0x18] sm:$0xff] %vm4886, %v4903
        %4906 = vst.msk [vmem:[#allocation3 + $0x20] sm:$0xff] %vm4880, %v4879
        %v4907 = vld [vmem:[#allocation3] sm:$0xff]
        %v4908 = vld [vmem:[#allocation3 + $0x8] sm:$0xff]
        %v4909 = vld [vmem:[#allocation3 + $0x10] sm:$0xff]
        %v4910 = vld [vmem:[#allocation3 + $0x18] sm:$0xff]
        %v4911 = vld [vmem:[#allocation3 + $0x20] sm:$0xff]
        %v4912 = vld [vmem:[%s5] sm:$0xf]
        %v4913 = vld [vmem:[%s5 + $0x4] sm:$0xf]
        %v4914 = vld [vmem:[%s5 + $0x8] sm:$0xf]
        %v4915 = vld [vmem:[%s5 + $0xc] sm:$0xf]
        %v4916 = vld [vmem:[%s5 + $0x10] sm:$0xf]
        %v4917 = vld [vmem:[%s5 + $0x14] sm:$0xf]
        %v4918 = vld [vmem:[%s5 + $0x18] sm:$0xf]
        %v4919 = vld [vmem:[%s5 + $0x1c] sm:$0xf]
        %v4920 = vld [vmem:[%s5 + $0x20] sm:$0xf]
        %v4921 = vld [vmem:[%s5 + $0x24] sm:$0xf]
        %v4922 = vld [vmem:[%s5 + $0x28] sm:$0xf]
        %v4923 = vld [vmem:[%s5 + $0x2c] sm:$0xf]
        %v4924 = vld [vmem:[%s5 + $0x30] sm:$0xf]
        %v4925 = vld [vmem:[%s5 + $0x34] sm:$0xf]
        %v4926 = vld [vmem:[%s5 + $0x38] sm:$0xf]
        %v4927 = vld [vmem:[%s5 + $0x3c] sm:$0xf]
        %v4928 = vld [vmem:[%s5 + $0x40] sm:$0xf]
        %v4929 = vld [vmem:[%s5 + $0x44] sm:$0xf]
        %v4930 = vld [vmem:[%s5 + $0x48] sm:$0xf]
        %v4931 = vld [vmem:[%s5 + $0x4c] sm:$0xf]
        %v4932 = vld [vmem:[%s5 + $0x50] sm:$0xf]
        %v4933 = vld [vmem:[%s5 + $0x54] sm:$0xf]
        %v4934 = vld [vmem:[%s5 + $0x58] sm:$0xf]
        %v4935 = vld [vmem:[%s5 + $0x5c] sm:$0xf]
        %v4936 = vld [vmem:[%s5 + $0x60] sm:$0xf]
        %v4937 = vld [vmem:[%s5 + $0x64] sm:$0xf]
        %v4938 = vld [vmem:[%s5 + $0x68] sm:$0xf]
        %v4939 = vld [vmem:[%s5 + $0x6c] sm:$0xf]
        %v4940 = vld [vmem:[%s5 + $0x70] sm:$0xf]
        %v4941 = vld [vmem:[%s5 + $0x74] sm:$0xf]
        %v4942 = vld [vmem:[%s5 + $0x78] sm:$0xf]
        %v4943 = vld [vmem:[%s5 + $0x7c] sm:$0xf]
        %v4944 = vld [vmem:[%s5 + $0x80] sm:$0xf]
        %v4945 = vld [vmem:[%s5 + $0x84] sm:$0xf]
        %v4946 = vld [vmem:[%s5 + $0x88] sm:$0xf]
        %v4947 = vld [vmem:[%s5 + $0x8c] sm:$0xf]
        %v4948 = vld [vmem:[%s5 + $0x90] sm:$0xf]
        %v4949 = vld [vmem:[%s5 + $0x94] sm:$0xf]
        %v4950 = vld [vmem:[%s5 + $0x98] sm:$0xf]
        %v4951 = vld [vmem:[%s5 + $0x9c] sm:$0xf]
        %v4952 = vld [vmem:[%s5 + $0xa0] sm:$0xf]
        %v4953 = vld [vmem:[%s5 + $0xa4] sm:$0xf]
        %v4954 = vld [vmem:[%s5 + $0xa8] sm:$0xf]
        %v4955 = vld [vmem:[%s5 + $0xac] sm:$0xf]
        %v4956 = vld [vmem:[%s5 + $0xb0] sm:$0xf]
        %v4957 = vld [vmem:[%s5 + $0xb4] sm:$0xf]
        %v4958 = vld [vmem:[%s5 + $0xb8] sm:$0xf]
        %v4959 = vld [vmem:[%s5 + $0xbc] sm:$0xf]
        %v4960 = vld [vmem:[%s5 + $0xc0] sm:$0xf]
        %v4961 = vld [vmem:[%s5 + $0xc4] sm:$0xf]
        %v4962 = vld [vmem:[%s5 + $0xc8] sm:$0xf]
        %v4963 = vld [vmem:[%s5 + $0xcc] sm:$0xf]
        %v4964 = vld [vmem:[%s5 + $0xd0] sm:$0xf]
        %v4965 = vld [vmem:[%s5 + $0xd4] sm:$0xf]
        %v4966 = vld [vmem:[%s5 + $0xd8] sm:$0xf]
        %v4967 = vld [vmem:[%s5 + $0xdc] sm:$0xf]
        %v4968 = vld [vmem:[%s5 + $0xe0] sm:$0xf]
        %v4969 = vld [vmem:[%s5 + $0xe4] sm:$0xf]
        %v4970 = vld [vmem:[%s5 + $0xe8] sm:$0xf]
        %v4971 = vld [vmem:[%s5 + $0xec] sm:$0xf]
        %v4972 = vld [vmem:[%s5 + $0xf0] sm:$0xf]
        %v4973 = vld [vmem:[%s5 + $0xf4] sm:$0xf]
        %v4974 = vld [vmem:[%s5 + $0xf8] sm:$0xf]
        %v4975 = vld [vmem:[%s5 + $0xfc] sm:$0xf]
        %v4976 = vld [vmem:[%s5 + $0x100] sm:$0xf]
        %v4977 = vld [vmem:[%s5 + $0x104] sm:$0xf]
        %v4978 = vld [vmem:[%s5 + $0x108] sm:$0xf]
        %v4979 = vld [vmem:[%s5 + $0x10c] sm:$0xf]
        %v4980 = vld [vmem:[%s5 + $0x110] sm:$0xf]
        %v4981 = vld [vmem:[%s5 + $0x114] sm:$0xf]
        %v4982 = vld [vmem:[%s5 + $0x118] sm:$0xf]
        %v4983 = vld [vmem:[%s5 + $0x11c] sm:$0xf]
        %v4984 = vld [vmem:[%s6] sm:$0x1]
        %v4986 = vlaneseq
        %v4987 = vshrl.u32 %v4986, 7
        %v4988 = vsub.s32 0, %v4987
        %v4989 = vrot.slane %v4984, %v4988
        %v5063 = vunpack.c.l.b16 %v4912
        %v5064 = vunpack.c.l.b16 %v4913
        %v5065 = vunpack.c.l.b16 %v4914
        %v5066 = vunpack.c.l.b16 %v4915
        %v5067 = vunpack.c.l.b16 %v4916
        %v5068 = vunpack.c.l.b16 %v4917
        %v5069 = vunpack.c.l.b16 %v4918
        %v5070 = vunpack.c.l.b16 %v4919
        %v5071 = vunpack.c.l.b16 %v4920
        %v5072 = vunpack.c.l.b16 %v4921
        %v5073 = vunpack.c.l.b16 %v4922
        %v5074 = vunpack.c.l.b16 %v4923
        %v5075 = vunpack.c.l.b16 %v4924
        %v5076 = vunpack.c.l.b16 %v4925
        %v5077 = vunpack.c.l.b16 %v4926
        %v5078 = vunpack.c.l.b16 %v4927
        %v5079 = vunpack.c.l.b16 %v4928
        %v5080 = vunpack.c.l.b16 %v4929
        %v5081 = vunpack.c.l.b16 %v4930
        %v5082 = vunpack.c.l.b16 %v4931
        %v5083 = vunpack.c.l.b16 %v4932
        %v5084 = vunpack.c.l.b16 %v4933
        %v5085 = vunpack.c.l.b16 %v4934
        %v5086 = vunpack.c.l.b16 %v4935
        %v5087 = vunpack.c.l.b16 %v4936
        %v5088 = vunpack.c.l.b16 %v4937
        %v5089 = vunpack.c.l.b16 %v4938
        %v5090 = vunpack.c.l.b16 %v4939
        %v5091 = vunpack.c.l.b16 %v4940
        %v5092 = vunpack.c.l.b16 %v4941
        %v5093 = vunpack.c.l.b16 %v4942
        %v5094 = vunpack.c.l.b16 %v4943
        %v5095 = vunpack.c.l.b16 %v4944
        %v5096 = vunpack.c.l.b16 %v4945
        %v5097 = vunpack.c.l.b16 %v4946
        %v5098 = vunpack.c.l.b16 %v4947
        %v5099 = vunpack.c.l.b16 %v4948
        %v5100 = vunpack.c.l.b16 %v4949
        %v5101 = vunpack.c.l.b16 %v4950
        %v5102 = vunpack.c.l.b16 %v4951
        %v5103 = vunpack.c.l.b16 %v4952
        %v5104 = vunpack.c.l.b16 %v4953
        %v5105 = vunpack.c.l.b16 %v4954
        %v5106 = vunpack.c.l.b16 %v4955
        %v5107 = vunpack.c.l.b16 %v4956
        %v5108 = vunpack.c.l.b16 %v4957
        %v5109 = vunpack.c.l.b16 %v4958
        %v5110 = vunpack.c.l.b16 %v4959
        %v5111 = vunpack.c.l.b16 %v4960
        %v5112 = vunpack.c.l.b16 %v4961
        %v5113 = vunpack.c.l.b16 %v4962
        %v5114 = vunpack.c.l.b16 %v4963
        %v5115 = vunpack.c.l.b16 %v4964
        %v5116 = vunpack.c.l.b16 %v4965
        %v5117 = vunpack.c.l.b16 %v4966
        %v5118 = vunpack.c.l.b16 %v4967
        %v5119 = vunpack.c.l.b16 %v4968
        %v5120 = vunpack.c.l.b16 %v4969
        %v5121 = vunpack.c.l.b16 %v4970
        %v5122 = vunpack.c.l.b16 %v4971
        %v5123 = vunpack.c.l.b16 %v4972
        %v5124 = vunpack.c.l.b16 %v4973
        %v5125 = vunpack.c.l.b16 %v4974
        %v5126 = vunpack.c.l.b16 %v4975
        %v5127 = vunpack.c.l.b16 %v4976
        %v5128 = vunpack.c.l.b16 %v4977
        %v5129 = vunpack.c.l.b16 %v4978
        %v5130 = vunpack.c.l.b16 %v4979
        %v5131 = vunpack.c.l.b16 %v4980
        %v5132 = vunpack.c.l.b16 %v4981
        %v5133 = vunpack.c.l.b16 %v4982
        %v5134 = vunpack.c.l.b16 %v4983
        %v5135 = vpack.c.b16 %v5064, %v5063
        %v5136 = vpack.c.b16 %v5066, %v5065
        %v5137 = vpack.c.b16 %v5068, %v5067
        %v5138 = vpack.c.b16 %v5070, %v5069
        %v5139 = vpack.c.b16 %v5072, %v5071
        %v5140 = vpack.c.b16 %v5074, %v5073
        %v5141 = vpack.c.b16 %v5076, %v5075
        %v5142 = vpack.c.b16 %v5078, %v5077
        %v5143 = vpack.c.b16 %v5080, %v5079
        %v5144 = vpack.c.b16 %v5082, %v5081
        %v5145 = vpack.c.b16 %v5084, %v5083
        %v5146 = vpack.c.b16 %v5086, %v5085
        %v5147 = vpack.c.b16 %v5088, %v5087
        %v5148 = vpack.c.b16 %v5090, %v5089
        %v5149 = vpack.c.b16 %v5092, %v5091
        %v5150 = vpack.c.b16 %v5094, %v5093
        %v5151 = vpack.c.b16 %v5096, %v5095
        %v5152 = vpack.c.b16 %v5098, %v5097
        %v5153 = vpack.c.b16 %v5100, %v5099
        %v5154 = vpack.c.b16 %v5102, %v5101
        %v5155 = vpack.c.b16 %v5104, %v5103
        %v5156 = vpack.c.b16 %v5106, %v5105
        %v5157 = vpack.c.b16 %v5108, %v5107
        %v5158 = vpack.c.b16 %v5110, %v5109
        %v5159 = vpack.c.b16 %v5112, %v5111
        %v5160 = vpack.c.b16 %v5114, %v5113
        %v5161 = vpack.c.b16 %v5116, %v5115
        %v5162 = vpack.c.b16 %v5118, %v5117
        %v5163 = vpack.c.b16 %v5120, %v5119
        %v5164 = vpack.c.b16 %v5122, %v5121
        %v5165 = vpack.c.b16 %v5124, %v5123
        %v5166 = vpack.c.b16 %v5126, %v5125
        %v5167 = vpack.c.b16 %v5128, %v5127
        %v5168 = vpack.c.b16 %v5130, %v5129
        %v5169 = vpack.c.b16 %v5132, %v5131
        %v5170 = vpack.c.b16 %v5134, %v5133
        %v5208 = vsel %vm4880, %v4911, 0
        %5210 = vmatprep.subr.bf16.mxu0 0
        %5211 = vmatpush1.bf16.msra.mxu0 %v5135
        %5212 = vmatprep.subr.bf16.mxu0 0
        %5213 = vmatpush1.bf16.msra.mxu0 %v5136
        %5214 = vmatprep.subr.bf16.mxu0 0
        %5215 = vmatpush1.bf16.msra.mxu0 %v5137
        %5216 = vmatprep.subr.bf16.mxu0 0
        %5217 = vmatpush1.bf16.msra.mxu0 %v5138
        %5218 = vmatprep.subr.bf16.mxu0 0
        %5219 = vmatpush1.bf16.msra.mxu0 %v5139
        %5220 = vmatprep.subr.bf16.mxu0 0
        %5221 = vmatpush1.bf16.msra.mxu0 %v5140
        %5222 = vmatprep.subr.bf16.mxu0 0
        %5223 = vmatpush1.bf16.msra.mxu0 %v5141
        %5224 = vmatprep.subr.bf16.mxu0 0
        %5225 = vmatpush1.bf16.msra.mxu0 %v5142
        %5226 = vmatprep.subr.bf16.mxu0 0
        %5227 = vmatpush1.bf16.msra.mxu0 %v5143
        %5228 = vmatprep.subr.bf16.mxu0 0
        %5229 = vmatpush1.bf16.msra.mxu0 %v5144
        %5230 = vmatprep.subr.bf16.mxu0 0
        %5231 = vmatpush1.bf16.msra.mxu0 %v5145
        %5232 = vmatprep.subr.bf16.mxu0 0
        %5233 = vmatpush1.bf16.msra.mxu0 %v5146
        %5234 = vmatprep.subr.bf16.mxu0 0
        %5235 = vmatpush1.bf16.msra.mxu0 %v5147
        %5236 = vmatprep.subr.bf16.mxu0 0
        %5237 = vmatpush1.bf16.msra.mxu0 %v5148
        %5238 = vmatprep.subr.bf16.mxu0 0
        %5239 = vmatpush1.bf16.msra.mxu0 %v5149
        %5240 = vmatprep.subr.bf16.mxu0 0
        %5241 = vmatpush1.bf16.msra.mxu0 %v5150
        %5242 = vmatprep.mubr.bf16.mxu0 %v4908
        %5243 = vmatmul.mubr.bf16.gmra.mrb[0].mxu0 %v4907
        %v5244 = vpop.f32.mrb[0].mxu0
        %v5245 = vadd.f32 %v4989, %v5244
        %v5246 = vpop.f32.mrb[0].mxu0
        %v5247 = vpop.f32.mrb[0].mxu0
        %v5248 = vadd.f32 %v4989, %v5247
        %v5249 = vpop.f32.mrb[0].mxu0
        %5250 = vdwg.mxu0
        %5251 = vmatprep.subr.bf16.mxu0 0
        %5252 = vmatpush1.bf16.msra.mxu0 %v5151
        %5253 = vmatprep.subr.bf16.mxu0 0
        %5254 = vmatpush1.bf16.msra.mxu0 %v5152
        %5255 = vmatprep.subr.bf16.mxu0 0
        %5256 = vmatpush1.bf16.msra.mxu0 %v5153
        %5257 = vmatprep.subr.bf16.mxu0 0
        %5258 = vmatpush1.bf16.msra.mxu0 %v5154
        %5259 = vmatprep.subr.bf16.mxu0 0
        %5260 = vmatpush1.bf16.msra.mxu0 %v5155
        %5261 = vmatprep.subr.bf16.mxu0 0
        %5262 = vmatpush1.bf16.msra.mxu0 %v5156
        %5263 = vmatprep.subr.bf16.mxu0 0
        %5264 = vmatpush1.bf16.msra.mxu0 %v5157
        %5265 = vmatprep.subr.bf16.mxu0 0
        %5266 = vmatpush1.bf16.msra.mxu0 %v5158
        %5267 = vmatprep.subr.bf16.mxu0 0
        %5268 = vmatpush1.bf16.msra.mxu0 %v5159
        %5269 = vmatprep.subr.bf16.mxu0 0
        %5270 = vmatpush1.bf16.msra.mxu0 %v5160
        %5271 = vmatprep.subr.bf16.mxu0 0
        %5272 = vmatpush1.bf16.msra.mxu0 %v5161
        %5273 = vmatprep.subr.bf16.mxu0 0
        %5274 = vmatpush1.bf16.msra.mxu0 %v5162
        %5275 = vmatprep.subr.bf16.mxu0 0
        %5276 = vmatpush1.bf16.msra.mxu0 %v5163
        %5277 = vmatprep.subr.bf16.mxu0 0
        %5278 = vmatpush1.bf16.msra.mxu0 %v5164
        %5279 = vmatprep.subr.bf16.mxu0 0
        %5280 = vmatpush1.bf16.msra.mxu0 %v5165
        %5281 = vmatprep.subr.bf16.mxu0 0
        %5282 = vmatpush1.bf16.msra.mxu0 %v5166
        %5283 = vmatprep.mubr.bf16.mxu0 %v4910
        %5284 = vmatmul.mubr.bf16.gmra.mrb[0].mxu0 %v4909
        %v5285 = vpop.f32.mrb[0].mxu0
        %v5286 = vadd.f32 %v5245, %v5285
        %v5287 = vpop.f32.mrb[0].mxu0
        %v5288 = vpop.f32.mrb[0].mxu0
        %v5289 = vadd.f32 %v5248, %v5288
        %v5290 = vpop.f32.mrb[0].mxu0
        %5291 = vdwg.mxu0
        %5292 = vmatprep.subr.bf16.mxu0 0
        %5293 = vmatpush1.bf16.msra.mxu0 %v5167
        %5294 = vmatprep.subr.bf16.mxu0 0
        %5295 = vmatpush1.bf16.msra.mxu0 %v5168
        %5296 = vmatprep.subr.bf16.mxu0 0
        %5297 = vmatpush1.bf16.msra.mxu0 %v5169
        %5298 = vmatprep.subr.bf16.mxu0 0
        %5299 = vmatpush1.bf16.msra.mxu0 %v5170
        %5300 = vmatprep.subr.bf16.mxu0 0
        %5301 = vmatpush1.bf16.msra.mxu0 0
        %5302 = vmatprep.subr.bf16.mxu0 0
        %5303 = vmatpush1.bf16.msra.mxu0 0
        %5304 = vmatprep.subr.bf16.mxu0 0
        %5305 = vmatpush1.bf16.msra.mxu0 0
        %5306 = vmatprep.subr.bf16.mxu0 0
        %5307 = vmatpush1.bf16.msra.mxu0 0
        %5308 = vmatprep.subr.bf16.mxu0 0
        %5309 = vmatpush1.bf16.msra.mxu0 0
        %5310 = vmatprep.subr.bf16.mxu0 0
        %5311 = vmatpush1.bf16.msra.mxu0 0
        %5312 = vmatprep.subr.bf16.mxu0 0
        %5313 = vmatpush1.bf16.msra.mxu0 0
        %5314 = vmatprep.subr.bf16.mxu0 0
        %5315 = vmatpush1.bf16.msra.mxu0 0
        %5316 = vmatprep.subr.bf16.mxu0 0
        %5317 = vmatpush1.bf16.msra.mxu0 0
        %5318 = vmatprep.subr.bf16.mxu0 0
        %5319 = vmatpush1.bf16.msra.mxu0 0
        %5320 = vmatprep.subr.bf16.mxu0 0
        %5321 = vmatpush1.bf16.msra.mxu0 0
        %5322 = vmatprep.subr.bf16.mxu0 0
        %5323 = vmatpush1.bf16.msra.mxu0 0
        %5324 = vmatprep.mubr.bf16.mxu0 0
        %5325 = vmatmul.mubr.bf16.gmra.mrb[0].mxu0 %v5208
        %v5326 = vpop.f32.mrb[0].mxu0
        %v5327 = vadd.f32 %v5286, %v5326
        %v5328 = vpop.f32.mrb[0].mxu0
        %v5329 = vpop.f32.mrb[0].mxu0
        %v5330 = vadd.f32 %v5289, %v5329
        %v5331 = vpop.f32.mrb[0].mxu0
        %5332 = vdwg.mxu0
        %v5333 = vmax.f32 %v5327, 0.0
        %v5334 = vmax.f32 %v5330, 0.0
        %5335 = vst [vmem:[%s274] sm:$0xff] %v5333
        %5336 = vst [vmem:[%s274 + $0x8] sm:$0xff] %v5334
        %s5337 = sand.u32 %s181, 1
        %s5338 = scalar_lea.sflag [#allocation5], %s5337
        %s5339 = sand.u32 %s181, 1
        %s5340 = smul.addr %s5339, 16
        %s5341 = scalar_lea.vmem [#allocation4], %s5340
        // Predicated region
        $region49: #{forward.1} parent=47 // pred_check
          %p5342 = pneg %p191
        $region50: #{forward.1} parent=47 // pred_check_branch
          %5344 = sbr.rel (%p5342) target = $region52
        $region51: #{forward.1} parent=47 // pred_region
          %s5345 = smul.u32 2, %s21
          %s5347 = ssub.s32 256, 256
          %5348 = vsyncadd %s5338, %s5347
          %s5349 = smul.addr %s5345, 128
          %s5350 = scalar_lea.hbm %s7, %s5349
          %s5351 = sshll.u32 %s5341, 4
          %s5352 = int_to_ptr.vmem [resolvable:$true] %s5351
          %5357 = dma.vmem_to_hbm [thread:$0]  %s5352, 256, %s5350, %s5338, 128, 128, 8
        $region52: #{forward.1} parent=47 // pred_fallthru
          _
      $region48: #{forward.1} parent=5 // pred_fallthru
        _
      %p5358 = scmp.le.s32.totalorder 2, %s16
      // Predicated region
      $region53: #{forward.1} parent=5 // pred_check
        %p5359 = pneg %p5358
      $region54: #{forward.1} parent=5 // pred_check_branch
        %5361 = sbr.rel (%p5359) target = $region56
      $region55: #{forward.1} parent=5 // pred_region
        %s5362 = ssub.s32 %s16, 2
        // Predicated region
        $region57: #{forward.1} parent=55 // pred_check
          %p5363 = pneg %p197
        $region58: #{forward.1} parent=55 // pred_check_branch
          %5365 = sbr.rel (%p5363) target = $region60
        $region59: #{forward.1} parent=55 // pred_region
          %s5366 = sand.u32 %s182, 1
          %s5367 = scalar_lea.sflag [#allocation5], %s5366
          %s5368 = sand.u32 %s182, 1
          %s5369 = smul.addr %s5368, 16
          %s5370 = scalar_lea.vmem [#allocation4], %s5369
          %5371 = dma.done %s5367, 256
        $region60: #{forward.1} parent=55 // pred_fallthru
          _
      $region56: #{forward.1} parent=5 // pred_fallthru
        _
    $region6: #{forward.1} parent=1 // loop_footer
      %s20 = sadd.s32 1, %s16
    $region7: #{forward.1} parent=1 // loop_footer_branch
      %15 = sbr.rel target = $region3
    $region8: #{forward.1} parent=1 // loop_exit
      _
    %5372 = vsyncpa [#allocation5], 1
    %s5373 = scalar_lea.sflag [#allocation5], 1
    %5374 = vsyncpa %s5373, 1

</llo_original>
